<compile_context>
chip_gen: v7x
topology: tpu7x:2x2x1
jax: 0.10.0
libtpu: 0.0.40
codegen_flags: <defaults>
</compile_context>

<pallas_src>
import functools

import jax
import jax.numpy as jnp
from jax.experimental import pallas as pl
from jax.experimental.pallas import tpu as pltpu

# ---------------- module hyper-parameters ----------------
NUM_ORIENT = 1        # num_orient (must be 1 for the folded input-injection GRU)
NUM_ACTIONS = 4       # num_actions
L_H = 32              # args.l_h
K_ITERS = 8           # args.k  -> (k - 1) GRU iterations
F = 5                 # args.f  (self.conv is unused when input_inject=True)


# ---------------- fused Pallas kernel ----------------
def _planner_fused_kernel(cols_ref, mask_ref, hidw_ref, hidb_ref,
                          h0w_ref, h0b_ref, giw_ref, gib_ref, bhhn_ref,
                          whh_ref, polw_ref, logit_ref, prob_ref,
                          *, H, W, L, n_steps):
    """Per batch element: hid conv -> h0 conv -> (k-1) GRU steps -> policy+softmax.

    Channels-in-sublanes / tokens-in-lanes layout (C, HW):
      cols_ref : (9*Cin, HW) bf16  im2col of [map, goal] (tap-major, channel-minor)
      mask_ref : (9, HW)     f32   per-tap source-validity masks (zero padding)
      hidw_ref : (L, 9*Cin)  bf16  hid 3x3 conv weight;   hidb_ref: (L, 1) f32
      h0w_ref  : (9, L, L)   bf16  h0 3x3 conv weight (one (L,L) GEMM per tap)
      h0b_ref  : (L, 1)      f32
      giw_ref  : (3L, L)     bf16  folded W_ih @ r   (gates r|z|n along sublanes)
      gib_ref  : (3L, 1)     f32   b_ih with b_hh_{r,z} pre-folded into rows [0:2L)
      bhhn_ref : (L, 1)      f32   b_hn (stays inside the r * (...) term)
      whh_ref  : (3L, L)     bf16  W_hh (native PyTorch layout; gh = W_hh @ h)
      polw_ref : (A, L)      bf16  policy 1x1 conv weight
    """
    HW = H * W

    # ---- hid = Conv3x3(x): one lane-dense (L,18)@(18,HW) MXU GEMM, f32 acc ----
    hid = jnp.dot(hidw_ref[...], cols_ref[...],
                  preferred_element_type=jnp.float32) + hidb_ref[...]       # (L, HW)

    # ---- h0 = Conv3x3(hid): 9 lane-rolled, boundary-masked taps (XLU + MXU) ----
    acc = None
    for ky in range(3):
        for kx in range(3):
            k = ky * 3 + kx
            d = (ky - 1) * W + (kx - 1)                     # source-token offset
            if d == 0:
                tap = hid
            else:
                tap = pltpu.roll(hid, (-d) % HW, axis=1) * mask_ref[k:k + 1, :]
            part = jnp.dot(h0w_ref[k], tap.astype(jnp.bfloat16),
                           preferred_element_type=jnp.float32)
            acc = part if acc is None else acc + part
    h = acc + h0b_ref[...]                                                  # (L, HW) f32

    # ---- loop-invariant input-injection gate pre-activations ----
    # gi = W_ih @ (r @ hid) + b_ih  ==  (W_ih r) @ hid + b_ih   (b_hh_{r,z} hoisted)
    hid_bf = hid.astype(jnp.bfloat16)
    gi = jnp.dot(giw_ref[...], hid_bf,
                 preferred_element_type=jnp.float32) + gib_ref[...]         # (3L, HW)
    gi_rz = gi[:2 * L, :]
    gi_n = gi[2 * L:, :]
    whh = whh_ref[...]
    bhh_n = bhhn_ref[...]

    # ---- (k-1) GRU value-iteration steps (unrolled fori_loop) ----
    # Gate slices are sublane row-ranges (free); all slabs are 128-lane dense.
    # Gate math stays f32 (v5e has no bf16 VPU/EUP); matmuls use bf16 operands.
    def gru_step(_, hc):
        gh = jnp.dot(whh, hc.astype(jnp.bfloat16),
                     preferred_element_type=jnp.float32)                    # (3L, HW)
        rz = jax.nn.sigmoid(gi_rz + gh[:2 * L, :])
        r = rz[:L, :]
        z = rz[L:, :]
        n = jnp.tanh(gi_n + r * (gh[2 * L:, :] + bhh_n))
        return (1.0 - z) * n + z * hc

    h = jax.lax.fori_loop(0, n_steps, gru_step, h, unroll=True)

    # ---- policy 1x1 conv + softmax over the action (sublane) axis ----
    logits = jnp.dot(polw_ref[...], h.astype(jnp.bfloat16),
                     preferred_element_type=jnp.float32)                    # (A, HW)
    m = jnp.max(logits, axis=0, keepdims=True)
    e = jnp.exp(logits - m)
    s = jnp.sum(e, axis=0, keepdims=True)
    r0 = pl.reciprocal(s, approx=True)
    inv = r0 * (2.0 - s * r0)            # one Newton step -> ~f32-accurate 1/s
    logit_ref[...] = logits
    prob_ref[...] = e * inv


# ---------------- forward wrapper ----------------
def _boundary_masks(H, W):
    """(9, H*W) f32 masks: tap k = ky*3+kx is valid where (h+ky-1, w+kx-1) in-bounds."""
    hh = jnp.arange(H).reshape(H, 1)
    ww = jnp.arange(W).reshape(1, W)
    rows = []
    for ky in range(3):
        for kx in range(3):
            dy, dx = ky - 1, kx - 1
            ok = ((hh + dy >= 0) & (hh + dy < H) & (ww + dx >= 0) & (ww + dx < W))
            rows.append(ok.reshape(H * W))
    return jnp.stack(rows, axis=0).astype(jnp.float32)


def planner_forward(map_design, goal_map, params):
    """map_design: (N, num_orient, H, W), goal_map: (N, 1, H, W)  (NCHW).

    Returns (logits, probs), each (N, num_actions, num_orient, H, W), matching the
    PyTorch `StandardReturn(logits, probs)` tensors (input_inject=True path).
    """
    N, _, H, W = map_design.shape
    HW = H * W
    L = L_H
    A = NUM_ACTIONS * NUM_ORIENT
    cin = NUM_ORIENT + 1

    # Tiny (18-wide) im2col of the Cin=2 input built once in the wrapper; the hid /
    # h0 feature maps themselves never round-trip through HBM.
    x = jnp.concatenate([map_design, goal_map], axis=1).astype(jnp.float32)
    xp = jnp.pad(x, ((0, 0), (0, 0), (1, 1), (1, 1)))
    cols = jnp.concatenate(
        [xp[:, :, ky:ky + H, kx:kx + W] for ky in range(3) for kx in range(3)],
        axis=1)                                               # (N, 9*Cin, H, W)
    cols18 = cols.reshape(N, 9 * cin, HW).astype(jnp.bfloat16)

    mask9 = _boundary_masks(H, W)

    kernel = functools.partial(_planner_fused_kernel, H=H, W=W, L=L,
                               n_steps=K_ITERS - 1)
    logits_t, probs_t = pl.pallas_call(
        kernel,
        out_shape=(jax.ShapeDtypeStruct((N, A, HW), jnp.float32),
                   jax.ShapeDtypeStruct((N, A, HW), jnp.float32)),
        grid=(N,),
        in_specs=[
            pl.BlockSpec((None, 9 * cin, HW), lambda b: (b, 0, 0)),   # cols18
            pl.BlockSpec((9, HW), lambda b: (0, 0)),                  # boundary masks
            pl.BlockSpec((L, 9 * cin), lambda b: (0, 0)),             # hid conv W
            pl.BlockSpec((L, 1), lambda b: (0, 0)),                   # hid conv b
            pl.BlockSpec((9, L, L), lambda b: (0, 0, 0)),             # h0 conv W taps
            pl.BlockSpec((L, 1), lambda b: (0, 0)),                   # h0 conv b
            pl.BlockSpec((3 * L, L), lambda b: (0, 0)),               # folded gi W
            pl.BlockSpec((3 * L, 1), lambda b: (0, 0)),               # folded gi b
            pl.BlockSpec((L, 1), lambda b: (0, 0)),                   # b_hn
            pl.BlockSpec((3 * L, L), lambda b: (0, 0)),               # W_hh
            pl.BlockSpec((A, L), lambda b: (0, 0)),                   # policy W
        ],
        out_specs=(pl.BlockSpec((None, A, HW), lambda b: (b, 0, 0)),
                   pl.BlockSpec((None, A, HW), lambda b: (b, 0, 0))),
        compiler_params=pltpu.CompilerParams(dimension_semantics=("parallel",)),
    )(cols18, mask9, params["hid_w18"], params["hid_b"], params["h0_w_taps"],
      params["h0_b"], params["gi_w"], params["gi_b"], params["bhh_n"],
      params["whh"], params["pol_w"])

    # Lane-dense (N, A, HW) -> PyTorch (N, num_actions, num_orient, H, W)
    logits = logits_t.reshape(N, NUM_ACTIONS, H, W)[:, :, None, :, :]
    probs = probs_t.reshape(N, NUM_ACTIONS, H, W)[:, :, None, :, :]
    return logits, probs


# ---------------- deterministic parameter init ----------------
def init_params(key):
    ks = jax.random.split(key, 10)

    def u(k, shape, fan_in):
        bound = 1.0 / jnp.sqrt(jnp.float32(fan_in))
        return jax.random.uniform(k, shape, jnp.float32, -bound, bound)

    cin = NUM_ORIENT + 1
    L = L_H
    A = NUM_ACTIONS * NUM_ORIENT

    # raw PyTorch-shaped parameters
    hid_w = u(ks[0], (L, cin, 3, 3), cin * 9)
    hid_b = u(ks[1], (L,), cin * 9)
    h0_w = u(ks[2], (L, L, 3, 3), L * 9)
    h0_b = u(ks[3], (L,), L * 9)
    r_w = u(ks[4], (NUM_ORIENT, L, 1, 1), L).reshape(NUM_ORIENT, L)
    wih = u(ks[5], (3 * L, 1), L)                                   # rows r|z|n
    whh = u(ks[6], (3 * L, L), L)
    bih = u(ks[7], (3 * L,), L)
    bhh = u(ks[8], (3 * L,), L)
    pol_w = u(ks[9], (A, L, 1, 1), L).reshape(A, L)

    p = {}
    # hid conv: (L, 9*Cin), column order = tap-major (ky,kx), channel-minor.
    p["hid_w18"] = jnp.transpose(hid_w, (0, 2, 3, 1)).reshape(L, 9 * cin).astype(jnp.bfloat16)
    p["hid_b"] = hid_b.reshape(L, 1)
    # h0 conv: one (L, L) GEMM weight per tap k = ky*3 + kx.
    p["h0_w_taps"] = jnp.transpose(h0_w, (2, 3, 0, 1)).reshape(9, L, L).astype(jnp.bfloat16)
    p["h0_b"] = h0_b.reshape(L, 1)
    # folded input injection: gi = (W_ih @ r) @ hid + b_ih, with b_hh_{r,z} hoisted.
    p["gi_w"] = (wih @ r_w).astype(jnp.bfloat16)                    # (3L, L)
    gi_b = bih.at[:2 * L].add(bhh[:2 * L])
    p["gi_b"] = gi_b.reshape(3 * L, 1)
    p["bhh_n"] = bhh[2 * L:].reshape(L, 1)
    # recurrent weight, native PyTorch layout (gh = W_hh @ h), all 3 gates fused.
    p["whh"] = whh.astype(jnp.bfloat16)                             # (3L, L)
    # policy 1x1 conv (no bias), bf16 MXU operand.
    p["pol_w"] = pol_w.astype(jnp.bfloat16)                         # (A, L)
    return p


if __name__ == "__main__":
    key = jax.random.PRNGKey(0)
    k_map, k_param = jax.random.split(key, 2)

    N, H, W = 2, 16, 16
    map_design = (jax.random.uniform(k_map, (N, NUM_ORIENT, H, W)) > 0.7).astype(jnp.float32)
    goal_map = jnp.zeros((N, 1, H, W), jnp.float32).at[:, 0, H // 2, W // 2].set(1.0)

    params = init_params(k_param)

    logits, probs = jax.jit(planner_forward)(map_design, goal_map, params)
    jax.block_until_ready((logits, probs))

    assert logits.shape == (N, NUM_ACTIONS, NUM_ORIENT, H, W)
    assert probs.shape == (N, NUM_ACTIONS, NUM_ORIENT, H, W)
    assert bool(jnp.all(jnp.isfinite(logits))) and bool(jnp.all(jnp.isfinite(probs)))
    # probs sum to 1 over the action axis (approx reciprocal + one Newton step)
    assert bool(jnp.allclose(jnp.sum(probs, axis=1), 1.0, atol=1e-4))

    print("KERNEL_OK")
</pallas_src>

<mosaic_0001>
module attributes {stable_mosaic.version = 11 : i64} {
  func.func @_planner_fused_kernel(%arg0: i32, %arg1: memref<1x18x256xbf16, #tpu.memory_space<vmem>>, %arg2: memref<9x256xf32, #tpu.memory_space<vmem>>, %arg3: memref<32x18xbf16, #tpu.memory_space<vmem>>, %arg4: memref<32x1xf32, #tpu.memory_space<vmem>>, %arg5: memref<9x32x32xbf16, #tpu.memory_space<vmem>>, %arg6: memref<32x1xf32, #tpu.memory_space<vmem>>, %arg7: memref<96x32xbf16, #tpu.memory_space<vmem>>, %arg8: memref<96x1xf32, #tpu.memory_space<vmem>>, %arg9: memref<32x1xf32, #tpu.memory_space<vmem>>, %arg10: memref<96x32xbf16, #tpu.memory_space<vmem>>, %arg11: memref<4x32xbf16, #tpu.memory_space<vmem>>, %arg12: memref<1x4x256xf32, #tpu.memory_space<vmem>>, %arg13: memref<1x4x256xf32, #tpu.memory_space<vmem>>) attributes {dimension_semantics = [#tpu.dimension_semantics<parallel>], iteration_bounds = array<i64: 2>, scalar_prefetch = 0 : i64, scratch_operands = 0 : i64, tpu.core_type = #tpu.core_type<tc>, window_params = [{transform_indices = @transform_0, window_bounds = array<i64: 1, 18, 256>}, {pipeline_mode = #tpu.pipeline_mode<synchronous>, transform_indices = @transform_1, window_bounds = array<i64: 9, 256>}, {pipeline_mode = #tpu.pipeline_mode<synchronous>, transform_indices = @transform_2, window_bounds = array<i64: 32, 18>}, {pipeline_mode = #tpu.pipeline_mode<synchronous>, transform_indices = @transform_3, window_bounds = array<i64: 32, 1>}, {pipeline_mode = #tpu.pipeline_mode<synchronous>, transform_indices = @transform_4, window_bounds = array<i64: 9, 32, 32>}, {pipeline_mode = #tpu.pipeline_mode<synchronous>, transform_indices = @transform_5, window_bounds = array<i64: 32, 1>}, {pipeline_mode = #tpu.pipeline_mode<synchronous>, transform_indices = @transform_6, window_bounds = array<i64: 96, 32>}, {pipeline_mode = #tpu.pipeline_mode<synchronous>, transform_indices = @transform_7, window_bounds = array<i64: 96, 1>}, {pipeline_mode = #tpu.pipeline_mode<synchronous>, transform_indices = @transform_8, window_bounds = array<i64: 32, 1>}, {pipeline_mode = #tpu.pipeline_mode<synchronous>, transform_indices = @transform_9, window_bounds = array<i64: 96, 32>}, {pipeline_mode = #tpu.pipeline_mode<synchronous>, transform_indices = @transform_10, window_bounds = array<i64: 4, 32>}, {transform_indices = @transform_11, window_bounds = array<i64: 1, 4, 256>}, {transform_indices = @transform_12, window_bounds = array<i64: 1, 4, 256>}]} {
    %c0 = arith.constant 0 : index
    %c0_0 = arith.constant 0 : index
    %0 = vector.load %arg3[%c0, %c0_0] : memref<32x18xbf16, #tpu.memory_space<vmem>>, vector<32x18xbf16>
    %c0_1 = arith.constant 0 : index
    %c0_2 = arith.constant 0 : index
    %c0_3 = arith.constant 0 : index
    %1 = vector.load %arg1[%c0_1, %c0_2, %c0_3] : memref<1x18x256xbf16, #tpu.memory_space<vmem>>, vector<1x18x256xbf16>
    %2 = vector.shape_cast %1 : vector<1x18x256xbf16> to vector<18x256xbf16>
    %cst = arith.constant dense<0.000000e+00> : vector<32x256xf32>
    %3 = tpu.matmul %0, %2, %cst {dimension_numbers = #tpu.dot_dimension_numbers<[1], [0], [0], [1], [0, 0, 1, 1], [], []>} : vector<32x18xbf16>, vector<18x256xbf16>, vector<32x256xf32> -> vector<32x256xf32>
    %c0_4 = arith.constant 0 : index
    %c0_5 = arith.constant 0 : index
    %4 = vector.load %arg4[%c0_4, %c0_5] : memref<32x1xf32, #tpu.memory_space<vmem>>, vector<32x1xf32>
    %5 = vector.broadcast %4 : vector<32x1xf32> to vector<32x256xf32>
    %6 = arith.addf %3, %5 : vector<32x256xf32>
    %c17_i32 = arith.constant 17 : i32
    %7 = tpu.dynamic_rotate %6 by %c17_i32 dim 1 : vector<32x256xf32>, i32 -> vector<32x256xf32>
    %c0_6 = arith.constant 0 : index
    %c0_7 = arith.constant 0 : index
    %8 = vector.load %arg2[%c0_6, %c0_7] : memref<9x256xf32, #tpu.memory_space<vmem>>, vector<1x256xf32>
    %9 = vector.broadcast %8 : vector<1x256xf32> to vector<32x256xf32>
    %10 = arith.mulf %7, %9 : vector<32x256xf32>
    %c0_8 = arith.constant 0 : index
    %c0_9 = arith.constant 0 : index
    %c0_10 = arith.constant 0 : index
    %11 = vector.load %arg5[%c0_8, %c0_9, %c0_10] : memref<9x32x32xbf16, #tpu.memory_space<vmem>>, vector<1x32x32xbf16>
    %12 = vector.shape_cast %11 : vector<1x32x32xbf16> to vector<32x32xbf16>
    %13 = arith.truncf %10 : vector<32x256xf32> to vector<32x256xbf16>
    %cst_11 = arith.constant dense<0.000000e+00> : vector<32x256xf32>
    %14 = tpu.matmul %12, %13, %cst_11 {dimension_numbers = #tpu.dot_dimension_numbers<[1], [0], [0], [1], [0, 0, 1, 1], [], []>} : vector<32x32xbf16>, vector<32x256xbf16>, vector<32x256xf32> -> vector<32x256xf32>
    %c16_i32 = arith.constant 16 : i32
    %15 = tpu.dynamic_rotate %6 by %c16_i32 dim 1 : vector<32x256xf32>, i32 -> vector<32x256xf32>
    %c1 = arith.constant 1 : index
    %c0_12 = arith.constant 0 : index
    %16 = vector.load %arg2[%c1, %c0_12] : memref<9x256xf32, #tpu.memory_space<vmem>>, vector<1x256xf32>
    %17 = vector.broadcast %16 : vector<1x256xf32> to vector<32x256xf32>
    %18 = arith.mulf %15, %17 : vector<32x256xf32>
    %c1_13 = arith.constant 1 : index
    %c0_14 = arith.constant 0 : index
    %c0_15 = arith.constant 0 : index
    %19 = vector.load %arg5[%c1_13, %c0_14, %c0_15] : memref<9x32x32xbf16, #tpu.memory_space<vmem>>, vector<1x32x32xbf16>
    %20 = vector.shape_cast %19 : vector<1x32x32xbf16> to vector<32x32xbf16>
    %21 = arith.truncf %18 : vector<32x256xf32> to vector<32x256xbf16>
    %cst_16 = arith.constant dense<0.000000e+00> : vector<32x256xf32>
    %22 = tpu.matmul %20, %21, %cst_16 {dimension_numbers = #tpu.dot_dimension_numbers<[1], [0], [0], [1], [0, 0, 1, 1], [], []>} : vector<32x32xbf16>, vector<32x256xbf16>, vector<32x256xf32> -> vector<32x256xf32>
    %23 = arith.addf %14, %22 : vector<32x256xf32>
    %c15_i32 = arith.constant 15 : i32
    %24 = tpu.dynamic_rotate %6 by %c15_i32 dim 1 : vector<32x256xf32>, i32 -> vector<32x256xf32>
    %c2 = arith.constant 2 : index
    %c0_17 = arith.constant 0 : index
    %25 = vector.load %arg2[%c2, %c0_17] : memref<9x256xf32, #tpu.memory_space<vmem>>, vector<1x256xf32>
    %26 = vector.broadcast %25 : vector<1x256xf32> to vector<32x256xf32>
    %27 = arith.mulf %24, %26 : vector<32x256xf32>
    %c2_18 = arith.constant 2 : index
    %c0_19 = arith.constant 0 : index
    %c0_20 = arith.constant 0 : index
    %28 = vector.load %arg5[%c2_18, %c0_19, %c0_20] : memref<9x32x32xbf16, #tpu.memory_space<vmem>>, vector<1x32x32xbf16>
    %29 = vector.shape_cast %28 : vector<1x32x32xbf16> to vector<32x32xbf16>
    %30 = arith.truncf %27 : vector<32x256xf32> to vector<32x256xbf16>
    %cst_21 = arith.constant dense<0.000000e+00> : vector<32x256xf32>
    %31 = tpu.matmul %29, %30, %cst_21 {dimension_numbers = #tpu.dot_dimension_numbers<[1], [0], [0], [1], [0, 0, 1, 1], [], []>} : vector<32x32xbf16>, vector<32x256xbf16>, vector<32x256xf32> -> vector<32x256xf32>
    %32 = arith.addf %23, %31 : vector<32x256xf32>
    %c1_i32 = arith.constant 1 : i32
    %33 = tpu.dynamic_rotate %6 by %c1_i32 dim 1 : vector<32x256xf32>, i32 -> vector<32x256xf32>
    %c3 = arith.constant 3 : index
    %c0_22 = arith.constant 0 : index
    %34 = vector.load %arg2[%c3, %c0_22] : memref<9x256xf32, #tpu.memory_space<vmem>>, vector<1x256xf32>
    %35 = vector.broadcast %34 : vector<1x256xf32> to vector<32x256xf32>
    %36 = arith.mulf %33, %35 : vector<32x256xf32>
    %c3_23 = arith.constant 3 : index
    %c0_24 = arith.constant 0 : index
    %c0_25 = arith.constant 0 : index
    %37 = vector.load %arg5[%c3_23, %c0_24, %c0_25] : memref<9x32x32xbf16, #tpu.memory_space<vmem>>, vector<1x32x32xbf16>
    %38 = vector.shape_cast %37 : vector<1x32x32xbf16> to vector<32x32xbf16>
    %39 = arith.truncf %36 : vector<32x256xf32> to vector<32x256xbf16>
    %cst_26 = arith.constant dense<0.000000e+00> : vector<32x256xf32>
    %40 = tpu.matmul %38, %39, %cst_26 {dimension_numbers = #tpu.dot_dimension_numbers<[1], [0], [0], [1], [0, 0, 1, 1], [], []>} : vector<32x32xbf16>, vector<32x256xbf16>, vector<32x256xf32> -> vector<32x256xf32>
    %41 = arith.addf %32, %40 : vector<32x256xf32>
    %c4 = arith.constant 4 : index
    %c0_27 = arith.constant 0 : index
    %c0_28 = arith.constant 0 : index
    %42 = vector.load %arg5[%c4, %c0_27, %c0_28] : memref<9x32x32xbf16, #tpu.memory_space<vmem>>, vector<1x32x32xbf16>
    %43 = vector.shape_cast %42 : vector<1x32x32xbf16> to vector<32x32xbf16>
    %44 = arith.truncf %6 : vector<32x256xf32> to vector<32x256xbf16>
    %cst_29 = arith.constant dense<0.000000e+00> : vector<32x256xf32>
    %45 = tpu.matmul %43, %44, %cst_29 {dimension_numbers = #tpu.dot_dimension_numbers<[1], [0], [0], [1], [0, 0, 1, 1], [], []>} : vector<32x32xbf16>, vector<32x256xbf16>, vector<32x256xf32> -> vector<32x256xf32>
    %46 = arith.addf %41, %45 : vector<32x256xf32>
    %c255_i32 = arith.constant 255 : i32
    %47 = tpu.dynamic_rotate %6 by %c255_i32 dim 1 : vector<32x256xf32>, i32 -> vector<32x256xf32>
    %c5 = arith.constant 5 : index
    %c0_30 = arith.constant 0 : index
    %48 = vector.load %arg2[%c5, %c0_30] : memref<9x256xf32, #tpu.memory_space<vmem>>, vector<1x256xf32>
    %49 = vector.broadcast %48 : vector<1x256xf32> to vector<32x256xf32>
    %50 = arith.mulf %47, %49 : vector<32x256xf32>
    %c5_31 = arith.constant 5 : index
    %c0_32 = arith.constant 0 : index
    %c0_33 = arith.constant 0 : index
    %51 = vector.load %arg5[%c5_31, %c0_32, %c0_33] : memref<9x32x32xbf16, #tpu.memory_space<vmem>>, vector<1x32x32xbf16>
    %52 = vector.shape_cast %51 : vector<1x32x32xbf16> to vector<32x32xbf16>
    %53 = arith.truncf %50 : vector<32x256xf32> to vector<32x256xbf16>
    %cst_34 = arith.constant dense<0.000000e+00> : vector<32x256xf32>
    %54 = tpu.matmul %52, %53, %cst_34 {dimension_numbers = #tpu.dot_dimension_numbers<[1], [0], [0], [1], [0, 0, 1, 1], [], []>} : vector<32x32xbf16>, vector<32x256xbf16>, vector<32x256xf32> -> vector<32x256xf32>
    %55 = arith.addf %46, %54 : vector<32x256xf32>
    %c241_i32 = arith.constant 241 : i32
    %56 = tpu.dynamic_rotate %6 by %c241_i32 dim 1 : vector<32x256xf32>, i32 -> vector<32x256xf32>
    %c6 = arith.constant 6 : index
    %c0_35 = arith.constant 0 : index
    %57 = vector.load %arg2[%c6, %c0_35] : memref<9x256xf32, #tpu.memory_space<vmem>>, vector<1x256xf32>
    %58 = vector.broadcast %57 : vector<1x256xf32> to vector<32x256xf32>
    %59 = arith.mulf %56, %58 : vector<32x256xf32>
    %c6_36 = arith.constant 6 : index
    %c0_37 = arith.constant 0 : index
    %c0_38 = arith.constant 0 : index
    %60 = vector.load %arg5[%c6_36, %c0_37, %c0_38] : memref<9x32x32xbf16, #tpu.memory_space<vmem>>, vector<1x32x32xbf16>
    %61 = vector.shape_cast %60 : vector<1x32x32xbf16> to vector<32x32xbf16>
    %62 = arith.truncf %59 : vector<32x256xf32> to vector<32x256xbf16>
    %cst_39 = arith.constant dense<0.000000e+00> : vector<32x256xf32>
    %63 = tpu.matmul %61, %62, %cst_39 {dimension_numbers = #tpu.dot_dimension_numbers<[1], [0], [0], [1], [0, 0, 1, 1], [], []>} : vector<32x32xbf16>, vector<32x256xbf16>, vector<32x256xf32> -> vector<32x256xf32>
    %64 = arith.addf %55, %63 : vector<32x256xf32>
    %c240_i32 = arith.constant 240 : i32
    %65 = tpu.dynamic_rotate %6 by %c240_i32 dim 1 : vector<32x256xf32>, i32 -> vector<32x256xf32>
    %c7 = arith.constant 7 : index
    %c0_40 = arith.constant 0 : index
    %66 = vector.load %arg2[%c7, %c0_40] : memref<9x256xf32, #tpu.memory_space<vmem>>, vector<1x256xf32>
    %67 = vector.broadcast %66 : vector<1x256xf32> to vector<32x256xf32>
    %68 = arith.mulf %65, %67 : vector<32x256xf32>
    %c7_41 = arith.constant 7 : index
    %c0_42 = arith.constant 0 : index
    %c0_43 = arith.constant 0 : index
    %69 = vector.load %arg5[%c7_41, %c0_42, %c0_43] : memref<9x32x32xbf16, #tpu.memory_space<vmem>>, vector<1x32x32xbf16>
    %70 = vector.shape_cast %69 : vector<1x32x32xbf16> to vector<32x32xbf16>
    %71 = arith.truncf %68 : vector<32x256xf32> to vector<32x256xbf16>
    %cst_44 = arith.constant dense<0.000000e+00> : vector<32x256xf32>
    %72 = tpu.matmul %70, %71, %cst_44 {dimension_numbers = #tpu.dot_dimension_numbers<[1], [0], [0], [1], [0, 0, 1, 1], [], []>} : vector<32x32xbf16>, vector<32x256xbf16>, vector<32x256xf32> -> vector<32x256xf32>
    %73 = arith.addf %64, %72 : vector<32x256xf32>
    %c239_i32 = arith.constant 239 : i32
    %74 = tpu.dynamic_rotate %6 by %c239_i32 dim 1 : vector<32x256xf32>, i32 -> vector<32x256xf32>
    %c8 = arith.constant 8 : index
    %c0_45 = arith.constant 0 : index
    %75 = vector.load %arg2[%c8, %c0_45] : memref<9x256xf32, #tpu.memory_space<vmem>>, vector<1x256xf32>
    %76 = vector.broadcast %75 : vector<1x256xf32> to vector<32x256xf32>
    %77 = arith.mulf %74, %76 : vector<32x256xf32>
    %c8_46 = arith.constant 8 : index
    %c0_47 = arith.constant 0 : index
    %c0_48 = arith.constant 0 : index
    %78 = vector.load %arg5[%c8_46, %c0_47, %c0_48] : memref<9x32x32xbf16, #tpu.memory_space<vmem>>, vector<1x32x32xbf16>
    %79 = vector.shape_cast %78 : vector<1x32x32xbf16> to vector<32x32xbf16>
    %80 = arith.truncf %77 : vector<32x256xf32> to vector<32x256xbf16>
    %cst_49 = arith.constant dense<0.000000e+00> : vector<32x256xf32>
    %81 = tpu.matmul %79, %80, %cst_49 {dimension_numbers = #tpu.dot_dimension_numbers<[1], [0], [0], [1], [0, 0, 1, 1], [], []>} : vector<32x32xbf16>, vector<32x256xbf16>, vector<32x256xf32> -> vector<32x256xf32>
    %82 = arith.addf %73, %81 : vector<32x256xf32>
    %c0_50 = arith.constant 0 : index
    %c0_51 = arith.constant 0 : index
    %83 = vector.load %arg6[%c0_50, %c0_51] : memref<32x1xf32, #tpu.memory_space<vmem>>, vector<32x1xf32>
    %84 = vector.broadcast %83 : vector<32x1xf32> to vector<32x256xf32>
    %85 = arith.addf %82, %84 : vector<32x256xf32>
    %86 = arith.truncf %6 : vector<32x256xf32> to vector<32x256xbf16>
    %c0_52 = arith.constant 0 : index
    %c0_53 = arith.constant 0 : index
    %87 = vector.load %arg7[%c0_52, %c0_53] : memref<96x32xbf16, #tpu.memory_space<vmem>>, vector<96x32xbf16>
    %cst_54 = arith.constant dense<0.000000e+00> : vector<96x256xf32>
    %88 = tpu.matmul %87, %86, %cst_54 {dimension_numbers = #tpu.dot_dimension_numbers<[1], [0], [0], [1], [0, 0, 1, 1], [], []>} : vector<96x32xbf16>, vector<32x256xbf16>, vector<96x256xf32> -> vector<96x256xf32>
    %c0_55 = arith.constant 0 : index
    %c0_56 = arith.constant 0 : index
    %89 = vector.load %arg8[%c0_55, %c0_56] : memref<96x1xf32, #tpu.memory_space<vmem>>, vector<96x1xf32>
    %90 = vector.broadcast %89 : vector<96x1xf32> to vector<96x256xf32>
    %91 = arith.addf %88, %90 : vector<96x256xf32>
    %92 = vector.extract_strided_slice %91 {offsets = [0, 0], sizes = [64, 256], strides = [1, 1]} : vector<96x256xf32> to vector<64x256xf32>
    %93 = vector.extract_strided_slice %91 {offsets = [64, 0], sizes = [32, 256], strides = [1, 1]} : vector<96x256xf32> to vector<32x256xf32>
    %c0_57 = arith.constant 0 : index
    %c0_58 = arith.constant 0 : index
    %94 = vector.load %arg10[%c0_57, %c0_58] : memref<96x32xbf16, #tpu.memory_space<vmem>>, vector<96x32xbf16>
    %c0_59 = arith.constant 0 : index
    %c0_60 = arith.constant 0 : index
    %95 = vector.load %arg9[%c0_59, %c0_60] : memref<32x1xf32, #tpu.memory_space<vmem>>, vector<32x1xf32>
    %c0_i32 = arith.constant 0 : i32
    %96 = arith.truncf %85 : vector<32x256xf32> to vector<32x256xbf16>
    %cst_61 = arith.constant dense<0.000000e+00> : vector<96x256xf32>
    %97 = tpu.matmul %94, %96, %cst_61 {dimension_numbers = #tpu.dot_dimension_numbers<[1], [0], [0], [1], [0, 0, 1, 1], [], []>} : vector<96x32xbf16>, vector<32x256xbf16>, vector<96x256xf32> -> vector<96x256xf32>
    %98 = vector.extract_strided_slice %97 {offsets = [0, 0], sizes = [64, 256], strides = [1, 1]} : vector<96x256xf32> to vector<64x256xf32>
    %99 = arith.addf %92, %98 : vector<64x256xf32>
    %100 = arith.negf %99 : vector<64x256xf32>
    %101 = math.exp %100 : vector<64x256xf32>
    %cst_62 = arith.constant 1.000000e+00 : f32
    %102 = vector.broadcast %cst_62 : f32 to vector<64x256xf32>
    %103 = arith.addf %102, %101 : vector<64x256xf32>
    %104 = arith.divf %102, %103 : vector<64x256xf32>
    %105 = vector.extract_strided_slice %104 {offsets = [0, 0], sizes = [32, 256], strides = [1, 1]} : vector<64x256xf32> to vector<32x256xf32>
    %106 = vector.extract_strided_slice %104 {offsets = [32, 0], sizes = [32, 256], strides = [1, 1]} : vector<64x256xf32> to vector<32x256xf32>
    %107 = vector.extract_strided_slice %97 {offsets = [64, 0], sizes = [32, 256], strides = [1, 1]} : vector<96x256xf32> to vector<32x256xf32>
    %108 = vector.broadcast %95 : vector<32x1xf32> to vector<32x256xf32>
    %109 = arith.addf %107, %108 : vector<32x256xf32>
    %110 = arith.mulf %105, %109 : vector<32x256xf32>
    %111 = arith.addf %93, %110 : vector<32x256xf32>
    %112 = math.tanh %111 : vector<32x256xf32>
    %cst_63 = arith.constant 1.000000e+00 : f32
    %113 = vector.broadcast %cst_63 : f32 to vector<32x256xf32>
    %114 = arith.subf %113, %106 : vector<32x256xf32>
    %115 = arith.mulf %114, %112 : vector<32x256xf32>
    %116 = arith.mulf %106, %85 : vector<32x256xf32>
    %117 = arith.addf %115, %116 : vector<32x256xf32>
    %c1_i32_64 = arith.constant 1 : i32
    %118 = arith.truncf %117 : vector<32x256xf32> to vector<32x256xbf16>
    %cst_65 = arith.constant dense<0.000000e+00> : vector<96x256xf32>
    %119 = tpu.matmul %94, %118, %cst_65 {dimension_numbers = #tpu.dot_dimension_numbers<[1], [0], [0], [1], [0, 0, 1, 1], [], []>} : vector<96x32xbf16>, vector<32x256xbf16>, vector<96x256xf32> -> vector<96x256xf32>
    %120 = vector.extract_strided_slice %119 {offsets = [0, 0], sizes = [64, 256], strides = [1, 1]} : vector<96x256xf32> to vector<64x256xf32>
    %121 = arith.addf %92, %120 : vector<64x256xf32>
    %122 = arith.negf %121 : vector<64x256xf32>
    %123 = math.exp %122 : vector<64x256xf32>
    %cst_66 = arith.constant 1.000000e+00 : f32
    %124 = vector.broadcast %cst_66 : f32 to vector<64x256xf32>
    %125 = arith.addf %124, %123 : vector<64x256xf32>
    %126 = arith.divf %124, %125 : vector<64x256xf32>
    %127 = vector.extract_strided_slice %126 {offsets = [0, 0], sizes = [32, 256], strides = [1, 1]} : vector<64x256xf32> to vector<32x256xf32>
    %128 = vector.extract_strided_slice %126 {offsets = [32, 0], sizes = [32, 256], strides = [1, 1]} : vector<64x256xf32> to vector<32x256xf32>
    %129 = vector.extract_strided_slice %119 {offsets = [64, 0], sizes = [32, 256], strides = [1, 1]} : vector<96x256xf32> to vector<32x256xf32>
    %130 = vector.broadcast %95 : vector<32x1xf32> to vector<32x256xf32>
    %131 = arith.addf %129, %130 : vector<32x256xf32>
    %132 = arith.mulf %127, %131 : vector<32x256xf32>
    %133 = arith.addf %93, %132 : vector<32x256xf32>
    %134 = math.tanh %133 : vector<32x256xf32>
    %cst_67 = arith.constant 1.000000e+00 : f32
    %135 = vector.broadcast %cst_67 : f32 to vector<32x256xf32>
    %136 = arith.subf %135, %128 : vector<32x256xf32>
    %137 = arith.mulf %136, %134 : vector<32x256xf32>
    %138 = arith.mulf %128, %117 : vector<32x256xf32>
    %139 = arith.addf %137, %138 : vector<32x256xf32>
    %c2_i32 = arith.constant 2 : i32
    %140 = arith.truncf %139 : vector<32x256xf32> to vector<32x256xbf16>
    %cst_68 = arith.constant dense<0.000000e+00> : vector<96x256xf32>
    %141 = tpu.matmul %94, %140, %cst_68 {dimension_numbers = #tpu.dot_dimension_numbers<[1], [0], [0], [1], [0, 0, 1, 1], [], []>} : vector<96x32xbf16>, vector<32x256xbf16>, vector<96x256xf32> -> vector<96x256xf32>
    %142 = vector.extract_strided_slice %141 {offsets = [0, 0], sizes = [64, 256], strides = [1, 1]} : vector<96x256xf32> to vector<64x256xf32>
    %143 = arith.addf %92, %142 : vector<64x256xf32>
    %144 = arith.negf %143 : vector<64x256xf32>
    %145 = math.exp %144 : vector<64x256xf32>
    %cst_69 = arith.constant 1.000000e+00 : f32
    %146 = vector.broadcast %cst_69 : f32 to vector<64x256xf32>
    %147 = arith.addf %146, %145 : vector<64x256xf32>
    %148 = arith.divf %146, %147 : vector<64x256xf32>
    %149 = vector.extract_strided_slice %148 {offsets = [0, 0], sizes = [32, 256], strides = [1, 1]} : vector<64x256xf32> to vector<32x256xf32>
    %150 = vector.extract_strided_slice %148 {offsets = [32, 0], sizes = [32, 256], strides = [1, 1]} : vector<64x256xf32> to vector<32x256xf32>
    %151 = vector.extract_strided_slice %141 {offsets = [64, 0], sizes = [32, 256], strides = [1, 1]} : vector<96x256xf32> to vector<32x256xf32>
    %152 = vector.broadcast %95 : vector<32x1xf32> to vector<32x256xf32>
    %153 = arith.addf %151, %152 : vector<32x256xf32>
    %154 = arith.mulf %149, %153 : vector<32x256xf32>
    %155 = arith.addf %93, %154 : vector<32x256xf32>
    %156 = math.tanh %155 : vector<32x256xf32>
    %cst_70 = arith.constant 1.000000e+00 : f32
    %157 = vector.broadcast %cst_70 : f32 to vector<32x256xf32>
    %158 = arith.subf %157, %150 : vector<32x256xf32>
    %159 = arith.mulf %158, %156 : vector<32x256xf32>
    %160 = arith.mulf %150, %139 : vector<32x256xf32>
    %161 = arith.addf %159, %160 : vector<32x256xf32>
    %c3_i32 = arith.constant 3 : i32
    %162 = arith.truncf %161 : vector<32x256xf32> to vector<32x256xbf16>
    %cst_71 = arith.constant dense<0.000000e+00> : vector<96x256xf32>
    %163 = tpu.matmul %94, %162, %cst_71 {dimension_numbers = #tpu.dot_dimension_numbers<[1], [0], [0], [1], [0, 0, 1, 1], [], []>} : vector<96x32xbf16>, vector<32x256xbf16>, vector<96x256xf32> -> vector<96x256xf32>
    %164 = vector.extract_strided_slice %163 {offsets = [0, 0], sizes = [64, 256], strides = [1, 1]} : vector<96x256xf32> to vector<64x256xf32>
    %165 = arith.addf %92, %164 : vector<64x256xf32>
    %166 = arith.negf %165 : vector<64x256xf32>
    %167 = math.exp %166 : vector<64x256xf32>
    %cst_72 = arith.constant 1.000000e+00 : f32
    %168 = vector.broadcast %cst_72 : f32 to vector<64x256xf32>
    %169 = arith.addf %168, %167 : vector<64x256xf32>
    %170 = arith.divf %168, %169 : vector<64x256xf32>
    %171 = vector.extract_strided_slice %170 {offsets = [0, 0], sizes = [32, 256], strides = [1, 1]} : vector<64x256xf32> to vector<32x256xf32>
    %172 = vector.extract_strided_slice %170 {offsets = [32, 0], sizes = [32, 256], strides = [1, 1]} : vector<64x256xf32> to vector<32x256xf32>
    %173 = vector.extract_strided_slice %163 {offsets = [64, 0], sizes = [32, 256], strides = [1, 1]} : vector<96x256xf32> to vector<32x256xf32>
    %174 = vector.broadcast %95 : vector<32x1xf32> to vector<32x256xf32>
    %175 = arith.addf %173, %174 : vector<32x256xf32>
    %176 = arith.mulf %171, %175 : vector<32x256xf32>
    %177 = arith.addf %93, %176 : vector<32x256xf32>
    %178 = math.tanh %177 : vector<32x256xf32>
    %cst_73 = arith.constant 1.000000e+00 : f32
    %179 = vector.broadcast %cst_73 : f32 to vector<32x256xf32>
    %180 = arith.subf %179, %172 : vector<32x256xf32>
    %181 = arith.mulf %180, %178 : vector<32x256xf32>
    %182 = arith.mulf %172, %161 : vector<32x256xf32>
    %183 = arith.addf %181, %182 : vector<32x256xf32>
    %c4_i32 = arith.constant 4 : i32
    %184 = arith.truncf %183 : vector<32x256xf32> to vector<32x256xbf16>
    %cst_74 = arith.constant dense<0.000000e+00> : vector<96x256xf32>
    %185 = tpu.matmul %94, %184, %cst_74 {dimension_numbers = #tpu.dot_dimension_numbers<[1], [0], [0], [1], [0, 0, 1, 1], [], []>} : vector<96x32xbf16>, vector<32x256xbf16>, vector<96x256xf32> -> vector<96x256xf32>
    %186 = vector.extract_strided_slice %185 {offsets = [0, 0], sizes = [64, 256], strides = [1, 1]} : vector<96x256xf32> to vector<64x256xf32>
    %187 = arith.addf %92, %186 : vector<64x256xf32>
    %188 = arith.negf %187 : vector<64x256xf32>
    %189 = math.exp %188 : vector<64x256xf32>
    %cst_75 = arith.constant 1.000000e+00 : f32
    %190 = vector.broadcast %cst_75 : f32 to vector<64x256xf32>
    %191 = arith.addf %190, %189 : vector<64x256xf32>
    %192 = arith.divf %190, %191 : vector<64x256xf32>
    %193 = vector.extract_strided_slice %192 {offsets = [0, 0], sizes = [32, 256], strides = [1, 1]} : vector<64x256xf32> to vector<32x256xf32>
    %194 = vector.extract_strided_slice %192 {offsets = [32, 0], sizes = [32, 256], strides = [1, 1]} : vector<64x256xf32> to vector<32x256xf32>
    %195 = vector.extract_strided_slice %185 {offsets = [64, 0], sizes = [32, 256], strides = [1, 1]} : vector<96x256xf32> to vector<32x256xf32>
    %196 = vector.broadcast %95 : vector<32x1xf32> to vector<32x256xf32>
    %197 = arith.addf %195, %196 : vector<32x256xf32>
    %198 = arith.mulf %193, %197 : vector<32x256xf32>
    %199 = arith.addf %93, %198 : vector<32x256xf32>
    %200 = math.tanh %199 : vector<32x256xf32>
    %cst_76 = arith.constant 1.000000e+00 : f32
    %201 = vector.broadcast %cst_76 : f32 to vector<32x256xf32>
    %202 = arith.subf %201, %194 : vector<32x256xf32>
    %203 = arith.mulf %202, %200 : vector<32x256xf32>
    %204 = arith.mulf %194, %183 : vector<32x256xf32>
    %205 = arith.addf %203, %204 : vector<32x256xf32>
    %c5_i32 = arith.constant 5 : i32
    %206 = arith.truncf %205 : vector<32x256xf32> to vector<32x256xbf16>
    %cst_77 = arith.constant dense<0.000000e+00> : vector<96x256xf32>
    %207 = tpu.matmul %94, %206, %cst_77 {dimension_numbers = #tpu.dot_dimension_numbers<[1], [0], [0], [1], [0, 0, 1, 1], [], []>} : vector<96x32xbf16>, vector<32x256xbf16>, vector<96x256xf32> -> vector<96x256xf32>
    %208 = vector.extract_strided_slice %207 {offsets = [0, 0], sizes = [64, 256], strides = [1, 1]} : vector<96x256xf32> to vector<64x256xf32>
    %209 = arith.addf %92, %208 : vector<64x256xf32>
    %210 = arith.negf %209 : vector<64x256xf32>
    %211 = math.exp %210 : vector<64x256xf32>
    %cst_78 = arith.constant 1.000000e+00 : f32
    %212 = vector.broadcast %cst_78 : f32 to vector<64x256xf32>
    %213 = arith.addf %212, %211 : vector<64x256xf32>
    %214 = arith.divf %212, %213 : vector<64x256xf32>
    %215 = vector.extract_strided_slice %214 {offsets = [0, 0], sizes = [32, 256], strides = [1, 1]} : vector<64x256xf32> to vector<32x256xf32>
    %216 = vector.extract_strided_slice %214 {offsets = [32, 0], sizes = [32, 256], strides = [1, 1]} : vector<64x256xf32> to vector<32x256xf32>
    %217 = vector.extract_strided_slice %207 {offsets = [64, 0], sizes = [32, 256], strides = [1, 1]} : vector<96x256xf32> to vector<32x256xf32>
    %218 = vector.broadcast %95 : vector<32x1xf32> to vector<32x256xf32>
    %219 = arith.addf %217, %218 : vector<32x256xf32>
    %220 = arith.mulf %215, %219 : vector<32x256xf32>
    %221 = arith.addf %93, %220 : vector<32x256xf32>
    %222 = math.tanh %221 : vector<32x256xf32>
    %cst_79 = arith.constant 1.000000e+00 : f32
    %223 = vector.broadcast %cst_79 : f32 to vector<32x256xf32>
    %224 = arith.subf %223, %216 : vector<32x256xf32>
    %225 = arith.mulf %224, %222 : vector<32x256xf32>
    %226 = arith.mulf %216, %205 : vector<32x256xf32>
    %227 = arith.addf %225, %226 : vector<32x256xf32>
    %c6_i32 = arith.constant 6 : i32
    %228 = arith.truncf %227 : vector<32x256xf32> to vector<32x256xbf16>
    %cst_80 = arith.constant dense<0.000000e+00> : vector<96x256xf32>
    %229 = tpu.matmul %94, %228, %cst_80 {dimension_numbers = #tpu.dot_dimension_numbers<[1], [0], [0], [1], [0, 0, 1, 1], [], []>} : vector<96x32xbf16>, vector<32x256xbf16>, vector<96x256xf32> -> vector<96x256xf32>
    %230 = vector.extract_strided_slice %229 {offsets = [0, 0], sizes = [64, 256], strides = [1, 1]} : vector<96x256xf32> to vector<64x256xf32>
    %231 = arith.addf %92, %230 : vector<64x256xf32>
    %232 = arith.negf %231 : vector<64x256xf32>
    %233 = math.exp %232 : vector<64x256xf32>
    %cst_81 = arith.constant 1.000000e+00 : f32
    %234 = vector.broadcast %cst_81 : f32 to vector<64x256xf32>
    %235 = arith.addf %234, %233 : vector<64x256xf32>
    %236 = arith.divf %234, %235 : vector<64x256xf32>
    %237 = vector.extract_strided_slice %236 {offsets = [0, 0], sizes = [32, 256], strides = [1, 1]} : vector<64x256xf32> to vector<32x256xf32>
    %238 = vector.extract_strided_slice %236 {offsets = [32, 0], sizes = [32, 256], strides = [1, 1]} : vector<64x256xf32> to vector<32x256xf32>
    %239 = vector.extract_strided_slice %229 {offsets = [64, 0], sizes = [32, 256], strides = [1, 1]} : vector<96x256xf32> to vector<32x256xf32>
    %240 = vector.broadcast %95 : vector<32x1xf32> to vector<32x256xf32>
    %241 = arith.addf %239, %240 : vector<32x256xf32>
    %242 = arith.mulf %237, %241 : vector<32x256xf32>
    %243 = arith.addf %93, %242 : vector<32x256xf32>
    %244 = math.tanh %243 : vector<32x256xf32>
    %cst_82 = arith.constant 1.000000e+00 : f32
    %245 = vector.broadcast %cst_82 : f32 to vector<32x256xf32>
    %246 = arith.subf %245, %238 : vector<32x256xf32>
    %247 = arith.mulf %246, %244 : vector<32x256xf32>
    %248 = arith.mulf %238, %227 : vector<32x256xf32>
    %249 = arith.addf %247, %248 : vector<32x256xf32>
    %c0_83 = arith.constant 0 : index
    %c0_84 = arith.constant 0 : index
    %250 = vector.load %arg11[%c0_83, %c0_84] : memref<4x32xbf16, #tpu.memory_space<vmem>>, vector<4x32xbf16>
    %251 = arith.truncf %249 : vector<32x256xf32> to vector<32x256xbf16>
    %cst_85 = arith.constant dense<0.000000e+00> : vector<4x256xf32>
    %252 = tpu.matmul %250, %251, %cst_85 {dimension_numbers = #tpu.dot_dimension_numbers<[1], [0], [0], [1], [0, 0, 1, 1], [], []>} : vector<4x32xbf16>, vector<32x256xbf16>, vector<4x256xf32> -> vector<4x256xf32>
    %cst_86 = arith.constant dense<0xFF800000> : vector<256xf32>
    %253 = vector.multi_reduction <maximumf>, %252, %cst_86 [0] : vector<4x256xf32> to vector<256xf32>
    %254 = vector.shape_cast %253 : vector<256xf32> to vector<1x256xf32>
    %255 = vector.broadcast %254 : vector<1x256xf32> to vector<4x256xf32>
    %256 = arith.subf %252, %255 : vector<4x256xf32>
    %257 = math.exp %256 : vector<4x256xf32>
    %cst_87 = arith.constant dense<0.000000e+00> : vector<256xf32>
    %258 = vector.multi_reduction <add>, %257, %cst_87 [0] : vector<4x256xf32> to vector<256xf32>
    %259 = vector.shape_cast %258 : vector<256xf32> to vector<1x256xf32>
    %260 = tpu.reciprocal %259 {approx = true} : vector<1x256xf32> -> vector<1x256xf32>
    %261 = arith.mulf %259, %260 : vector<1x256xf32>
    %cst_88 = arith.constant 2.000000e+00 : f32
    %262 = vector.broadcast %cst_88 : f32 to vector<1x256xf32>
    %263 = arith.subf %262, %261 : vector<1x256xf32>
    %264 = arith.mulf %260, %263 : vector<1x256xf32>
    %c0_89 = arith.constant 0 : index
    %c0_90 = arith.constant 0 : index
    %c0_91 = arith.constant 0 : index
    %265 = vector.load %arg12[%c0_89, %c0_90, %c0_91] : memref<1x4x256xf32, #tpu.memory_space<vmem>>, vector<1x4x256xf32>
    %266 = vector.shape_cast %265 : vector<1x4x256xf32> to vector<4x256xf32>
    %267 = vector.shape_cast %252 : vector<4x256xf32> to vector<1x4x256xf32>
    tpu.vector_store %arg12[%c0_89, %c0_90, %c0_91], %267 {strides = array<i32>} : memref<1x4x256xf32, #tpu.memory_space<vmem>>, vector<1x4x256xf32>,
    %268 = vector.broadcast %264 : vector<1x256xf32> to vector<4x256xf32>
    %269 = arith.mulf %257, %268 : vector<4x256xf32>
    %c0_92 = arith.constant 0 : index
    %c0_93 = arith.constant 0 : index
    %c0_94 = arith.constant 0 : index
    %270 = vector.load %arg13[%c0_92, %c0_93, %c0_94] : memref<1x4x256xf32, #tpu.memory_space<vmem>>, vector<1x4x256xf32>
    %271 = vector.shape_cast %270 : vector<1x4x256xf32> to vector<4x256xf32>
    %272 = vector.shape_cast %269 : vector<4x256xf32> to vector<1x4x256xf32>
    tpu.vector_store %arg13[%c0_92, %c0_93, %c0_94], %272 {strides = array<i32>} : memref<1x4x256xf32, #tpu.memory_space<vmem>>, vector<1x4x256xf32>,
    return
  }
  func.func @transform_0(%arg0: i32) -> (i32, i32, i32) {
    %c0_i32 = arith.constant 0 : i32
    %c0_i32_0 = arith.constant 0 : i32
    %c0_i32_1 = arith.constant 0 : i32
    return %arg0, %c0_i32, %c0_i32_0 : i32, i32, i32
  }
  func.func @transform_1(%arg0: i32) -> (i32, i32) {
    %c0_i32 = arith.constant 0 : i32
    %c0_i32_0 = arith.constant 0 : i32
    %c0_i32_1 = arith.constant 0 : i32
    return %c0_i32, %c0_i32_0 : i32, i32
  }
  func.func @transform_2(%arg0: i32) -> (i32, i32) {
    %c0_i32 = arith.constant 0 : i32
    %c0_i32_0 = arith.constant 0 : i32
    %c0_i32_1 = arith.constant 0 : i32
    return %c0_i32, %c0_i32_0 : i32, i32
  }
  func.func @transform_3(%arg0: i32) -> (i32, i32) {
    %c0_i32 = arith.constant 0 : i32
    %c0_i32_0 = arith.constant 0 : i32
    %c0_i32_1 = arith.constant 0 : i32
    return %c0_i32, %c0_i32_0 : i32, i32
  }
  func.func @transform_4(%arg0: i32) -> (i32, i32, i32) {
    %c0_i32 = arith.constant 0 : i32
    %c0_i32_0 = arith.constant 0 : i32
    %c0_i32_1 = arith.constant 0 : i32
    %c0_i32_2 = arith.constant 0 : i32
    return %c0_i32, %c0_i32_0, %c0_i32_1 : i32, i32, i32
  }
  func.func @transform_5(%arg0: i32) -> (i32, i32) {
    %c0_i32 = arith.constant 0 : i32
    %c0_i32_0 = arith.constant 0 : i32
    %c0_i32_1 = arith.constant 0 : i32
    return %c0_i32, %c0_i32_0 : i32, i32
  }
  func.func @transform_6(%arg0: i32) -> (i32, i32) {
    %c0_i32 = arith.constant 0 : i32
    %c0_i32_0 = arith.constant 0 : i32
    %c0_i32_1 = arith.constant 0 : i32
    return %c0_i32, %c0_i32_0 : i32, i32
  }
  func.func @transform_7(%arg0: i32) -> (i32, i32) {
    %c0_i32 = arith.constant 0 : i32
    %c0_i32_0 = arith.constant 0 : i32
    %c0_i32_1 = arith.constant 0 : i32
    return %c0_i32, %c0_i32_0 : i32, i32
  }
  func.func @transform_8(%arg0: i32) -> (i32, i32) {
    %c0_i32 = arith.constant 0 : i32
    %c0_i32_0 = arith.constant 0 : i32
    %c0_i32_1 = arith.constant 0 : i32
    return %c0_i32, %c0_i32_0 : i32, i32
  }
  func.func @transform_9(%arg0: i32) -> (i32, i32) {
    %c0_i32 = arith.constant 0 : i32
    %c0_i32_0 = arith.constant 0 : i32
    %c0_i32_1 = arith.constant 0 : i32
    return %c0_i32, %c0_i32_0 : i32, i32
  }
  func.func @transform_10(%arg0: i32) -> (i32, i32) {
    %c0_i32 = arith.constant 0 : i32
    %c0_i32_0 = arith.constant 0 : i32
    %c0_i32_1 = arith.constant 0 : i32
    return %c0_i32, %c0_i32_0 : i32, i32
  }
  func.func @transform_11(%arg0: i32) -> (i32, i32, i32) {
    %c0_i32 = arith.constant 0 : i32
    %c0_i32_0 = arith.constant 0 : i32
    %c0_i32_1 = arith.constant 0 : i32
    return %arg0, %c0_i32, %c0_i32_0 : i32, i32, i32
  }
  func.func @transform_12(%arg0: i32) -> (i32, i32, i32) {
    %c0_i32 = arith.constant 0 : i32
    %c0_i32_0 = arith.constant 0 : i32
    %c0_i32_1 = arith.constant 0 : i32
    return %arg0, %c0_i32, %c0_i32_0 : i32, i32, i32
  }
}

</mosaic_0001>

<llo_original>
// kernel: planner_forward.1
$region0: #{planner_forward.1}
  #allocation0 [shape = 'u32[]', space=smem, size = 0x4, offset = 0x4, fixed_abs, tag = 'smem constant byte address 0x4 - core index']
  #allocation1 [shape = 'u32[144,128]{1,0:T(1,128)}', space=vmem, size = 0x12000, scoped, tag = 'internal scratch']
  %s0 = inlined_call_operand.vmem [shape: bf16[2,18,256], index: 0, kind: input, shape index: {}]
  %s1 = inlined_call_operand.vmem [shape: f32[9,256], index: 1, kind: input, shape index: {}]
  %s2 = inlined_call_operand.vmem [shape: bf16[32,18], index: 2, kind: input, shape index: {}]
  %s3 = inlined_call_operand.vmem [shape: f32[32,1], index: 3, kind: input, shape index: {}]
  %s4 = inlined_call_operand.vmem [shape: bf16[9,32,32], index: 4, kind: input, shape index: {}]
  %s5 = inlined_call_operand.vmem [shape: f32[32,1], index: 5, kind: input, shape index: {}]
  %s6 = inlined_call_operand.vmem [shape: bf16[96,32], index: 6, kind: input, shape index: {}]
  %s7 = inlined_call_operand.vmem [shape: f32[96,1], index: 7, kind: input, shape index: {}]
  %s8 = inlined_call_operand.vmem [shape: f32[32,1], index: 8, kind: input, shape index: {}]
  %s9 = inlined_call_operand.vmem [shape: bf16[96,32], index: 9, kind: input, shape index: {}]
  %s10 = inlined_call_operand.vmem [shape: bf16[4,32], index: 10, kind: input, shape index: {}]
  %s11 = inlined_call_operand.vmem [shape: f32[2,4,256], index: 11, kind: output, shape index: {0}]
  %s12 = inlined_call_operand.vmem [shape: f32[2,4,256], index: 12, kind: output, shape index: {1}]
  %13 = xla_tuple %s11, %s12
  %s14 = sld [smem:[#allocation0]]
  $region85: #{planner_forward.1} parent=0
    _
  %s16 = ssub.s32 1, %s14
  %s17 = scalar_select 0, %s16, %s14
  loop: start=0, step=1, limit=4
  $region2: #{planner_forward.1} parent=0 // loop_pre_header
    _
  $region3: #{planner_forward.1} parent=0 // loop_header
    %s19 = sphi 0, %s23
    %p20 = scmp.ge.s32.totalorder %s19, 4
    %s29 = sphi 0, %s31
    %s32 = sphi 0, %s29
    %s33 = sphi 0, %s32
    %s49 = sphi 0, %s33
    %s53 = sphi 0, %s53
    %s55 = sphi 0, %s53
    %s56 = sphi 0, %s55
    %s70 = sphi 0, %s56
    %s74 = sphi 0, %s74
    %s76 = sphi 0, %s74
    %s77 = sphi 0, %s76
    %s91 = sphi 0, %s77
    %s95 = sphi 0, %s95
    %s97 = sphi 0, %s95
    %s98 = sphi 0, %s97
    %s112 = sphi 0, %s98
    %s116 = sphi 0, %s116
    %s118 = sphi 0, %s116
    %s119 = sphi 0, %s118
    %s133 = sphi 0, %s119
    %s137 = sphi 0, %s137
    %s139 = sphi 0, %s137
    %s140 = sphi 0, %s139
    %s154 = sphi 0, %s140
    %s158 = sphi 0, %s158
    %s160 = sphi 0, %s158
    %s161 = sphi 0, %s160
    %s175 = sphi 0, %s161
    %s179 = sphi 0, %s179
    %s181 = sphi 0, %s179
    %s182 = sphi 0, %s181
    %s196 = sphi 0, %s182
    %s200 = sphi 0, %s200
    %s202 = sphi 0, %s200
    %s203 = sphi 0, %s202
    %s217 = sphi 0, %s203
    %s221 = sphi 0, %s221
    %s223 = sphi 0, %s221
    %s224 = sphi 0, %s223
    %s238 = sphi 0, %s224
    %s242 = sphi 0, %s242
    %s244 = sphi 0, %s242
    %s245 = sphi 0, %s244
    %s259 = sphi 0, %s245
    %s265 = sphi 0, %s267
    %s268 = sphi 0, %s265
    %s269 = sphi 0, %s268
    %s285 = sphi 0, %s269
    %s291 = sphi 0, %s293
    %s294 = sphi 0, %s291
    %s295 = sphi 0, %s294
    %s311 = sphi 0, %s295
  $region4: #{planner_forward.1} parent=0 // loop_header_branch
    %22 = sbr.rel (%p20) target = $region8
  $region5: #{planner_forward.1} parent=0 // loop_body
    %s24 = ssub.s32 %s19, 1
    %s25 = ssub.s32 %s19, 2
    %s26 = sadd.s32 %s19, 1
    %s27 = ssub.s32 %s19, %s26
    %p28 = scmp.eq.s32.totalorder %s27, 0
    %s30 = sadd.s32 %s29, 1
    %s31 = scalar_select %p28, %s29, %s30
    %p34 = pneg %p28
    %p35 = scmp.eq.s32.totalorder %s19, 1
    %p36 = por %p34, %p35
    %p37 = scmp.ne.s32.totalorder %s29, %s32
    %p38 = scmp.eq.s32.totalorder %s19, 0
    %p39 = por %p37, %p38
    %p40 = scmp.ne.s32.totalorder %s29, %s32
    %p41 = scmp.eq.s32.totalorder %s24, 1
    %p42 = por %p40, %p41
    %p43 = scmp.ne.s32.totalorder %s32, %s33
    %p44 = scmp.eq.s32.totalorder %s24, 0
    %p45 = por %p43, %p44
    %p46 = scmp.ne.s32.totalorder %s32, %s33
    %p47 = scmp.eq.s32.totalorder %s25, 1
    %p48 = por %p46, %p47
    %p50 = scmp.ne.s32.totalorder %s33, %s49
    %p51 = scmp.eq.s32.totalorder %s25, 0
    %p52 = por %p50, %p51
    %s54 = sadd.s32 %s53, 1
    %p57 = scmp.eq.s32.totalorder %s19, 1
    %p58 = scmp.ne.s32.totalorder %s53, %s55
    %p59 = scmp.eq.s32.totalorder %s19, 0
    %p60 = por %p58, %p59
    %p61 = scmp.ne.s32.totalorder %s53, %s55
    %p62 = scmp.eq.s32.totalorder %s24, 1
    %p63 = por %p61, %p62
    %p64 = scmp.ne.s32.totalorder %s55, %s56
    %p65 = scmp.eq.s32.totalorder %s24, 0
    %p66 = por %p64, %p65
    %p67 = scmp.ne.s32.totalorder %s55, %s56
    %p68 = scmp.eq.s32.totalorder %s25, 1
    %p69 = por %p67, %p68
    %p71 = scmp.ne.s32.totalorder %s56, %s70
    %p72 = scmp.eq.s32.totalorder %s25, 0
    %p73 = por %p71, %p72
    %s75 = sadd.s32 %s74, 1
    %p78 = scmp.eq.s32.totalorder %s19, 1
    %p79 = scmp.ne.s32.totalorder %s74, %s76
    %p80 = scmp.eq.s32.totalorder %s19, 0
    %p81 = por %p79, %p80
    %p82 = scmp.ne.s32.totalorder %s74, %s76
    %p83 = scmp.eq.s32.totalorder %s24, 1
    %p84 = por %p82, %p83
    %p85 = scmp.ne.s32.totalorder %s76, %s77
    %p86 = scmp.eq.s32.totalorder %s24, 0
    %p87 = por %p85, %p86
    %p88 = scmp.ne.s32.totalorder %s76, %s77
    %p89 = scmp.eq.s32.totalorder %s25, 1
    %p90 = por %p88, %p89
    %p92 = scmp.ne.s32.totalorder %s77, %s91
    %p93 = scmp.eq.s32.totalorder %s25, 0
    %p94 = por %p92, %p93
    %s96 = sadd.s32 %s95, 1
    %p99 = scmp.eq.s32.totalorder %s19, 1
    %p100 = scmp.ne.s32.totalorder %s95, %s97
    %p101 = scmp.eq.s32.totalorder %s19, 0
    %p102 = por %p100, %p101
    %p103 = scmp.ne.s32.totalorder %s95, %s97
    %p104 = scmp.eq.s32.totalorder %s24, 1
    %p105 = por %p103, %p104
    %p106 = scmp.ne.s32.totalorder %s97, %s98
    %p107 = scmp.eq.s32.totalorder %s24, 0
    %p108 = por %p106, %p107
    %p109 = scmp.ne.s32.totalorder %s97, %s98
    %p110 = scmp.eq.s32.totalorder %s25, 1
    %p111 = por %p109, %p110
    %p113 = scmp.ne.s32.totalorder %s98, %s112
    %p114 = scmp.eq.s32.totalorder %s25, 0
    %p115 = por %p113, %p114
    %s117 = sadd.s32 %s116, 1
    %p120 = scmp.eq.s32.totalorder %s19, 1
    %p121 = scmp.ne.s32.totalorder %s116, %s118
    %p122 = scmp.eq.s32.totalorder %s19, 0
    %p123 = por %p121, %p122
    %p124 = scmp.ne.s32.totalorder %s116, %s118
    %p125 = scmp.eq.s32.totalorder %s24, 1
    %p126 = por %p124, %p125
    %p127 = scmp.ne.s32.totalorder %s118, %s119
    %p128 = scmp.eq.s32.totalorder %s24, 0
    %p129 = por %p127, %p128
    %p130 = scmp.ne.s32.totalorder %s118, %s119
    %p131 = scmp.eq.s32.totalorder %s25, 1
    %p132 = por %p130, %p131
    %p134 = scmp.ne.s32.totalorder %s119, %s133
    %p135 = scmp.eq.s32.totalorder %s25, 0
    %p136 = por %p134, %p135
    %s138 = sadd.s32 %s137, 1
    %p141 = scmp.eq.s32.totalorder %s19, 1
    %p142 = scmp.ne.s32.totalorder %s137, %s139
    %p143 = scmp.eq.s32.totalorder %s19, 0
    %p144 = por %p142, %p143
    %p145 = scmp.ne.s32.totalorder %s137, %s139
    %p146 = scmp.eq.s32.totalorder %s24, 1
    %p147 = por %p145, %p146
    %p148 = scmp.ne.s32.totalorder %s139, %s140
    %p149 = scmp.eq.s32.totalorder %s24, 0
    %p150 = por %p148, %p149
    %p151 = scmp.ne.s32.totalorder %s139, %s140
    %p152 = scmp.eq.s32.totalorder %s25, 1
    %p153 = por %p151, %p152
    %p155 = scmp.ne.s32.totalorder %s140, %s154
    %p156 = scmp.eq.s32.totalorder %s25, 0
    %p157 = por %p155, %p156
    %s159 = sadd.s32 %s158, 1
    %p162 = scmp.eq.s32.totalorder %s19, 1
    %p163 = scmp.ne.s32.totalorder %s158, %s160
    %p164 = scmp.eq.s32.totalorder %s19, 0
    %p165 = por %p163, %p164
    %p166 = scmp.ne.s32.totalorder %s158, %s160
    %p167 = scmp.eq.s32.totalorder %s24, 1
    %p168 = por %p166, %p167
    %p169 = scmp.ne.s32.totalorder %s160, %s161
    %p170 = scmp.eq.s32.totalorder %s24, 0
    %p171 = por %p169, %p170
    %p172 = scmp.ne.s32.totalorder %s160, %s161
    %p173 = scmp.eq.s32.totalorder %s25, 1
    %p174 = por %p172, %p173
    %p176 = scmp.ne.s32.totalorder %s161, %s175
    %p177 = scmp.eq.s32.totalorder %s25, 0
    %p178 = por %p176, %p177
    %s180 = sadd.s32 %s179, 1
    %p183 = scmp.eq.s32.totalorder %s19, 1
    %p184 = scmp.ne.s32.totalorder %s179, %s181
    %p185 = scmp.eq.s32.totalorder %s19, 0
    %p186 = por %p184, %p185
    %p187 = scmp.ne.s32.totalorder %s179, %s181
    %p188 = scmp.eq.s32.totalorder %s24, 1
    %p189 = por %p187, %p188
    %p190 = scmp.ne.s32.totalorder %s181, %s182
    %p191 = scmp.eq.s32.totalorder %s24, 0
    %p192 = por %p190, %p191
    %p193 = scmp.ne.s32.totalorder %s181, %s182
    %p194 = scmp.eq.s32.totalorder %s25, 1
    %p195 = por %p193, %p194
    %p197 = scmp.ne.s32.totalorder %s182, %s196
    %p198 = scmp.eq.s32.totalorder %s25, 0
    %p199 = por %p197, %p198
    %s201 = sadd.s32 %s200, 1
    %p204 = scmp.eq.s32.totalorder %s19, 1
    %p205 = scmp.ne.s32.totalorder %s200, %s202
    %p206 = scmp.eq.s32.totalorder %s19, 0
    %p207 = por %p205, %p206
    %p208 = scmp.ne.s32.totalorder %s200, %s202
    %p209 = scmp.eq.s32.totalorder %s24, 1
    %p210 = por %p208, %p209
    %p211 = scmp.ne.s32.totalorder %s202, %s203
    %p212 = scmp.eq.s32.totalorder %s24, 0
    %p213 = por %p211, %p212
    %p214 = scmp.ne.s32.totalorder %s202, %s203
    %p215 = scmp.eq.s32.totalorder %s25, 1
    %p216 = por %p214, %p215
    %p218 = scmp.ne.s32.totalorder %s203, %s217
    %p219 = scmp.eq.s32.totalorder %s25, 0
    %p220 = por %p218, %p219
    %s222 = sadd.s32 %s221, 1
    %p225 = scmp.eq.s32.totalorder %s19, 1
    %p226 = scmp.ne.s32.totalorder %s221, %s223
    %p227 = scmp.eq.s32.totalorder %s19, 0
    %p228 = por %p226, %p227
    %p229 = scmp.ne.s32.totalorder %s221, %s223
    %p230 = scmp.eq.s32.totalorder %s24, 1
    %p231 = por %p229, %p230
    %p232 = scmp.ne.s32.totalorder %s223, %s224
    %p233 = scmp.eq.s32.totalorder %s24, 0
    %p234 = por %p232, %p233
    %p235 = scmp.ne.s32.totalorder %s223, %s224
    %p236 = scmp.eq.s32.totalorder %s25, 1
    %p237 = por %p235, %p236
    %p239 = scmp.ne.s32.totalorder %s224, %s238
    %p240 = scmp.eq.s32.totalorder %s25, 0
    %p241 = por %p239, %p240
    %s243 = sadd.s32 %s242, 1
    %p246 = scmp.eq.s32.totalorder %s19, 1
    %p247 = scmp.ne.s32.totalorder %s242, %s244
    %p248 = scmp.eq.s32.totalorder %s19, 0
    %p249 = por %p247, %p248
    %p250 = scmp.ne.s32.totalorder %s242, %s244
    %p251 = scmp.eq.s32.totalorder %s24, 1
    %p252 = por %p250, %p251
    %p253 = scmp.ne.s32.totalorder %s244, %s245
    %p254 = scmp.eq.s32.totalorder %s24, 0
    %p255 = por %p253, %p254
    %p256 = scmp.ne.s32.totalorder %s244, %s245
    %p257 = scmp.eq.s32.totalorder %s25, 1
    %p258 = por %p256, %p257
    %p260 = scmp.ne.s32.totalorder %s245, %s259
    %p261 = scmp.eq.s32.totalorder %s25, 0
    %p262 = por %p260, %p261
    %s263 = ssub.s32 %s19, %s26
    %p264 = scmp.eq.s32.totalorder %s263, 0
    %s266 = sadd.s32 %s265, 1
    %s267 = scalar_select %p264, %s265, %s266
    %p270 = pneg %p264
    %p271 = scmp.eq.s32.totalorder %s19, 1
    %p272 = por %p270, %p271
    %p273 = scmp.ne.s32.totalorder %s265, %s268
    %p274 = scmp.eq.s32.totalorder %s19, 0
    %p275 = por %p273, %p274
    %p276 = scmp.ne.s32.totalorder %s265, %s268
    %p277 = scmp.eq.s32.totalorder %s24, 1
    %p278 = por %p276, %p277
    %p279 = scmp.ne.s32.totalorder %s268, %s269
    %p280 = scmp.eq.s32.totalorder %s24, 0
    %p281 = por %p279, %p280
    %p282 = scmp.ne.s32.totalorder %s268, %s269
    %p283 = scmp.eq.s32.totalorder %s25, 1
    %p284 = por %p282, %p283
    %p286 = scmp.ne.s32.totalorder %s269, %s285
    %p287 = scmp.eq.s32.totalorder %s25, 0
    %p288 = por %p286, %p287
    %s289 = ssub.s32 %s19, %s26
    %p290 = scmp.eq.s32.totalorder %s289, 0
    %s292 = sadd.s32 %s291, 1
    %s293 = scalar_select %p290, %s291, %s292
    %p296 = pneg %p290
    %p297 = scmp.eq.s32.totalorder %s19, 1
    %p298 = por %p296, %p297
    %p299 = scmp.ne.s32.totalorder %s291, %s294
    %p300 = scmp.eq.s32.totalorder %s19, 0
    %p301 = por %p299, %p300
    %p302 = scmp.ne.s32.totalorder %s291, %s294
    %p303 = scmp.eq.s32.totalorder %s24, 1
    %p304 = por %p302, %p303
    %p305 = scmp.ne.s32.totalorder %s294, %s295
    %p306 = scmp.eq.s32.totalorder %s24, 0
    %p307 = por %p305, %p306
    %p308 = scmp.ne.s32.totalorder %s294, %s295
    %p309 = scmp.eq.s32.totalorder %s25, 1
    %p310 = por %p308, %p309
    %p312 = scmp.ne.s32.totalorder %s295, %s311
    %p313 = scmp.eq.s32.totalorder %s25, 0
    %p314 = por %p312, %p313
    %p315 = scmp.le.s32.totalorder 1, %s19
    %p316 = scmp.lt.s32.totalorder %s19, 3
    %p317 = pnand %p315, %p316
    %p318 = pneg %p317
    // Predicated region
    $region9: #{planner_forward.1} parent=5 // pred_check
      _
    $region10: #{planner_forward.1} parent=5 // pred_check_branch
      %320 = sbr.rel (%p317) target = $region12
    $region11: #{planner_forward.1} parent=5 // pred_region
      %s321 = ssub.s32 %s19, 1
      // Predicated region
      $region13: #{planner_forward.1} parent=11 // pred_check
        %p322 = pneg %p66
      $region14: #{planner_forward.1} parent=11 // pred_check_branch
        %324 = sbr.rel (%p322) target = $region16
      $region15: #{planner_forward.1} parent=11 // pred_region
        _
      $region16: #{planner_forward.1} parent=11 // pred_fallthru
        _
      // Predicated region
      $region17: #{planner_forward.1} parent=11 // pred_check
        %p325 = pneg %p87
      $region18: #{planner_forward.1} parent=11 // pred_check_branch
        %327 = sbr.rel (%p325) target = $region20
      $region19: #{planner_forward.1} parent=11 // pred_region
        _
      $region20: #{planner_forward.1} parent=11 // pred_fallthru
        _
      // Predicated region
      $region21: #{planner_forward.1} parent=11 // pred_check
        %p328 = pneg %p108
      $region22: #{planner_forward.1} parent=11 // pred_check_branch
        %330 = sbr.rel (%p328) target = $region24
      $region23: #{planner_forward.1} parent=11 // pred_region
        _
      $region24: #{planner_forward.1} parent=11 // pred_fallthru
        _
      // Predicated region
      $region25: #{planner_forward.1} parent=11 // pred_check
        %p331 = pneg %p129
      $region26: #{planner_forward.1} parent=11 // pred_check_branch
        %333 = sbr.rel (%p331) target = $region28
      $region27: #{planner_forward.1} parent=11 // pred_region
        _
      $region28: #{planner_forward.1} parent=11 // pred_fallthru
        _
      // Predicated region
      $region29: #{planner_forward.1} parent=11 // pred_check
        %p334 = pneg %p150
      $region30: #{planner_forward.1} parent=11 // pred_check_branch
        %336 = sbr.rel (%p334) target = $region32
      $region31: #{planner_forward.1} parent=11 // pred_region
        _
      $region32: #{planner_forward.1} parent=11 // pred_fallthru
        _
      // Predicated region
      $region33: #{planner_forward.1} parent=11 // pred_check
        %p337 = pneg %p171
      $region34: #{planner_forward.1} parent=11 // pred_check_branch
        %339 = sbr.rel (%p337) target = $region36
      $region35: #{planner_forward.1} parent=11 // pred_region
        _
      $region36: #{planner_forward.1} parent=11 // pred_fallthru
        _
      // Predicated region
      $region37: #{planner_forward.1} parent=11 // pred_check
        %p340 = pneg %p192
      $region38: #{planner_forward.1} parent=11 // pred_check_branch
        %342 = sbr.rel (%p340) target = $region40
      $region39: #{planner_forward.1} parent=11 // pred_region
        _
      $region40: #{planner_forward.1} parent=11 // pred_fallthru
        _
      // Predicated region
      $region41: #{planner_forward.1} parent=11 // pred_check
        %p343 = pneg %p213
      $region42: #{planner_forward.1} parent=11 // pred_check_branch
        %345 = sbr.rel (%p343) target = $region44
      $region43: #{planner_forward.1} parent=11 // pred_region
        _
      $region44: #{planner_forward.1} parent=11 // pred_fallthru
        _
      // Predicated region
      $region45: #{planner_forward.1} parent=11 // pred_check
        %p346 = pneg %p234
      $region46: #{planner_forward.1} parent=11 // pred_check_branch
        %348 = sbr.rel (%p346) target = $region48
      $region47: #{planner_forward.1} parent=11 // pred_region
        _
      $region48: #{planner_forward.1} parent=11 // pred_fallthru
        _
      // Predicated region
      $region49: #{planner_forward.1} parent=11 // pred_check
        %p349 = pneg %p255
      $region50: #{planner_forward.1} parent=11 // pred_check_branch
        %351 = sbr.rel (%p349) target = $region52
      $region51: #{planner_forward.1} parent=11 // pred_region
        _
      $region52: #{planner_forward.1} parent=11 // pred_fallthru
        _
    $region12: #{planner_forward.1} parent=5 // pred_fallthru
      _
    %p352 = scmp.lt.s32.totalorder %s19, 2
    // Predicated region
    $region53: #{planner_forward.1} parent=5 // pred_check
      %p353 = pneg %p352
    $region54: #{planner_forward.1} parent=5 // pred_check_branch
      %355 = sbr.rel (%p353) target = $region56
    $region55: #{planner_forward.1} parent=5 // pred_region
      // Predicated region
      $region57: #{planner_forward.1} parent=55 // pred_check
        %p356 = pneg %p39
      $region58: #{planner_forward.1} parent=55 // pred_check_branch
        %358 = sbr.rel (%p356) target = $region60
      $region59: #{planner_forward.1} parent=55 // pred_region
        %p359 = scmp.lt.s32.totalorder %s19, 1
        %s360 = scalar_select %p359, %s19, 1
        %s361 = smul.addr %s360, 6
        %s362 = smul.addr %s361, 4
        %s363 = scalar_lea.vmem %s0, %s362
      $region60: #{planner_forward.1} parent=55 // pred_fallthru
        _
    $region56: #{planner_forward.1} parent=5 // pred_fallthru
      _
    %p364 = scmp.le.s32.totalorder 1, %s19
    %p365 = scmp.lt.s32.totalorder %s19, 3
    %p366 = pnand %p364, %p365
    %p367 = pneg %p366
    // Predicated region
    $region61: #{planner_forward.1} parent=5 // pred_check
      _
    $region62: #{planner_forward.1} parent=5 // pred_check_branch
      %369 = sbr.rel (%p366) target = $region64
    $region63: #{planner_forward.1} parent=5 // pred_region
      %s370 = ssub.s32 %s19, 1
      %p371 = scmp.lt.s32.totalorder %s24, 1
      %s372 = scalar_select %p371, %s24, 1
      %s373 = smul.addr %s372, 6
      %s374 = smul.addr %s373, 4
      %s375 = scalar_lea.vmem %s0, %s374
      %p376 = pneg %p45
      %p377 = pneg %p42
      %p378 = pneg %p66
      %p379 = pneg %p63
      %p380 = pneg %p87
      %p381 = pneg %p84
      %p382 = pneg %p108
      %p383 = pneg %p105
      %p384 = pneg %p129
      %p385 = pneg %p126
      %p386 = pneg %p150
      %p387 = pneg %p147
      %p388 = pneg %p171
      %p389 = pneg %p168
      %p390 = pneg %p192
      %p391 = pneg %p189
      %p392 = pneg %p213
      %p393 = pneg %p210
      %p394 = pneg %p234
      %p395 = pneg %p231
      %p396 = pneg %p255
      %p397 = pneg %p252
      %p398 = pneg %p281
      %p399 = pneg %p278
      %p400 = scmp.lt.s32.totalorder %s24, 1
      %s401 = scalar_select %p400, %s24, 1
      %s402 = smul.addr %s401, 2
      %s403 = smul.addr %s402, 4
      %s404 = scalar_lea.vmem %s11, %s403
      %p405 = pneg %p307
      %p406 = pneg %p304
      %p407 = scmp.lt.s32.totalorder %s24, 1
      %s408 = scalar_select %p407, %s24, 1
      %s409 = smul.addr %s408, 2
      %s410 = smul.addr %s409, 4
      %s411 = scalar_lea.vmem %s12, %s410
      %p412 = scmp.lt.s32.totalorder %s24, 1
      %s413 = scalar_select %p412, %s24, 1
      %s414 = smul.addr %s413, 6
      %s415 = smul.addr %s414, 4
      %s416 = scalar_lea.vmem %s0, %s415
      %p417 = scmp.lt.s32.totalorder %s24, 1
      %s418 = scalar_select %p417, %s24, 1
      %s419 = smul.addr %s418, 2
      %s420 = smul.addr %s419, 4
      %s421 = scalar_lea.vmem %s11, %s420
      %p422 = scmp.lt.s32.totalorder %s24, 1
      %s423 = scalar_select %p422, %s24, 1
      %s424 = smul.addr %s423, 2
      %s425 = smul.addr %s424, 4
      %s426 = scalar_lea.vmem %s12, %s425
      %v428 = vld [vmem:[%s2] sm:$0xf]
      %v429 = vld [vmem:[%s2 + $0x4] sm:$0xf]
      %v430 = vld [vmem:[%s2 + $0x8] sm:$0xf]
      %v431 = vld [vmem:[%s2 + $0xc] sm:$0xf]
      %v432 = vld [vmem:[%s416] sm:$0xff]
      %v433 = vld [vmem:[%s416 + $0x8] sm:$0xff]
      %v434 = vld [vmem:[%s416 + $0x10] sm:$0x11]
      %v435 = vld [vmem:[%s3] sm:$0xff]
      %v436 = vld [vmem:[%s3 + $0x8] sm:$0xff]
      %v437 = vld [vmem:[%s3 + $0x10] sm:$0xff]
      %v438 = vld [vmem:[%s3 + $0x18] sm:$0xff]
      %440 = vset.pattern.permute.xlu0 0
      %441 = vperm.xlu0 %440, %v435
      %v442 = vpop.permute.xlu0 %441
      %445 = vset.pattern.permute.xlu0 0
      %446 = vperm.xlu0 %445, %v436
      %v447 = vpop.permute.xlu0 %446
      %450 = vset.pattern.permute.xlu0 0
      %451 = vperm.xlu0 %450, %v437
      %v452 = vpop.permute.xlu0 %451
      %455 = vset.pattern.permute.xlu0 0
      %456 = vperm.xlu0 %455, %v438
      %v457 = vpop.permute.xlu0 %456
      %v463 = vunpack.c.l.b16 %v428
      %v464 = vunpack.c.l.b16 %v429
      %v465 = vunpack.c.l.b16 %v430
      %v466 = vunpack.c.l.b16 %v431
      %v467 = vpack.c.b16 %v464, %v463
      %v468 = vpack.c.b16 %v466, %v465
      %v472 = vunpack.c.l.b16 %v432
      %v473 = vunpack.c.h.b16 %v432
      %v474 = vunpack.c.l.b16 %v433
      %v475 = vunpack.c.h.b16 %v433
      %v476 = vunpack.c.l.b16 %v434
      %v477 = vunpack.c.h.b16 %v434
      %v478 = vpack.c.b16 %v474, %v472
      %v479 = vpack.c.b16 %v475, %v473
      %v480 = vpack.c.b16 %v476, %v476
      %v481 = vpack.c.b16 %v477, %v477
      %vm484 = vcmask 146432
      %v486 = vsel %vm484, %v467, 0
      %v489 = vsel %vm484, %v468, 0
      %vm491 = vcmask 1040384
      %v493 = vsel %vm491, %v480, 0
      %v496 = vsel %vm491, %v481, 0
      %498 = vmatprep.subr.bf16.mxu0 %v479
      %499 = vmatpush1.bf16.msra.mxu0 %v478
      %500 = vmatprep.subr.bf16.mxu0 %v496
      %501 = vmatpush1.bf16.msra.mxu0 %v493
      %502 = vmatprep.subr.bf16.mxu0 0
      %503 = vmatpush1.bf16.msra.mxu0 0
      %504 = vmatprep.subr.bf16.mxu0 0
      %505 = vmatpush1.bf16.msra.mxu0 0
      %506 = vmatprep.subr.bf16.mxu0 0
      %507 = vmatpush1.bf16.msra.mxu0 0
      %508 = vmatprep.subr.bf16.mxu0 0
      %509 = vmatpush1.bf16.msra.mxu0 0
      %510 = vmatprep.subr.bf16.mxu0 0
      %511 = vmatpush1.bf16.msra.mxu0 0
      %512 = vmatprep.subr.bf16.mxu0 0
      %513 = vmatpush1.bf16.msra.mxu0 0
      %514 = vmatprep.subr.bf16.mxu0 0
      %515 = vmatpush1.bf16.msra.mxu0 0
      %516 = vmatprep.subr.bf16.mxu0 0
      %517 = vmatpush1.bf16.msra.mxu0 0
      %518 = vmatprep.subr.bf16.mxu0 0
      %519 = vmatpush1.bf16.msra.mxu0 0
      %520 = vmatprep.subr.bf16.mxu0 0
      %521 = vmatpush1.bf16.msra.mxu0 0
      %522 = vmatprep.subr.bf16.mxu0 0
      %523 = vmatpush1.bf16.msra.mxu0 0
      %524 = vmatprep.subr.bf16.mxu0 0
      %525 = vmatpush1.bf16.msra.mxu0 0
      %526 = vmatprep.subr.bf16.mxu0 0
      %527 = vmatpush1.bf16.msra.mxu0 0
      %528 = vmatprep.subr.bf16.mxu0 0
      %529 = vmatpush1.bf16.msra.mxu0 0
      %530 = vmatprep.mubr.bf16.mxu0 0
      %531 = vmatmul.mubr.bf16.gmra.mrb[0].mxu0 %v486
      %v532 = vpop.f32.mrb[0].mxu0
      %v533 = vadd.f32 %v442, %v532
      %v534 = vpop.f32.mrb[0].mxu0
      %v535 = vadd.f32 %v442, %v534
      %v536 = vpop.f32.mrb[0].mxu0
      %v537 = vadd.f32 %v447, %v536
      %v538 = vpop.f32.mrb[0].mxu0
      %v539 = vadd.f32 %v447, %v538
      %540 = vmatprep.mubr.bf16.mxu0 0
      %541 = vmatmul.mubr.bf16.gmra.mrb[0].mxu0 %v489
      %v542 = vpop.f32.mrb[0].mxu0
      %v543 = vadd.f32 %v452, %v542
      %v544 = vpop.f32.mrb[0].mxu0
      %v545 = vadd.f32 %v452, %v544
      %v546 = vpop.f32.mrb[0].mxu0
      %v547 = vadd.f32 %v457, %v546
      %v548 = vpop.f32.mrb[0].mxu0
      %v549 = vadd.f32 %v457, %v548
      %550 = vdwg.mxu0
      %551 = vrot.lane.b32.xlu0 %v533, 17
      %v552 = vpop.permute.xlu0 %551
      %553 = vrot.lane.b32.xlu0 %v537, 17
      %v554 = vpop.permute.xlu0 %553
      %555 = vrot.lane.b32.xlu0 %v543, 17
      %v556 = vpop.permute.xlu0 %555
      %557 = vrot.lane.b32.xlu0 %v547, 17
      %v558 = vpop.permute.xlu0 %557
      %559 = vrot.lane.b32.xlu0 %v535, 17
      %v560 = vpop.permute.xlu0 %559
      %561 = vrot.lane.b32.xlu0 %v539, 17
      %v562 = vpop.permute.xlu0 %561
      %563 = vrot.lane.b32.xlu0 %v545, 17
      %v564 = vpop.permute.xlu0 %563
      %565 = vrot.lane.b32.xlu0 %v549, 17
      %v566 = vpop.permute.xlu0 %565
      %v567 = vlaneseq
      %v568 = vand.u32 %v567, 127
      %vm569 = vcmp.lt.s32.totalorder %v568, 17
      %v570 = vsel %vm569, %v552, %v560
      %v571 = vsel %vm569, %v554, %v562
      %v572 = vsel %vm569, %v556, %v564
      %v573 = vsel %vm569, %v558, %v566
      %v574 = vsel %vm569, %v560, %v552
      %v575 = vsel %vm569, %v562, %v554
      %v576 = vsel %vm569, %v564, %v556
      %v577 = vsel %vm569, %v566, %v558
      %v578 = vld [vmem:[%s1] ss:$8 sm:$0x3]
      %v580 = vlaneseq
      %v581 = vshrl.u32 %v580, 7
      %v582 = vsub.s32 0, %v581
      %v583 = vrot.slane %v578, %v582
      %v584 = vlaneseq
      %v585 = vshrl.u32 %v584, 7
      %v586 = vsub.s32 1, %v585
      %v587 = vrot.slane %v578, %v586
      %v590 = vmul.f32 %v574, %v583
      %v591 = vmul.f32 %v570, %v587
      %v592 = vmul.f32 %v575, %v583
      %v593 = vmul.f32 %v571, %v587
      %v594 = vmul.f32 %v576, %v583
      %v595 = vmul.f32 %v572, %v587
      %v596 = vmul.f32 %v577, %v583
      %v597 = vmul.f32 %v573, %v587
      %v598 = vld [vmem:[%s4] sm:$0xf]
      %v599 = vld [vmem:[%s4 + $0x4] sm:$0xf]
      %v600 = vld [vmem:[%s4 + $0x8] sm:$0xf]
      %v601 = vld [vmem:[%s4 + $0xc] sm:$0xf]
      %v602 = vpack.c.bf16 %v592, %v590
      %v603 = vpack.c.bf16 %v593, %v591
      %v604 = vpack.c.bf16 %v596, %v594
      %v605 = vpack.c.bf16 %v597, %v595
      %606 = vrot.lane.b32.xlu0 %v533, 16
      %v607 = vpop.permute.xlu0 %606
      %608 = vrot.lane.b32.xlu0 %v537, 16
      %v609 = vpop.permute.xlu0 %608
      %610 = vrot.lane.b32.xlu0 %v543, 16
      %v611 = vpop.permute.xlu0 %610
      %612 = vrot.lane.b32.xlu0 %v547, 16
      %v613 = vpop.permute.xlu0 %612
      %614 = vrot.lane.b32.xlu0 %v535, 16
      %v615 = vpop.permute.xlu0 %614
      %616 = vrot.lane.b32.xlu0 %v539, 16
      %v617 = vpop.permute.xlu0 %616
      %618 = vrot.lane.b32.xlu0 %v545, 16
      %v619 = vpop.permute.xlu0 %618
      %620 = vrot.lane.b32.xlu0 %v549, 16
      %v621 = vpop.permute.xlu0 %620
      %vm622 = vcmp.lt.s32.totalorder %v568, 16
      %v623 = vsel %vm622, %v607, %v615
      %v624 = vsel %vm622, %v609, %v617
      %v625 = vsel %vm622, %v611, %v619
      %v626 = vsel %vm622, %v613, %v621
      %v627 = vsel %vm622, %v615, %v607
      %v628 = vsel %vm622, %v617, %v609
      %v629 = vsel %vm622, %v619, %v611
      %v630 = vsel %vm622, %v621, %v613
      %s631 = scalar_lea.vmem %s1, 1
      %v632 = vld [vmem:[%s631] ss:$8 sm:$0x3]
      %v634 = vlaneseq
      %v635 = vshrl.u32 %v634, 7
      %v636 = vsub.s32 0, %v635
      %v637 = vrot.slane %v632, %v636
      %v638 = vlaneseq
      %v639 = vshrl.u32 %v638, 7
      %v640 = vsub.s32 1, %v639
      %v641 = vrot.slane %v632, %v640
      %v644 = vmul.f32 %v627, %v637
      %v645 = vmul.f32 %v623, %v641
      %v646 = vmul.f32 %v628, %v637
      %v647 = vmul.f32 %v624, %v641
      %v648 = vmul.f32 %v629, %v637
      %v649 = vmul.f32 %v625, %v641
      %v650 = vmul.f32 %v630, %v637
      %v651 = vmul.f32 %v626, %v641
      %s652 = scalar_lea.vmem %s4, 16
      %v653 = vld [vmem:[%s652] sm:$0xf]
      %v654 = vld [vmem:[%s652 + $0x4] sm:$0xf]
      %v655 = vld [vmem:[%s652 + $0x8] sm:$0xf]
      %v656 = vld [vmem:[%s652 + $0xc] sm:$0xf]
      %v657 = vpack.c.bf16 %v646, %v644
      %v658 = vpack.c.bf16 %v647, %v645
      %v659 = vpack.c.bf16 %v650, %v648
      %v660 = vpack.c.bf16 %v651, %v649
      %v665 = vunpack.c.l.b16 %v653
      %v666 = vunpack.c.l.b16 %v654
      %v667 = vunpack.c.l.b16 %v655
      %v668 = vunpack.c.l.b16 %v656
      %v669 = vpack.c.b16 %v666, %v665
      %v670 = vpack.c.b16 %v668, %v667
      %vm671 = vcmask 261120
      %v673 = vsel %vm671, %v669, 0
      %v676 = vsel %vm671, %v670, 0
      %678 = vmatprep.subr.bf16.mxu0 %v658
      %679 = vmatpush1.bf16.msra.mxu0 %v657
      %680 = vmatprep.subr.bf16.mxu0 %v660
      %681 = vmatpush1.bf16.msra.mxu0 %v659
      %682 = vmatprep.subr.bf16.mxu0 0
      %683 = vmatpush1.bf16.msra.mxu0 0
      %684 = vmatprep.subr.bf16.mxu0 0
      %685 = vmatpush1.bf16.msra.mxu0 0
      %686 = vmatprep.subr.bf16.mxu0 0
      %687 = vmatpush1.bf16.msra.mxu0 0
      %688 = vmatprep.subr.bf16.mxu0 0
      %689 = vmatpush1.bf16.msra.mxu0 0
      %690 = vmatprep.subr.bf16.mxu0 0
      %691 = vmatpush1.bf16.msra.mxu0 0
      %692 = vmatprep.subr.bf16.mxu0 0
      %693 = vmatpush1.bf16.msra.mxu0 0
      %694 = vmatprep.subr.bf16.mxu0 0
      %695 = vmatpush1.bf16.msra.mxu0 0
      %696 = vmatprep.subr.bf16.mxu0 0
      %697 = vmatpush1.bf16.msra.mxu0 0
      %698 = vmatprep.subr.bf16.mxu0 0
      %699 = vmatpush1.bf16.msra.mxu0 0
      %700 = vmatprep.subr.bf16.mxu0 0
      %701 = vmatpush1.bf16.msra.mxu0 0
      %702 = vmatprep.subr.bf16.mxu0 0
      %703 = vmatpush1.bf16.msra.mxu0 0
      %704 = vmatprep.subr.bf16.mxu0 0
      %705 = vmatpush1.bf16.msra.mxu0 0
      %706 = vmatprep.subr.bf16.mxu0 0
      %707 = vmatpush1.bf16.msra.mxu0 0
      %708 = vmatprep.subr.bf16.mxu0 0
      %709 = vmatpush1.bf16.msra.mxu0 0
      %710 = vmatprep.mubr.bf16.mxu0 0
      %711 = vmatmul.mubr.bf16.gmra.mrb[0].mxu0 %v673
      %v712 = vpop.f32.mrb[0].mxu0
      %v713 = vadd.f32 0.0, %v712
      %v714 = vpop.f32.mrb[0].mxu0
      %v715 = vadd.f32 0.0, %v714
      %v716 = vpop.f32.mrb[0].mxu0
      %v717 = vadd.f32 0.0, %v716
      %v718 = vpop.f32.mrb[0].mxu0
      %v719 = vadd.f32 0.0, %v718
      %720 = vmatprep.mubr.bf16.mxu0 0
      %721 = vmatmul.mubr.bf16.gmra.mrb[0].mxu0 %v676
      %v722 = vpop.f32.mrb[0].mxu0
      %v723 = vadd.f32 0.0, %v722
      %v724 = vpop.f32.mrb[0].mxu0
      %v725 = vadd.f32 0.0, %v724
      %v726 = vpop.f32.mrb[0].mxu0
      %v727 = vadd.f32 0.0, %v726
      %v728 = vpop.f32.mrb[0].mxu0
      %v729 = vadd.f32 0.0, %v728
      %730 = vdwg.mxu0
      %v735 = vunpack.c.l.b16 %v598
      %v736 = vunpack.c.l.b16 %v599
      %v737 = vunpack.c.l.b16 %v600
      %v738 = vunpack.c.l.b16 %v601
      %v739 = vpack.c.b16 %v736, %v735
      %v740 = vpack.c.b16 %v738, %v737
      %v742 = vsel %vm671, %v739, 0
      %v745 = vsel %vm671, %v740, 0
      %747 = vmatprep.subr.bf16.mxu0 %v603
      %748 = vmatpush1.bf16.msra.mxu0 %v602
      %749 = vmatprep.subr.bf16.mxu0 %v605
      %750 = vmatpush1.bf16.msra.mxu0 %v604
      %751 = vmatprep.subr.bf16.mxu0 0
      %752 = vmatpush1.bf16.msra.mxu0 0
      %753 = vmatprep.subr.bf16.mxu0 0
      %754 = vmatpush1.bf16.msra.mxu0 0
      %755 = vmatprep.subr.bf16.mxu0 0
      %756 = vmatpush1.bf16.msra.mxu0 0
      %757 = vmatprep.subr.bf16.mxu0 0
      %758 = vmatpush1.bf16.msra.mxu0 0
      %759 = vmatprep.subr.bf16.mxu0 0
      %760 = vmatpush1.bf16.msra.mxu0 0
      %761 = vmatprep.subr.bf16.mxu0 0
      %762 = vmatpush1.bf16.msra.mxu0 0
      %763 = vmatprep.subr.bf16.mxu0 0
      %764 = vmatpush1.bf16.msra.mxu0 0
      %765 = vmatprep.subr.bf16.mxu0 0
      %766 = vmatpush1.bf16.msra.mxu0 0
      %767 = vmatprep.subr.bf16.mxu0 0
      %768 = vmatpush1.bf16.msra.mxu0 0
      %769 = vmatprep.subr.bf16.mxu0 0
      %770 = vmatpush1.bf16.msra.mxu0 0
      %771 = vmatprep.subr.bf16.mxu0 0
      %772 = vmatpush1.bf16.msra.mxu0 0
      %773 = vmatprep.subr.bf16.mxu0 0
      %774 = vmatpush1.bf16.msra.mxu0 0
      %775 = vmatprep.subr.bf16.mxu0 0
      %776 = vmatpush1.bf16.msra.mxu0 0
      %777 = vmatprep.subr.bf16.mxu0 0
      %778 = vmatpush1.bf16.msra.mxu0 0
      %779 = vmatprep.mubr.bf16.mxu0 0
      %780 = vmatmul.mubr.bf16.gmra.mrb[0].mxu0 %v742
      %v781 = vpop.f32.mrb[0].mxu0
      %v782 = vadd.f32 %v713, %v781
      %v783 = vpop.f32.mrb[0].mxu0
      %v784 = vadd.f32 %v715, %v783
      %v785 = vpop.f32.mrb[0].mxu0
      %v786 = vadd.f32 %v717, %v785
      %v787 = vpop.f32.mrb[0].mxu0
      %v788 = vadd.f32 %v719, %v787
      %789 = vmatprep.mubr.bf16.mxu0 0
      %790 = vmatmul.mubr.bf16.gmra.mrb[0].mxu0 %v745
      %v791 = vpop.f32.mrb[0].mxu0
      %v792 = vadd.f32 %v723, %v791
      %v793 = vpop.f32.mrb[0].mxu0
      %v794 = vadd.f32 %v725, %v793
      %v795 = vpop.f32.mrb[0].mxu0
      %v796 = vadd.f32 %v727, %v795
      %v797 = vpop.f32.mrb[0].mxu0
      %v798 = vadd.f32 %v729, %v797
      %799 = vdwg.mxu0
      %800 = vrot.lane.b32.xlu0 %v533, 15
      %v801 = vpop.permute.xlu0 %800
      %802 = vrot.lane.b32.xlu0 %v537, 15
      %v803 = vpop.permute.xlu0 %802
      %804 = vrot.lane.b32.xlu0 %v543, 15
      %v805 = vpop.permute.xlu0 %804
      %806 = vrot.lane.b32.xlu0 %v547, 15
      %v807 = vpop.permute.xlu0 %806
      %808 = vrot.lane.b32.xlu0 %v535, 15
      %v809 = vpop.permute.xlu0 %808
      %810 = vrot.lane.b32.xlu0 %v539, 15
      %v811 = vpop.permute.xlu0 %810
      %812 = vrot.lane.b32.xlu0 %v545, 15
      %v813 = vpop.permute.xlu0 %812
      %814 = vrot.lane.b32.xlu0 %v549, 15
      %v815 = vpop.permute.xlu0 %814
      %vm816 = vcmp.lt.s32.totalorder %v568, 15
      %v817 = vsel %vm816, %v801, %v809
      %v818 = vsel %vm816, %v803, %v811
      %v819 = vsel %vm816, %v805, %v813
      %v820 = vsel %vm816, %v807, %v815
      %v821 = vsel %vm816, %v809, %v801
      %v822 = vsel %vm816, %v811, %v803
      %v823 = vsel %vm816, %v813, %v805
      %v824 = vsel %vm816, %v815, %v807
      %s825 = scalar_lea.vmem %s1, 2
      %v826 = vld [vmem:[%s825] ss:$8 sm:$0x3]
      %v828 = vlaneseq
      %v829 = vshrl.u32 %v828, 7
      %v830 = vsub.s32 0, %v829
      %v831 = vrot.slane %v826, %v830
      %v832 = vlaneseq
      %v833 = vshrl.u32 %v832, 7
      %v834 = vsub.s32 1, %v833
      %v835 = vrot.slane %v826, %v834
      %v838 = vmul.f32 %v821, %v831
      %v839 = vmul.f32 %v817, %v835
      %v840 = vmul.f32 %v822, %v831
      %v841 = vmul.f32 %v818, %v835
      %v842 = vmul.f32 %v823, %v831
      %v843 = vmul.f32 %v819, %v835
      %v844 = vmul.f32 %v824, %v831
      %v845 = vmul.f32 %v820, %v835
      %s846 = scalar_lea.vmem %s4, 32
      %v847 = vld [vmem:[%s846] sm:$0xf]
      %v848 = vld [vmem:[%s846 + $0x4] sm:$0xf]
      %v849 = vld [vmem:[%s846 + $0x8] sm:$0xf]
      %v850 = vld [vmem:[%s846 + $0xc] sm:$0xf]
      %v851 = vpack.c.bf16 %v840, %v838
      %v852 = vpack.c.bf16 %v841, %v839
      %v853 = vpack.c.bf16 %v844, %v842
      %v854 = vpack.c.bf16 %v845, %v843
      %v859 = vunpack.c.l.b16 %v847
      %v860 = vunpack.c.l.b16 %v848
      %v861 = vunpack.c.l.b16 %v849
      %v862 = vunpack.c.l.b16 %v850
      %v863 = vpack.c.b16 %v860, %v859
      %v864 = vpack.c.b16 %v862, %v861
      %v866 = vsel %vm671, %v863, 0
      %v869 = vsel %vm671, %v864, 0
      %871 = vmatprep.subr.bf16.mxu0 %v852
      %872 = vmatpush1.bf16.msra.mxu0 %v851
      %873 = vmatprep.subr.bf16.mxu0 %v854
      %874 = vmatpush1.bf16.msra.mxu0 %v853
      %875 = vmatprep.subr.bf16.mxu0 0
      %876 = vmatpush1.bf16.msra.mxu0 0
      %877 = vmatprep.subr.bf16.mxu0 0
      %878 = vmatpush1.bf16.msra.mxu0 0
      %879 = vmatprep.subr.bf16.mxu0 0
      %880 = vmatpush1.bf16.msra.mxu0 0
      %881 = vmatprep.subr.bf16.mxu0 0
      %882 = vmatpush1.bf16.msra.mxu0 0
      %883 = vmatprep.subr.bf16.mxu0 0
      %884 = vmatpush1.bf16.msra.mxu0 0
      %885 = vmatprep.subr.bf16.mxu0 0
      %886 = vmatpush1.bf16.msra.mxu0 0
      %887 = vmatprep.subr.bf16.mxu0 0
      %888 = vmatpush1.bf16.msra.mxu0 0
      %889 = vmatprep.subr.bf16.mxu0 0
      %890 = vmatpush1.bf16.msra.mxu0 0
      %891 = vmatprep.subr.bf16.mxu0 0
      %892 = vmatpush1.bf16.msra.mxu0 0
      %893 = vmatprep.subr.bf16.mxu0 0
      %894 = vmatpush1.bf16.msra.mxu0 0
      %895 = vmatprep.subr.bf16.mxu0 0
      %896 = vmatpush1.bf16.msra.mxu0 0
      %897 = vmatprep.subr.bf16.mxu0 0
      %898 = vmatpush1.bf16.msra.mxu0 0
      %899 = vmatprep.subr.bf16.mxu0 0
      %900 = vmatpush1.bf16.msra.mxu0 0
      %901 = vmatprep.subr.bf16.mxu0 0
      %902 = vmatpush1.bf16.msra.mxu0 0
      %903 = vmatprep.mubr.bf16.mxu0 0
      %904 = vmatmul.mubr.bf16.gmra.mrb[0].mxu0 %v866
      %v905 = vpop.f32.mrb[0].mxu0
      %v906 = vadd.f32 0.0, %v905
      %v907 = vpop.f32.mrb[0].mxu0
      %v908 = vadd.f32 0.0, %v907
      %v909 = vpop.f32.mrb[0].mxu0
      %v910 = vadd.f32 0.0, %v909
      %v911 = vpop.f32.mrb[0].mxu0
      %v912 = vadd.f32 0.0, %v911
      %913 = vmatprep.mubr.bf16.mxu0 0
      %914 = vmatmul.mubr.bf16.gmra.mrb[0].mxu0 %v869
      %v915 = vpop.f32.mrb[0].mxu0
      %v916 = vadd.f32 0.0, %v915
      %v917 = vpop.f32.mrb[0].mxu0
      %v918 = vadd.f32 0.0, %v917
      %v919 = vpop.f32.mrb[0].mxu0
      %v920 = vadd.f32 0.0, %v919
      %v921 = vpop.f32.mrb[0].mxu0
      %v922 = vadd.f32 0.0, %v921
      %923 = vdwg.mxu0
      %v924 = vadd.f32 %v782, %v906
      %v925 = vadd.f32 %v784, %v908
      %v926 = vadd.f32 %v786, %v910
      %v927 = vadd.f32 %v788, %v912
      %v928 = vadd.f32 %v792, %v916
      %v929 = vadd.f32 %v794, %v918
      %v930 = vadd.f32 %v796, %v920
      %v931 = vadd.f32 %v798, %v922
      %932 = vrot.lane.b32.xlu0 %v533, 1
      %v933 = vpop.permute.xlu0 %932
      %934 = vrot.lane.b32.xlu0 %v537, 1
      %v935 = vpop.permute.xlu0 %934
      %936 = vrot.lane.b32.xlu0 %v543, 1
      %v937 = vpop.permute.xlu0 %936
      %938 = vrot.lane.b32.xlu0 %v547, 1
      %v939 = vpop.permute.xlu0 %938
      %940 = vrot.lane.b32.xlu0 %v535, 1
      %v941 = vpop.permute.xlu0 %940
      %942 = vrot.lane.b32.xlu0 %v539, 1
      %v943 = vpop.permute.xlu0 %942
      %944 = vrot.lane.b32.xlu0 %v545, 1
      %v945 = vpop.permute.xlu0 %944
      %946 = vrot.lane.b32.xlu0 %v549, 1
      %v947 = vpop.permute.xlu0 %946
      %vm948 = vcmp.lt.s32.totalorder %v568, 1
      %v949 = vsel %vm948, %v933, %v941
      %v950 = vsel %vm948, %v935, %v943
      %v951 = vsel %vm948, %v937, %v945
      %v952 = vsel %vm948, %v939, %v947
      %v953 = vsel %vm948, %v941, %v933
      %v954 = vsel %vm948, %v943, %v935
      %v955 = vsel %vm948, %v945, %v937
      %v956 = vsel %vm948, %v947, %v939
      %s957 = scalar_lea.vmem %s1, 3
      %v958 = vld [vmem:[%s957] ss:$8 sm:$0x3]
      %v960 = vlaneseq
      %v961 = vshrl.u32 %v960, 7
      %v962 = vsub.s32 0, %v961
      %v963 = vrot.slane %v958, %v962
      %v964 = vlaneseq
      %v965 = vshrl.u32 %v964, 7
      %v966 = vsub.s32 1, %v965
      %v967 = vrot.slane %v958, %v966
      %v970 = vmul.f32 %v953, %v963
      %v971 = vmul.f32 %v949, %v967
      %v972 = vmul.f32 %v954, %v963
      %v973 = vmul.f32 %v950, %v967
      %v974 = vmul.f32 %v955, %v963
      %v975 = vmul.f32 %v951, %v967
      %v976 = vmul.f32 %v956, %v963
      %v977 = vmul.f32 %v952, %v967
      %s978 = scalar_lea.vmem %s4, 48
      %v979 = vld [vmem:[%s978] sm:$0xf]
      %v980 = vld [vmem:[%s978 + $0x4] sm:$0xf]
      %v981 = vld [vmem:[%s978 + $0x8] sm:$0xf]
      %v982 = vld [vmem:[%s978 + $0xc] sm:$0xf]
      %v983 = vpack.c.bf16 %v972, %v970
      %v984 = vpack.c.bf16 %v973, %v971
      %v985 = vpack.c.bf16 %v976, %v974
      %v986 = vpack.c.bf16 %v977, %v975
      %v991 = vunpack.c.l.b16 %v979
      %v992 = vunpack.c.l.b16 %v980
      %v993 = vunpack.c.l.b16 %v981
      %v994 = vunpack.c.l.b16 %v982
      %v995 = vpack.c.b16 %v992, %v991
      %v996 = vpack.c.b16 %v994, %v993
      %v998 = vsel %vm671, %v995, 0
      %v1001 = vsel %vm671, %v996, 0
      %1003 = vmatprep.subr.bf16.mxu0 %v984
      %1004 = vmatpush1.bf16.msra.mxu0 %v983
      %1005 = vmatprep.subr.bf16.mxu0 %v986
      %1006 = vmatpush1.bf16.msra.mxu0 %v985
      %1007 = vmatprep.subr.bf16.mxu0 0
      %1008 = vmatpush1.bf16.msra.mxu0 0
      %1009 = vmatprep.subr.bf16.mxu0 0
      %1010 = vmatpush1.bf16.msra.mxu0 0
      %1011 = vmatprep.subr.bf16.mxu0 0
      %1012 = vmatpush1.bf16.msra.mxu0 0
      %1013 = vmatprep.subr.bf16.mxu0 0
      %1014 = vmatpush1.bf16.msra.mxu0 0
      %1015 = vmatprep.subr.bf16.mxu0 0
      %1016 = vmatpush1.bf16.msra.mxu0 0
      %1017 = vmatprep.subr.bf16.mxu0 0
      %1018 = vmatpush1.bf16.msra.mxu0 0
      %1019 = vmatprep.subr.bf16.mxu0 0
      %1020 = vmatpush1.bf16.msra.mxu0 0
      %1021 = vmatprep.subr.bf16.mxu0 0
      %1022 = vmatpush1.bf16.msra.mxu0 0
      %1023 = vmatprep.subr.bf16.mxu0 0
      %1024 = vmatpush1.bf16.msra.mxu0 0
      %1025 = vmatprep.subr.bf16.mxu0 0
      %1026 = vmatpush1.bf16.msra.mxu0 0
      %1027 = vmatprep.subr.bf16.mxu0 0
      %1028 = vmatpush1.bf16.msra.mxu0 0
      %1029 = vmatprep.subr.bf16.mxu0 0
      %1030 = vmatpush1.bf16.msra.mxu0 0
      %1031 = vmatprep.subr.bf16.mxu0 0
      %1032 = vmatpush1.bf16.msra.mxu0 0
      %1033 = vmatprep.subr.bf16.mxu0 0
      %1034 = vmatpush1.bf16.msra.mxu0 0
      %1035 = vmatprep.mubr.bf16.mxu0 0
      %1036 = vmatmul.mubr.bf16.gmra.mrb[0].mxu0 %v998
      %v1037 = vpop.f32.mrb[0].mxu0
      %v1038 = vadd.f32 0.0, %v1037
      %v1039 = vpop.f32.mrb[0].mxu0
      %v1040 = vadd.f32 0.0, %v1039
      %v1041 = vpop.f32.mrb[0].mxu0
      %v1042 = vadd.f32 0.0, %v1041
      %v1043 = vpop.f32.mrb[0].mxu0
      %v1044 = vadd.f32 0.0, %v1043
      %1045 = vmatprep.mubr.bf16.mxu0 0
      %1046 = vmatmul.mubr.bf16.gmra.mrb[0].mxu0 %v1001
      %v1047 = vpop.f32.mrb[0].mxu0
      %v1048 = vadd.f32 0.0, %v1047
      %v1049 = vpop.f32.mrb[0].mxu0
      %v1050 = vadd.f32 0.0, %v1049
      %v1051 = vpop.f32.mrb[0].mxu0
      %v1052 = vadd.f32 0.0, %v1051
      %v1053 = vpop.f32.mrb[0].mxu0
      %v1054 = vadd.f32 0.0, %v1053
      %1055 = vdwg.mxu0
      %v1056 = vadd.f32 %v924, %v1038
      %v1057 = vadd.f32 %v925, %v1040
      %v1058 = vadd.f32 %v926, %v1042
      %v1059 = vadd.f32 %v927, %v1044
      %v1060 = vadd.f32 %v928, %v1048
      %v1061 = vadd.f32 %v929, %v1050
      %v1062 = vadd.f32 %v930, %v1052
      %v1063 = vadd.f32 %v931, %v1054
      %s1064 = scalar_lea.vmem %s4, 64
      %v1065 = vld [vmem:[%s1064] sm:$0xf]
      %v1066 = vld [vmem:[%s1064 + $0x4] sm:$0xf]
      %v1067 = vld [vmem:[%s1064 + $0x8] sm:$0xf]
      %v1068 = vld [vmem:[%s1064 + $0xc] sm:$0xf]
      %v1069 = vpack.c.bf16 %v537, %v533
      %v1070 = vpack.c.bf16 %v539, %v535
      %v1071 = vpack.c.bf16 %v547, %v543
      %v1072 = vpack.c.bf16 %v549, %v545
      %v1077 = vunpack.c.l.b16 %v1065
      %v1078 = vunpack.c.l.b16 %v1066
      %v1079 = vunpack.c.l.b16 %v1067
      %v1080 = vunpack.c.l.b16 %v1068
      %v1081 = vpack.c.b16 %v1078, %v1077
      %v1082 = vpack.c.b16 %v1080, %v1079
      %v1084 = vsel %vm671, %v1081, 0
      %v1087 = vsel %vm671, %v1082, 0
      %1089 = vmatprep.subr.bf16.mxu0 %v1070
      %1090 = vmatpush1.bf16.msra.mxu0 %v1069
      %1091 = vmatprep.subr.bf16.mxu0 %v1072
      %1092 = vmatpush1.bf16.msra.mxu0 %v1071
      %1093 = vmatprep.subr.bf16.mxu0 0
      %1094 = vmatpush1.bf16.msra.mxu0 0
      %1095 = vmatprep.subr.bf16.mxu0 0
      %1096 = vmatpush1.bf16.msra.mxu0 0
      %1097 = vmatprep.subr.bf16.mxu0 0
      %1098 = vmatpush1.bf16.msra.mxu0 0
      %1099 = vmatprep.subr.bf16.mxu0 0
      %1100 = vmatpush1.bf16.msra.mxu0 0
      %1101 = vmatprep.subr.bf16.mxu0 0
      %1102 = vmatpush1.bf16.msra.mxu0 0
      %1103 = vmatprep.subr.bf16.mxu0 0
      %1104 = vmatpush1.bf16.msra.mxu0 0
      %1105 = vmatprep.subr.bf16.mxu0 0
      %1106 = vmatpush1.bf16.msra.mxu0 0
      %1107 = vmatprep.subr.bf16.mxu0 0
      %1108 = vmatpush1.bf16.msra.mxu0 0
      %1109 = vmatprep.subr.bf16.mxu0 0
      %1110 = vmatpush1.bf16.msra.mxu0 0
      %1111 = vmatprep.subr.bf16.mxu0 0
      %1112 = vmatpush1.bf16.msra.mxu0 0
      %1113 = vmatprep.subr.bf16.mxu0 0
      %1114 = vmatpush1.bf16.msra.mxu0 0
      %1115 = vmatprep.subr.bf16.mxu0 0
      %1116 = vmatpush1.bf16.msra.mxu0 0
      %1117 = vmatprep.subr.bf16.mxu0 0
      %1118 = vmatpush1.bf16.msra.mxu0 0
      %1119 = vmatprep.subr.bf16.mxu0 0
      %1120 = vmatpush1.bf16.msra.mxu0 0
      %1121 = vmatprep.mubr.bf16.mxu0 0
      %1122 = vmatmul.mubr.bf16.gmra.mrb[0].mxu0 %v1084
      %v1123 = vpop.f32.mrb[0].mxu0
      %v1124 = vadd.f32 0.0, %v1123
      %v1125 = vpop.f32.mrb[0].mxu0
      %v1126 = vadd.f32 0.0, %v1125
      %v1127 = vpop.f32.mrb[0].mxu0
      %v1128 = vadd.f32 0.0, %v1127
      %v1129 = vpop.f32.mrb[0].mxu0
      %v1130 = vadd.f32 0.0, %v1129
      %1131 = vmatprep.mubr.bf16.mxu0 0
      %1132 = vmatmul.mubr.bf16.gmra.mrb[0].mxu0 %v1087
      %v1133 = vpop.f32.mrb[0].mxu0
      %v1134 = vadd.f32 0.0, %v1133
      %v1135 = vpop.f32.mrb[0].mxu0
      %v1136 = vadd.f32 0.0, %v1135
      %v1137 = vpop.f32.mrb[0].mxu0
      %v1138 = vadd.f32 0.0, %v1137
      %v1139 = vpop.f32.mrb[0].mxu0
      %v1140 = vadd.f32 0.0, %v1139
      %1141 = vdwg.mxu0
      %v1142 = vadd.f32 %v1056, %v1124
      %v1143 = vadd.f32 %v1057, %v1126
      %v1144 = vadd.f32 %v1058, %v1128
      %v1145 = vadd.f32 %v1059, %v1130
      %v1146 = vadd.f32 %v1060, %v1134
      %v1147 = vadd.f32 %v1061, %v1136
      %v1148 = vadd.f32 %v1062, %v1138
      %v1149 = vadd.f32 %v1063, %v1140
      %1150 = vrot.lane.b32.xlu0 %v533, 127
      %v1151 = vpop.permute.xlu0 %1150
      %1152 = vrot.lane.b32.xlu0 %v537, 127
      %v1153 = vpop.permute.xlu0 %1152
      %1154 = vrot.lane.b32.xlu0 %v543, 127
      %v1155 = vpop.permute.xlu0 %1154
      %1156 = vrot.lane.b32.xlu0 %v547, 127
      %v1157 = vpop.permute.xlu0 %1156
      %1158 = vrot.lane.b32.xlu0 %v535, 127
      %v1159 = vpop.permute.xlu0 %1158
      %1160 = vrot.lane.b32.xlu0 %v539, 127
      %v1161 = vpop.permute.xlu0 %1160
      %1162 = vrot.lane.b32.xlu0 %v545, 127
      %v1163 = vpop.permute.xlu0 %1162
      %1164 = vrot.lane.b32.xlu0 %v549, 127
      %v1165 = vpop.permute.xlu0 %1164
      %vm1166 = vcmp.lt.s32.totalorder %v568, 127
      %v1167 = vsel %vm1166, %v1151, %v1159
      %v1168 = vsel %vm1166, %v1153, %v1161
      %v1169 = vsel %vm1166, %v1155, %v1163
      %v1170 = vsel %vm1166, %v1157, %v1165
      %v1171 = vsel %vm1166, %v1159, %v1151
      %v1172 = vsel %vm1166, %v1161, %v1153
      %v1173 = vsel %vm1166, %v1163, %v1155
      %v1174 = vsel %vm1166, %v1165, %v1157
      %s1175 = scalar_lea.vmem %s1, 5
      %v1176 = vld [vmem:[%s1175] ss:$8 sm:$0x3]
      %v1178 = vlaneseq
      %v1179 = vshrl.u32 %v1178, 7
      %v1180 = vsub.s32 0, %v1179
      %v1181 = vrot.slane %v1176, %v1180
      %v1182 = vlaneseq
      %v1183 = vshrl.u32 %v1182, 7
      %v1184 = vsub.s32 1, %v1183
      %v1185 = vrot.slane %v1176, %v1184
      %v1188 = vmul.f32 %v1167, %v1181
      %v1189 = vmul.f32 %v1171, %v1185
      %v1190 = vmul.f32 %v1168, %v1181
      %v1191 = vmul.f32 %v1172, %v1185
      %v1192 = vmul.f32 %v1169, %v1181
      %v1193 = vmul.f32 %v1173, %v1185
      %v1194 = vmul.f32 %v1170, %v1181
      %v1195 = vmul.f32 %v1174, %v1185
      %s1196 = scalar_lea.vmem %s4, 80
      %v1197 = vld [vmem:[%s1196] sm:$0xf]
      %v1198 = vld [vmem:[%s1196 + $0x4] sm:$0xf]
      %v1199 = vld [vmem:[%s1196 + $0x8] sm:$0xf]
      %v1200 = vld [vmem:[%s1196 + $0xc] sm:$0xf]
      %v1201 = vpack.c.bf16 %v1190, %v1188
      %v1202 = vpack.c.bf16 %v1191, %v1189
      %v1203 = vpack.c.bf16 %v1194, %v1192
      %v1204 = vpack.c.bf16 %v1195, %v1193
      %v1209 = vunpack.c.l.b16 %v1197
      %v1210 = vunpack.c.l.b16 %v1198
      %v1211 = vunpack.c.l.b16 %v1199
      %v1212 = vunpack.c.l.b16 %v1200
      %v1213 = vpack.c.b16 %v1210, %v1209
      %v1214 = vpack.c.b16 %v1212, %v1211
      %v1216 = vsel %vm671, %v1213, 0
      %v1219 = vsel %vm671, %v1214, 0
      %1221 = vmatprep.subr.bf16.mxu0 %v1202
      %1222 = vmatpush1.bf16.msra.mxu0 %v1201
      %1223 = vmatprep.subr.bf16.mxu0 %v1204
      %1224 = vmatpush1.bf16.msra.mxu0 %v1203
      %1225 = vmatprep.subr.bf16.mxu0 0
      %1226 = vmatpush1.bf16.msra.mxu0 0
      %1227 = vmatprep.subr.bf16.mxu0 0
      %1228 = vmatpush1.bf16.msra.mxu0 0
      %1229 = vmatprep.subr.bf16.mxu0 0
      %1230 = vmatpush1.bf16.msra.mxu0 0
      %1231 = vmatprep.subr.bf16.mxu0 0
      %1232 = vmatpush1.bf16.msra.mxu0 0
      %1233 = vmatprep.subr.bf16.mxu0 0
      %1234 = vmatpush1.bf16.msra.mxu0 0
      %1235 = vmatprep.subr.bf16.mxu0 0
      %1236 = vmatpush1.bf16.msra.mxu0 0
      %1237 = vmatprep.subr.bf16.mxu0 0
      %1238 = vmatpush1.bf16.msra.mxu0 0
      %1239 = vmatprep.subr.bf16.mxu0 0
      %1240 = vmatpush1.bf16.msra.mxu0 0
      %1241 = vmatprep.subr.bf16.mxu0 0
      %1242 = vmatpush1.bf16.msra.mxu0 0
      %1243 = vmatprep.subr.bf16.mxu0 0
      %1244 = vmatpush1.bf16.msra.mxu0 0
      %1245 = vmatprep.subr.bf16.mxu0 0
      %1246 = vmatpush1.bf16.msra.mxu0 0
      %1247 = vmatprep.subr.bf16.mxu0 0
      %1248 = vmatpush1.bf16.msra.mxu0 0
      %1249 = vmatprep.subr.bf16.mxu0 0
      %1250 = vmatpush1.bf16.msra.mxu0 0
      %1251 = vmatprep.subr.bf16.mxu0 0
      %1252 = vmatpush1.bf16.msra.mxu0 0
      %1253 = vmatprep.mubr.bf16.mxu0 0
      %1254 = vmatmul.mubr.bf16.gmra.mrb[0].mxu0 %v1216
      %v1255 = vpop.f32.mrb[0].mxu0
      %v1256 = vadd.f32 0.0, %v1255
      %v1257 = vpop.f32.mrb[0].mxu0
      %v1258 = vadd.f32 0.0, %v1257
      %v1259 = vpop.f32.mrb[0].mxu0
      %v1260 = vadd.f32 0.0, %v1259
      %v1261 = vpop.f32.mrb[0].mxu0
      %v1262 = vadd.f32 0.0, %v1261
      %1263 = vmatprep.mubr.bf16.mxu0 0
      %1264 = vmatmul.mubr.bf16.gmra.mrb[0].mxu0 %v1219
      %v1265 = vpop.f32.mrb[0].mxu0
      %v1266 = vadd.f32 0.0, %v1265
      %v1267 = vpop.f32.mrb[0].mxu0
      %v1268 = vadd.f32 0.0, %v1267
      %v1269 = vpop.f32.mrb[0].mxu0
      %v1270 = vadd.f32 0.0, %v1269
      %v1271 = vpop.f32.mrb[0].mxu0
      %v1272 = vadd.f32 0.0, %v1271
      %1273 = vdwg.mxu0
      %v1274 = vadd.f32 %v1142, %v1256
      %v1275 = vadd.f32 %v1143, %v1258
      %v1276 = vadd.f32 %v1144, %v1260
      %v1277 = vadd.f32 %v1145, %v1262
      %v1278 = vadd.f32 %v1146, %v1266
      %v1279 = vadd.f32 %v1147, %v1268
      %v1280 = vadd.f32 %v1148, %v1270
      %v1281 = vadd.f32 %v1149, %v1272
      %1282 = vrot.lane.b32.xlu0 %v533, 113
      %v1283 = vpop.permute.xlu0 %1282
      %1284 = vrot.lane.b32.xlu0 %v537, 113
      %v1285 = vpop.permute.xlu0 %1284
      %1286 = vrot.lane.b32.xlu0 %v543, 113
      %v1287 = vpop.permute.xlu0 %1286
      %1288 = vrot.lane.b32.xlu0 %v547, 113
      %v1289 = vpop.permute.xlu0 %1288
      %1290 = vrot.lane.b32.xlu0 %v535, 113
      %v1291 = vpop.permute.xlu0 %1290
      %1292 = vrot.lane.b32.xlu0 %v539, 113
      %v1293 = vpop.permute.xlu0 %1292
      %1294 = vrot.lane.b32.xlu0 %v545, 113
      %v1295 = vpop.permute.xlu0 %1294
      %1296 = vrot.lane.b32.xlu0 %v549, 113
      %v1297 = vpop.permute.xlu0 %1296
      %vm1298 = vcmp.lt.s32.totalorder %v568, 113
      %v1299 = vsel %vm1298, %v1283, %v1291
      %v1300 = vsel %vm1298, %v1285, %v1293
      %v1301 = vsel %vm1298, %v1287, %v1295
      %v1302 = vsel %vm1298, %v1289, %v1297
      %v1303 = vsel %vm1298, %v1291, %v1283
      %v1304 = vsel %vm1298, %v1293, %v1285
      %v1305 = vsel %vm1298, %v1295, %v1287
      %v1306 = vsel %vm1298, %v1297, %v1289
      %s1307 = scalar_lea.vmem %s1, 6
      %v1308 = vld [vmem:[%s1307] ss:$8 sm:$0x3]
      %v1310 = vlaneseq
      %v1311 = vshrl.u32 %v1310, 7
      %v1312 = vsub.s32 0, %v1311
      %v1313 = vrot.slane %v1308, %v1312
      %v1314 = vlaneseq
      %v1315 = vshrl.u32 %v1314, 7
      %v1316 = vsub.s32 1, %v1315
      %v1317 = vrot.slane %v1308, %v1316
      %v1320 = vmul.f32 %v1299, %v1313
      %v1321 = vmul.f32 %v1303, %v1317
      %v1322 = vmul.f32 %v1300, %v1313
      %v1323 = vmul.f32 %v1304, %v1317
      %v1324 = vmul.f32 %v1301, %v1313
      %v1325 = vmul.f32 %v1305, %v1317
      %v1326 = vmul.f32 %v1302, %v1313
      %v1327 = vmul.f32 %v1306, %v1317
      %s1328 = scalar_lea.vmem %s4, 96
      %v1329 = vld [vmem:[%s1328] sm:$0xf]
      %v1330 = vld [vmem:[%s1328 + $0x4] sm:$0xf]
      %v1331 = vld [vmem:[%s1328 + $0x8] sm:$0xf]
      %v1332 = vld [vmem:[%s1328 + $0xc] sm:$0xf]
      %v1333 = vpack.c.bf16 %v1322, %v1320
      %v1334 = vpack.c.bf16 %v1323, %v1321
      %v1335 = vpack.c.bf16 %v1326, %v1324
      %v1336 = vpack.c.bf16 %v1327, %v1325
      %v1341 = vunpack.c.l.b16 %v1329
      %v1342 = vunpack.c.l.b16 %v1330
      %v1343 = vunpack.c.l.b16 %v1331
      %v1344 = vunpack.c.l.b16 %v1332
      %v1345 = vpack.c.b16 %v1342, %v1341
      %v1346 = vpack.c.b16 %v1344, %v1343
      %v1348 = vsel %vm671, %v1345, 0
      %v1351 = vsel %vm671, %v1346, 0
      %1353 = vmatprep.subr.bf16.mxu0 %v1334
      %1354 = vmatpush1.bf16.msra.mxu0 %v1333
      %1355 = vmatprep.subr.bf16.mxu0 %v1336
      %1356 = vmatpush1.bf16.msra.mxu0 %v1335
      %1357 = vmatprep.subr.bf16.mxu0 0
      %1358 = vmatpush1.bf16.msra.mxu0 0
      %1359 = vmatprep.subr.bf16.mxu0 0
      %1360 = vmatpush1.bf16.msra.mxu0 0
      %1361 = vmatprep.subr.bf16.mxu0 0
      %1362 = vmatpush1.bf16.msra.mxu0 0
      %1363 = vmatprep.subr.bf16.mxu0 0
      %1364 = vmatpush1.bf16.msra.mxu0 0
      %1365 = vmatprep.subr.bf16.mxu0 0
      %1366 = vmatpush1.bf16.msra.mxu0 0
      %1367 = vmatprep.subr.bf16.mxu0 0
      %1368 = vmatpush1.bf16.msra.mxu0 0
      %1369 = vmatprep.subr.bf16.mxu0 0
      %1370 = vmatpush1.bf16.msra.mxu0 0
      %1371 = vmatprep.subr.bf16.mxu0 0
      %1372 = vmatpush1.bf16.msra.mxu0 0
      %1373 = vmatprep.subr.bf16.mxu0 0
      %1374 = vmatpush1.bf16.msra.mxu0 0
      %1375 = vmatprep.subr.bf16.mxu0 0
      %1376 = vmatpush1.bf16.msra.mxu0 0
      %1377 = vmatprep.subr.bf16.mxu0 0
      %1378 = vmatpush1.bf16.msra.mxu0 0
      %1379 = vmatprep.subr.bf16.mxu0 0
      %1380 = vmatpush1.bf16.msra.mxu0 0
      %1381 = vmatprep.subr.bf16.mxu0 0
      %1382 = vmatpush1.bf16.msra.mxu0 0
      %1383 = vmatprep.subr.bf16.mxu0 0
      %1384 = vmatpush1.bf16.msra.mxu0 0
      %1385 = vmatprep.mubr.bf16.mxu0 0
      %1386 = vmatmul.mubr.bf16.gmra.mrb[0].mxu0 %v1348
      %v1387 = vpop.f32.mrb[0].mxu0
      %v1388 = vadd.f32 0.0, %v1387
      %v1389 = vpop.f32.mrb[0].mxu0
      %v1390 = vadd.f32 0.0, %v1389
      %v1391 = vpop.f32.mrb[0].mxu0
      %v1392 = vadd.f32 0.0, %v1391
      %v1393 = vpop.f32.mrb[0].mxu0
      %v1394 = vadd.f32 0.0, %v1393
      %1395 = vmatprep.mubr.bf16.mxu0 0
      %1396 = vmatmul.mubr.bf16.gmra.mrb[0].mxu0 %v1351
      %v1397 = vpop.f32.mrb[0].mxu0
      %v1398 = vadd.f32 0.0, %v1397
      %v1399 = vpop.f32.mrb[0].mxu0
      %v1400 = vadd.f32 0.0, %v1399
      %v1401 = vpop.f32.mrb[0].mxu0
      %v1402 = vadd.f32 0.0, %v1401
      %v1403 = vpop.f32.mrb[0].mxu0
      %v1404 = vadd.f32 0.0, %v1403
      %1405 = vdwg.mxu0
      %v1406 = vadd.f32 %v1274, %v1388
      %v1407 = vadd.f32 %v1275, %v1390
      %v1408 = vadd.f32 %v1276, %v1392
      %v1409 = vadd.f32 %v1277, %v1394
      %v1410 = vadd.f32 %v1278, %v1398
      %v1411 = vadd.f32 %v1279, %v1400
      %v1412 = vadd.f32 %v1280, %v1402
      %v1413 = vadd.f32 %v1281, %v1404
      %1414 = vrot.lane.b32.xlu0 %v533, 112
      %v1415 = vpop.permute.xlu0 %1414
      %1416 = vrot.lane.b32.xlu0 %v537, 112
      %v1417 = vpop.permute.xlu0 %1416
      %1418 = vrot.lane.b32.xlu0 %v543, 112
      %v1419 = vpop.permute.xlu0 %1418
      %1420 = vrot.lane.b32.xlu0 %v547, 112
      %v1421 = vpop.permute.xlu0 %1420
      %1422 = vrot.lane.b32.xlu0 %v535, 112
      %v1423 = vpop.permute.xlu0 %1422
      %1424 = vrot.lane.b32.xlu0 %v539, 112
      %v1425 = vpop.permute.xlu0 %1424
      %1426 = vrot.lane.b32.xlu0 %v545, 112
      %v1427 = vpop.permute.xlu0 %1426
      %1428 = vrot.lane.b32.xlu0 %v549, 112
      %v1429 = vpop.permute.xlu0 %1428
      %vm1430 = vcmp.lt.s32.totalorder %v568, 112
      %v1431 = vsel %vm1430, %v1415, %v1423
      %v1432 = vsel %vm1430, %v1417, %v1425
      %v1433 = vsel %vm1430, %v1419, %v1427
      %v1434 = vsel %vm1430, %v1421, %v1429
      %v1435 = vsel %vm1430, %v1423, %v1415
      %v1436 = vsel %vm1430, %v1425, %v1417
      %v1437 = vsel %vm1430, %v1427, %v1419
      %v1438 = vsel %vm1430, %v1429, %v1421
      %s1439 = scalar_lea.vmem %s1, 7
      %v1440 = vld [vmem:[%s1439] ss:$8 sm:$0x3]
      %v1442 = vlaneseq
      %v1443 = vshrl.u32 %v1442, 7
      %v1444 = vsub.s32 0, %v1443
      %v1445 = vrot.slane %v1440, %v1444
      %v1446 = vlaneseq
      %v1447 = vshrl.u32 %v1446, 7
      %v1448 = vsub.s32 1, %v1447
      %v1449 = vrot.slane %v1440, %v1448
      %v1452 = vmul.f32 %v1431, %v1445
      %v1453 = vmul.f32 %v1435, %v1449
      %v1454 = vmul.f32 %v1432, %v1445
      %v1455 = vmul.f32 %v1436, %v1449
      %v1456 = vmul.f32 %v1433, %v1445
      %v1457 = vmul.f32 %v1437, %v1449
      %v1458 = vmul.f32 %v1434, %v1445
      %v1459 = vmul.f32 %v1438, %v1449
      %s1460 = scalar_lea.vmem %s4, 112
      %v1461 = vld [vmem:[%s1460] sm:$0xf]
      %v1462 = vld [vmem:[%s1460 + $0x4] sm:$0xf]
      %v1463 = vld [vmem:[%s1460 + $0x8] sm:$0xf]
      %v1464 = vld [vmem:[%s1460 + $0xc] sm:$0xf]
      %v1465 = vpack.c.bf16 %v1454, %v1452
      %v1466 = vpack.c.bf16 %v1455, %v1453
      %v1467 = vpack.c.bf16 %v1458, %v1456
      %v1468 = vpack.c.bf16 %v1459, %v1457
      %v1473 = vunpack.c.l.b16 %v1461
      %v1474 = vunpack.c.l.b16 %v1462
      %v1475 = vunpack.c.l.b16 %v1463
      %v1476 = vunpack.c.l.b16 %v1464
      %v1477 = vpack.c.b16 %v1474, %v1473
      %v1478 = vpack.c.b16 %v1476, %v1475
      %v1480 = vsel %vm671, %v1477, 0
      %v1483 = vsel %vm671, %v1478, 0
      %1485 = vmatprep.subr.bf16.mxu0 %v1466
      %1486 = vmatpush1.bf16.msra.mxu0 %v1465
      %1487 = vmatprep.subr.bf16.mxu0 %v1468
      %1488 = vmatpush1.bf16.msra.mxu0 %v1467
      %1489 = vmatprep.subr.bf16.mxu0 0
      %1490 = vmatpush1.bf16.msra.mxu0 0
      %1491 = vmatprep.subr.bf16.mxu0 0
      %1492 = vmatpush1.bf16.msra.mxu0 0
      %1493 = vmatprep.subr.bf16.mxu0 0
      %1494 = vmatpush1.bf16.msra.mxu0 0
      %1495 = vmatprep.subr.bf16.mxu0 0
      %1496 = vmatpush1.bf16.msra.mxu0 0
      %1497 = vmatprep.subr.bf16.mxu0 0
      %1498 = vmatpush1.bf16.msra.mxu0 0
      %1499 = vmatprep.subr.bf16.mxu0 0
      %1500 = vmatpush1.bf16.msra.mxu0 0
      %1501 = vmatprep.subr.bf16.mxu0 0
      %1502 = vmatpush1.bf16.msra.mxu0 0
      %1503 = vmatprep.subr.bf16.mxu0 0
      %1504 = vmatpush1.bf16.msra.mxu0 0
      %1505 = vmatprep.subr.bf16.mxu0 0
      %1506 = vmatpush1.bf16.msra.mxu0 0
      %1507 = vmatprep.subr.bf16.mxu0 0
      %1508 = vmatpush1.bf16.msra.mxu0 0
      %1509 = vmatprep.subr.bf16.mxu0 0
      %1510 = vmatpush1.bf16.msra.mxu0 0
      %1511 = vmatprep.subr.bf16.mxu0 0
      %1512 = vmatpush1.bf16.msra.mxu0 0
      %1513 = vmatprep.subr.bf16.mxu0 0
      %1514 = vmatpush1.bf16.msra.mxu0 0
      %1515 = vmatprep.subr.bf16.mxu0 0
      %1516 = vmatpush1.bf16.msra.mxu0 0
      %1517 = vmatprep.mubr.bf16.mxu0 0
      %1518 = vmatmul.mubr.bf16.gmra.mrb[0].mxu0 %v1480
      %v1519 = vpop.f32.mrb[0].mxu0
      %v1520 = vadd.f32 0.0, %v1519
      %v1521 = vpop.f32.mrb[0].mxu0
      %v1522 = vadd.f32 0.0, %v1521
      %v1523 = vpop.f32.mrb[0].mxu0
      %v1524 = vadd.f32 0.0, %v1523
      %v1525 = vpop.f32.mrb[0].mxu0
      %v1526 = vadd.f32 0.0, %v1525
      %1527 = vmatprep.mubr.bf16.mxu0 0
      %1528 = vmatmul.mubr.bf16.gmra.mrb[0].mxu0 %v1483
      %v1529 = vpop.f32.mrb[0].mxu0
      %v1530 = vadd.f32 0.0, %v1529
      %v1531 = vpop.f32.mrb[0].mxu0
      %v1532 = vadd.f32 0.0, %v1531
      %v1533 = vpop.f32.mrb[0].mxu0
      %v1534 = vadd.f32 0.0, %v1533
      %v1535 = vpop.f32.mrb[0].mxu0
      %v1536 = vadd.f32 0.0, %v1535
      %1537 = vdwg.mxu0
      %v1538 = vadd.f32 %v1406, %v1520
      %v1539 = vadd.f32 %v1407, %v1522
      %v1540 = vadd.f32 %v1408, %v1524
      %v1541 = vadd.f32 %v1409, %v1526
      %v1542 = vadd.f32 %v1410, %v1530
      %v1543 = vadd.f32 %v1411, %v1532
      %v1544 = vadd.f32 %v1412, %v1534
      %v1545 = vadd.f32 %v1413, %v1536
      %1546 = vrot.lane.b32.xlu0 %v533, 111
      %v1547 = vpop.permute.xlu0 %1546
      %1548 = vrot.lane.b32.xlu0 %v537, 111
      %v1549 = vpop.permute.xlu0 %1548
      %1550 = vrot.lane.b32.xlu0 %v543, 111
      %v1551 = vpop.permute.xlu0 %1550
      %1552 = vrot.lane.b32.xlu0 %v547, 111
      %v1553 = vpop.permute.xlu0 %1552
      %1554 = vrot.lane.b32.xlu0 %v535, 111
      %v1555 = vpop.permute.xlu0 %1554
      %1556 = vrot.lane.b32.xlu0 %v539, 111
      %v1557 = vpop.permute.xlu0 %1556
      %1558 = vrot.lane.b32.xlu0 %v545, 111
      %v1559 = vpop.permute.xlu0 %1558
      %1560 = vrot.lane.b32.xlu0 %v549, 111
      %v1561 = vpop.permute.xlu0 %1560
      %vm1562 = vcmp.lt.s32.totalorder %v568, 111
      %v1563 = vsel %vm1562, %v1547, %v1555
      %v1564 = vsel %vm1562, %v1549, %v1557
      %v1565 = vsel %vm1562, %v1551, %v1559
      %v1566 = vsel %vm1562, %v1553, %v1561
      %v1567 = vsel %vm1562, %v1555, %v1547
      %v1568 = vsel %vm1562, %v1557, %v1549
      %v1569 = vsel %vm1562, %v1559, %v1551
      %v1570 = vsel %vm1562, %v1561, %v1553
      %s1571 = scalar_lea.vmem %s1, 16
      %v1572 = vld [vmem:[%s1571] ss:$8 sm:$0x3]
      %v1574 = vlaneseq
      %v1575 = vshrl.u32 %v1574, 7
      %v1576 = vsub.s32 0, %v1575
      %v1577 = vrot.slane %v1572, %v1576
      %v1578 = vlaneseq
      %v1579 = vshrl.u32 %v1578, 7
      %v1580 = vsub.s32 1, %v1579
      %v1581 = vrot.slane %v1572, %v1580
      %v1584 = vmul.f32 %v1563, %v1577
      %v1585 = vmul.f32 %v1567, %v1581
      %v1586 = vmul.f32 %v1564, %v1577
      %v1587 = vmul.f32 %v1568, %v1581
      %v1588 = vmul.f32 %v1565, %v1577
      %v1589 = vmul.f32 %v1569, %v1581
      %v1590 = vmul.f32 %v1566, %v1577
      %v1591 = vmul.f32 %v1570, %v1581
      %s1592 = scalar_lea.vmem %s4, 128
      %v1593 = vld [vmem:[%s1592] sm:$0xf]
      %v1594 = vld [vmem:[%s1592 + $0x4] sm:$0xf]
      %v1595 = vld [vmem:[%s1592 + $0x8] sm:$0xf]
      %v1596 = vld [vmem:[%s1592 + $0xc] sm:$0xf]
      %v1597 = vpack.c.bf16 %v1586, %v1584
      %v1598 = vpack.c.bf16 %v1587, %v1585
      %v1599 = vpack.c.bf16 %v1590, %v1588
      %v1600 = vpack.c.bf16 %v1591, %v1589
      %v1605 = vunpack.c.l.b16 %v1593
      %v1606 = vunpack.c.l.b16 %v1594
      %v1607 = vunpack.c.l.b16 %v1595
      %v1608 = vunpack.c.l.b16 %v1596
      %v1609 = vpack.c.b16 %v1606, %v1605
      %v1610 = vpack.c.b16 %v1608, %v1607
      %v1612 = vsel %vm671, %v1609, 0
      %v1615 = vsel %vm671, %v1610, 0
      %1617 = vmatprep.subr.bf16.mxu0 %v1598
      %1618 = vmatpush1.bf16.msra.mxu0 %v1597
      %1619 = vmatprep.subr.bf16.mxu0 %v1600
      %1620 = vmatpush1.bf16.msra.mxu0 %v1599
      %1621 = vmatprep.subr.bf16.mxu0 0
      %1622 = vmatpush1.bf16.msra.mxu0 0
      %1623 = vmatprep.subr.bf16.mxu0 0
      %1624 = vmatpush1.bf16.msra.mxu0 0
      %1625 = vmatprep.subr.bf16.mxu0 0
      %1626 = vmatpush1.bf16.msra.mxu0 0
      %1627 = vmatprep.subr.bf16.mxu0 0
      %1628 = vmatpush1.bf16.msra.mxu0 0
      %1629 = vmatprep.subr.bf16.mxu0 0
      %1630 = vmatpush1.bf16.msra.mxu0 0
      %1631 = vmatprep.subr.bf16.mxu0 0
      %1632 = vmatpush1.bf16.msra.mxu0 0
      %1633 = vmatprep.subr.bf16.mxu0 0
      %1634 = vmatpush1.bf16.msra.mxu0 0
      %1635 = vmatprep.subr.bf16.mxu0 0
      %1636 = vmatpush1.bf16.msra.mxu0 0
      %1637 = vmatprep.subr.bf16.mxu0 0
      %1638 = vmatpush1.bf16.msra.mxu0 0
      %1639 = vmatprep.subr.bf16.mxu0 0
      %1640 = vmatpush1.bf16.msra.mxu0 0
      %1641 = vmatprep.subr.bf16.mxu0 0
      %1642 = vmatpush1.bf16.msra.mxu0 0
      %1643 = vmatprep.subr.bf16.mxu0 0
      %1644 = vmatpush1.bf16.msra.mxu0 0
      %1645 = vmatprep.subr.bf16.mxu0 0
      %1646 = vmatpush1.bf16.msra.mxu0 0
      %1647 = vmatprep.subr.bf16.mxu0 0
      %1648 = vmatpush1.bf16.msra.mxu0 0
      %1649 = vmatprep.mubr.bf16.mxu0 0
      %1650 = vmatmul.mubr.bf16.gmra.mrb[0].mxu0 %v1612
      %v1651 = vpop.f32.mrb[0].mxu0
      %v1652 = vadd.f32 0.0, %v1651
      %v1653 = vpop.f32.mrb[0].mxu0
      %v1654 = vadd.f32 0.0, %v1653
      %v1655 = vpop.f32.mrb[0].mxu0
      %v1656 = vadd.f32 0.0, %v1655
      %v1657 = vpop.f32.mrb[0].mxu0
      %v1658 = vadd.f32 0.0, %v1657
      %1659 = vmatprep.mubr.bf16.mxu0 0
      %1660 = vmatmul.mubr.bf16.gmra.mrb[0].mxu0 %v1615
      %v1661 = vpop.f32.mrb[0].mxu0
      %v1662 = vadd.f32 0.0, %v1661
      %v1663 = vpop.f32.mrb[0].mxu0
      %v1664 = vadd.f32 0.0, %v1663
      %v1665 = vpop.f32.mrb[0].mxu0
      %v1666 = vadd.f32 0.0, %v1665
      %v1667 = vpop.f32.mrb[0].mxu0
      %v1668 = vadd.f32 0.0, %v1667
      %1669 = vdwg.mxu0
      %v1670 = vadd.f32 %v1538, %v1652
      %v1671 = vadd.f32 %v1539, %v1654
      %v1672 = vadd.f32 %v1540, %v1656
      %v1673 = vadd.f32 %v1541, %v1658
      %v1674 = vadd.f32 %v1542, %v1662
      %v1675 = vadd.f32 %v1543, %v1664
      %v1676 = vadd.f32 %v1544, %v1666
      %v1677 = vadd.f32 %v1545, %v1668
      %v1678 = vld [vmem:[%s5] sm:$0xff]
      %v1679 = vld [vmem:[%s5 + $0x8] sm:$0xff]
      %v1680 = vld [vmem:[%s5 + $0x10] sm:$0xff]
      %v1681 = vld [vmem:[%s5 + $0x18] sm:$0xff]
      %1683 = vset.pattern.permute.xlu0 0
      %1684 = vperm.xlu0 %1683, %v1678
      %v1685 = vpop.permute.xlu0 %1684
      %1688 = vset.pattern.permute.xlu0 0
      %1689 = vperm.xlu0 %1688, %v1679
      %v1690 = vpop.permute.xlu0 %1689
      %1693 = vset.pattern.permute.xlu0 0
      %1694 = vperm.xlu0 %1693, %v1680
      %v1695 = vpop.permute.xlu0 %1694
      %1698 = vset.pattern.permute.xlu0 0
      %1699 = vperm.xlu0 %1698, %v1681
      %v1700 = vpop.permute.xlu0 %1699
      %v1702 = vadd.f32 %v1670, %v1685
      %v1703 = vadd.f32 %v1671, %v1685
      %v1704 = vadd.f32 %v1672, %v1690
      %v1705 = vadd.f32 %v1673, %v1690
      %v1706 = vadd.f32 %v1674, %v1695
      %v1707 = vadd.f32 %v1675, %v1695
      %v1708 = vadd.f32 %v1676, %v1700
      %v1709 = vadd.f32 %v1677, %v1700
      %v1710 = vld [vmem:[%s6] sm:$0xf]
      %v1711 = vld [vmem:[%s6 + $0x4] sm:$0xf]
      %v1712 = vld [vmem:[%s6 + $0x8] sm:$0xf]
      %v1713 = vld [vmem:[%s6 + $0xc] sm:$0xf]
      %v1714 = vld [vmem:[%s6 + $0x10] sm:$0xf]
      %v1715 = vld [vmem:[%s6 + $0x14] sm:$0xf]
      %v1716 = vld [vmem:[%s6 + $0x18] sm:$0xf]
      %v1717 = vld [vmem:[%s6 + $0x1c] sm:$0xf]
      %v1718 = vld [vmem:[%s6 + $0x20] sm:$0xf]
      %v1719 = vld [vmem:[%s6 + $0x24] sm:$0xf]
      %v1720 = vld [vmem:[%s6 + $0x28] sm:$0xf]
      %v1721 = vld [vmem:[%s6 + $0x2c] sm:$0xf]
      %v1722 = vld [vmem:[%s7] sm:$0xff]
      %v1723 = vld [vmem:[%s7 + $0x8] sm:$0xff]
      %v1724 = vld [vmem:[%s7 + $0x10] sm:$0xff]
      %v1725 = vld [vmem:[%s7 + $0x18] sm:$0xff]
      %v1726 = vld [vmem:[%s7 + $0x20] sm:$0xff]
      %v1727 = vld [vmem:[%s7 + $0x28] sm:$0xff]
      %v1728 = vld [vmem:[%s7 + $0x30] sm:$0xff]
      %v1729 = vld [vmem:[%s7 + $0x38] sm:$0xff]
      %v1730 = vld [vmem:[%s7 + $0x40] sm:$0xff]
      %v1731 = vld [vmem:[%s7 + $0x48] sm:$0xff]
      %v1732 = vld [vmem:[%s7 + $0x50] sm:$0xff]
      %v1733 = vld [vmem:[%s7 + $0x58] sm:$0xff]
      %1735 = vset.pattern.permute.xlu0 0
      %1736 = vperm.xlu0 %1735, %v1722
      %v1737 = vpop.permute.xlu0 %1736
      %1740 = vset.pattern.permute.xlu0 0
      %1741 = vperm.xlu0 %1740, %v1723
      %v1742 = vpop.permute.xlu0 %1741
      %1745 = vset.pattern.permute.xlu0 0
      %1746 = vperm.xlu0 %1745, %v1724
      %v1747 = vpop.permute.xlu0 %1746
      %1750 = vset.pattern.permute.xlu0 0
      %1751 = vperm.xlu0 %1750, %v1725
      %v1752 = vpop.permute.xlu0 %1751
      %1755 = vset.pattern.permute.xlu0 0
      %1756 = vperm.xlu0 %1755, %v1726
      %v1757 = vpop.permute.xlu0 %1756
      %1760 = vset.pattern.permute.xlu0 0
      %1761 = vperm.xlu0 %1760, %v1727
      %v1762 = vpop.permute.xlu0 %1761
      %1765 = vset.pattern.permute.xlu0 0
      %1766 = vperm.xlu0 %1765, %v1728
      %v1767 = vpop.permute.xlu0 %1766
      %1770 = vset.pattern.permute.xlu0 0
      %1771 = vperm.xlu0 %1770, %v1729
      %v1772 = vpop.permute.xlu0 %1771
      %1775 = vset.pattern.permute.xlu0 0
      %1776 = vperm.xlu0 %1775, %v1730
      %v1777 = vpop.permute.xlu0 %1776
      %1780 = vset.pattern.permute.xlu0 0
      %1781 = vperm.xlu0 %1780, %v1731
      %v1782 = vpop.permute.xlu0 %1781
      %1785 = vset.pattern.permute.xlu0 0
      %1786 = vperm.xlu0 %1785, %v1732
      %v1787 = vpop.permute.xlu0 %1786
      %1790 = vset.pattern.permute.xlu0 0
      %1791 = vperm.xlu0 %1790, %v1733
      %v1792 = vpop.permute.xlu0 %1791
      %v1806 = vunpack.c.l.b16 %v1710
      %v1807 = vunpack.c.l.b16 %v1711
      %v1808 = vunpack.c.l.b16 %v1712
      %v1809 = vunpack.c.l.b16 %v1713
      %v1810 = vunpack.c.l.b16 %v1714
      %v1811 = vunpack.c.l.b16 %v1715
      %v1812 = vunpack.c.l.b16 %v1716
      %v1813 = vunpack.c.l.b16 %v1717
      %v1814 = vunpack.c.l.b16 %v1718
      %v1815 = vunpack.c.l.b16 %v1719
      %v1816 = vunpack.c.l.b16 %v1720
      %v1817 = vunpack.c.l.b16 %v1721
      %v1818 = vpack.c.b16 %v1807, %v1806
      %v1819 = vpack.c.b16 %v1809, %v1808
      %v1820 = vpack.c.b16 %v1811, %v1810
      %v1821 = vpack.c.b16 %v1813, %v1812
      %v1822 = vpack.c.b16 %v1815, %v1814
      %v1823 = vpack.c.b16 %v1817, %v1816
      %v1825 = vsel %vm671, %v1818, 0
      %v1828 = vsel %vm671, %v1819, 0
      %v1831 = vsel %vm671, %v1820, 0
      %v1834 = vsel %vm671, %v1821, 0
      %v1837 = vsel %vm671, %v1822, 0
      %v1840 = vsel %vm671, %v1823, 0
      %1842 = vmatprep.subr.bf16.mxu0 %v1070
      %1843 = vmatpush1.bf16.msra.mxu0 %v1069
      %1844 = vmatprep.subr.bf16.mxu0 %v1072
      %1845 = vmatpush1.bf16.msra.mxu0 %v1071
      %1846 = vmatprep.subr.bf16.mxu0 0
      %1847 = vmatpush1.bf16.msra.mxu0 0
      %1848 = vmatprep.subr.bf16.mxu0 0
      %1849 = vmatpush1.bf16.msra.mxu0 0
      %1850 = vmatprep.subr.bf16.mxu0 0
      %1851 = vmatpush1.bf16.msra.mxu0 0
      %1852 = vmatprep.subr.bf16.mxu0 0
      %1853 = vmatpush1.bf16.msra.mxu0 0
      %1854 = vmatprep.subr.bf16.mxu0 0
      %1855 = vmatpush1.bf16.msra.mxu0 0
      %1856 = vmatprep.subr.bf16.mxu0 0
      %1857 = vmatpush1.bf16.msra.mxu0 0
      %1858 = vmatprep.subr.bf16.mxu0 0
      %1859 = vmatpush1.bf16.msra.mxu0 0
      %1860 = vmatprep.subr.bf16.mxu0 0
      %1861 = vmatpush1.bf16.msra.mxu0 0
      %1862 = vmatprep.subr.bf16.mxu0 0
      %1863 = vmatpush1.bf16.msra.mxu0 0
      %1864 = vmatprep.subr.bf16.mxu0 0
      %1865 = vmatpush1.bf16.msra.mxu0 0
      %1866 = vmatprep.subr.bf16.mxu0 0
      %1867 = vmatpush1.bf16.msra.mxu0 0
      %1868 = vmatprep.subr.bf16.mxu0 0
      %1869 = vmatpush1.bf16.msra.mxu0 0
      %1870 = vmatprep.subr.bf16.mxu0 0
      %1871 = vmatpush1.bf16.msra.mxu0 0
      %1872 = vmatprep.subr.bf16.mxu0 0
      %1873 = vmatpush1.bf16.msra.mxu0 0
      %1874 = vmatprep.mubr.bf16.mxu0 0
      %1875 = vmatmul.mubr.bf16.gmra.mrb[0].mxu0 %v1825
      %v1876 = vpop.f32.mrb[0].mxu0
      %v1877 = vadd.f32 %v1737, %v1876
      %v1878 = vpop.f32.mrb[0].mxu0
      %v1879 = vadd.f32 %v1737, %v1878
      %v1880 = vpop.f32.mrb[0].mxu0
      %v1881 = vadd.f32 %v1742, %v1880
      %v1882 = vpop.f32.mrb[0].mxu0
      %v1883 = vadd.f32 %v1742, %v1882
      %1884 = vmatprep.mubr.bf16.mxu0 0
      %1885 = vmatmul.mubr.bf16.gmra.mrb[0].mxu0 %v1828
      %v1886 = vpop.f32.mrb[0].mxu0
      %v1887 = vadd.f32 %v1747, %v1886
      %v1888 = vpop.f32.mrb[0].mxu0
      %v1889 = vadd.f32 %v1747, %v1888
      %v1890 = vpop.f32.mrb[0].mxu0
      %v1891 = vadd.f32 %v1752, %v1890
      %v1892 = vpop.f32.mrb[0].mxu0
      %v1893 = vadd.f32 %v1752, %v1892
      %1894 = vmatprep.mubr.bf16.mxu0 0
      %1895 = vmatmul.mubr.bf16.gmra.mrb[0].mxu0 %v1831
      %v1896 = vpop.f32.mrb[0].mxu0
      %v1897 = vadd.f32 %v1757, %v1896
      %v1898 = vpop.f32.mrb[0].mxu0
      %v1899 = vadd.f32 %v1757, %v1898
      %v1900 = vpop.f32.mrb[0].mxu0
      %v1901 = vadd.f32 %v1762, %v1900
      %v1902 = vpop.f32.mrb[0].mxu0
      %v1903 = vadd.f32 %v1762, %v1902
      %1904 = vmatprep.mubr.bf16.mxu0 0
      %1905 = vmatmul.mubr.bf16.gmra.mrb[0].mxu0 %v1834
      %v1906 = vpop.f32.mrb[0].mxu0
      %v1907 = vadd.f32 %v1767, %v1906
      %v1908 = vpop.f32.mrb[0].mxu0
      %v1909 = vadd.f32 %v1767, %v1908
      %v1910 = vpop.f32.mrb[0].mxu0
      %v1911 = vadd.f32 %v1772, %v1910
      %v1912 = vpop.f32.mrb[0].mxu0
      %v1913 = vadd.f32 %v1772, %v1912
      %1914 = vmatprep.mubr.bf16.mxu0 0
      %1915 = vmatmul.mubr.bf16.gmra.mrb[0].mxu0 %v1837
      %v1916 = vpop.f32.mrb[0].mxu0
      %v1917 = vadd.f32 %v1777, %v1916
      %v1918 = vpop.f32.mrb[0].mxu0
      %v1919 = vadd.f32 %v1777, %v1918
      %v1920 = vpop.f32.mrb[0].mxu0
      %v1921 = vadd.f32 %v1782, %v1920
      %v1922 = vpop.f32.mrb[0].mxu0
      %v1923 = vadd.f32 %v1782, %v1922
      %1924 = vmatprep.mubr.bf16.mxu0 0
      %1925 = vmatmul.mubr.bf16.gmra.mrb[0].mxu0 %v1840
      %v1926 = vpop.f32.mrb[0].mxu0
      %v1927 = vadd.f32 %v1787, %v1926
      %v1928 = vpop.f32.mrb[0].mxu0
      %v1929 = vadd.f32 %v1787, %v1928
      %v1930 = vpop.f32.mrb[0].mxu0
      %v1931 = vadd.f32 %v1792, %v1930
      %v1932 = vpop.f32.mrb[0].mxu0
      %v1933 = vadd.f32 %v1792, %v1932
      %1934 = vdwg.mxu0
      %v1935 = vld [vmem:[%s9] sm:$0xf]
      %v1936 = vld [vmem:[%s9 + $0x4] sm:$0xf]
      %v1937 = vld [vmem:[%s9 + $0x8] sm:$0xf]
      %v1938 = vld [vmem:[%s9 + $0xc] sm:$0xf]
      %v1939 = vld [vmem:[%s9 + $0x10] sm:$0xf]
      %v1940 = vld [vmem:[%s9 + $0x14] sm:$0xf]
      %v1941 = vld [vmem:[%s9 + $0x18] sm:$0xf]
      %v1942 = vld [vmem:[%s9 + $0x1c] sm:$0xf]
      %v1943 = vld [vmem:[%s9 + $0x20] sm:$0xf]
      %v1944 = vld [vmem:[%s9 + $0x24] sm:$0xf]
      %v1945 = vld [vmem:[%s9 + $0x28] sm:$0xf]
      %v1946 = vld [vmem:[%s9 + $0x2c] sm:$0xf]
      %v1947 = vld [vmem:[%s8] sm:$0xff]
      %v1948 = vld [vmem:[%s8 + $0x8] sm:$0xff]
      %v1949 = vld [vmem:[%s8 + $0x10] sm:$0xff]
      %v1950 = vld [vmem:[%s8 + $0x18] sm:$0xff]
      %v1951 = vpack.c.bf16 %v1704, %v1702
      %v1952 = vpack.c.bf16 %v1705, %v1703
      %v1953 = vpack.c.bf16 %v1708, %v1706
      %v1954 = vpack.c.bf16 %v1709, %v1707
      %v1967 = vunpack.c.l.b16 %v1935
      %v1968 = vunpack.c.l.b16 %v1936
      %v1969 = vunpack.c.l.b16 %v1937
      %v1970 = vunpack.c.l.b16 %v1938
      %v1971 = vunpack.c.l.b16 %v1939
      %v1972 = vunpack.c.l.b16 %v1940
      %v1973 = vunpack.c.l.b16 %v1941
      %v1974 = vunpack.c.l.b16 %v1942
      %v1975 = vunpack.c.l.b16 %v1943
      %v1976 = vunpack.c.l.b16 %v1944
      %v1977 = vunpack.c.l.b16 %v1945
      %v1978 = vunpack.c.l.b16 %v1946
      %v1979 = vpack.c.b16 %v1968, %v1967
      %v1980 = vpack.c.b16 %v1970, %v1969
      %v1981 = vpack.c.b16 %v1972, %v1971
      %v1982 = vpack.c.b16 %v1974, %v1973
      %v1983 = vpack.c.b16 %v1976, %v1975
      %v1984 = vpack.c.b16 %v1978, %v1977
      %v1986 = vsel %vm671, %v1979, 0
      %v1989 = vsel %vm671, %v1980, 0
      %v1992 = vsel %vm671, %v1981, 0
      %v1995 = vsel %vm671, %v1982, 0
      %v1998 = vsel %vm671, %v1983, 0
      %v2001 = vsel %vm671, %v1984, 0
      %2003 = vmatprep.subr.bf16.mxu0 %v1952
      %2004 = vmatpush1.bf16.msra.mxu0 %v1951
      %2005 = vmatprep.subr.bf16.mxu0 %v1954
      %2006 = vmatpush1.bf16.msra.mxu0 %v1953
      %2007 = vmatprep.subr.bf16.mxu0 0
      %2008 = vmatpush1.bf16.msra.mxu0 0
      %2009 = vmatprep.subr.bf16.mxu0 0
      %2010 = vmatpush1.bf16.msra.mxu0 0
      %2011 = vmatprep.subr.bf16.mxu0 0
      %2012 = vmatpush1.bf16.msra.mxu0 0
      %2013 = vmatprep.subr.bf16.mxu0 0
      %2014 = vmatpush1.bf16.msra.mxu0 0
      %2015 = vmatprep.subr.bf16.mxu0 0
      %2016 = vmatpush1.bf16.msra.mxu0 0
      %2017 = vmatprep.subr.bf16.mxu0 0
      %2018 = vmatpush1.bf16.msra.mxu0 0
      %2019 = vmatprep.subr.bf16.mxu0 0
      %2020 = vmatpush1.bf16.msra.mxu0 0
      %2021 = vmatprep.subr.bf16.mxu0 0
      %2022 = vmatpush1.bf16.msra.mxu0 0
      %2023 = vmatprep.subr.bf16.mxu0 0
      %2024 = vmatpush1.bf16.msra.mxu0 0
      %2025 = vmatprep.subr.bf16.mxu0 0
      %2026 = vmatpush1.bf16.msra.mxu0 0
      %2027 = vmatprep.subr.bf16.mxu0 0
      %2028 = vmatpush1.bf16.msra.mxu0 0
      %2029 = vmatprep.subr.bf16.mxu0 0
      %2030 = vmatpush1.bf16.msra.mxu0 0
      %2031 = vmatprep.subr.bf16.mxu0 0
      %2032 = vmatpush1.bf16.msra.mxu0 0
      %2033 = vmatprep.subr.bf16.mxu0 0
      %2034 = vmatpush1.bf16.msra.mxu0 0
      %2035 = vmatprep.mubr.bf16.mxu0 0
      %2036 = vmatmul.mubr.bf16.gmra.mrb[0].mxu0 %v1986
      %v2037 = vpop.f32.mrb[0].mxu0
      %v2038 = vadd.f32 0.0, %v2037
      %v2039 = vpop.f32.mrb[0].mxu0
      %v2040 = vadd.f32 0.0, %v2039
      %v2041 = vpop.f32.mrb[0].mxu0
      %v2042 = vadd.f32 0.0, %v2041
      %v2043 = vpop.f32.mrb[0].mxu0
      %v2044 = vadd.f32 0.0, %v2043
      %2045 = vmatprep.mubr.bf16.mxu0 0
      %2046 = vmatmul.mubr.bf16.gmra.mrb[0].mxu0 %v1989
      %v2047 = vpop.f32.mrb[0].mxu0
      %v2048 = vadd.f32 0.0, %v2047
      %v2049 = vpop.f32.mrb[0].mxu0
      %v2050 = vadd.f32 0.0, %v2049
      %v2051 = vpop.f32.mrb[0].mxu0
      %v2052 = vadd.f32 0.0, %v2051
      %v2053 = vpop.f32.mrb[0].mxu0
      %v2054 = vadd.f32 0.0, %v2053
      %2055 = vmatprep.mubr.bf16.mxu0 0
      %2056 = vmatmul.mubr.bf16.gmra.mrb[0].mxu0 %v1992
      %v2057 = vpop.f32.mrb[0].mxu0
      %v2058 = vadd.f32 0.0, %v2057
      %v2059 = vpop.f32.mrb[0].mxu0
      %v2060 = vadd.f32 0.0, %v2059
      %v2061 = vpop.f32.mrb[0].mxu0
      %v2062 = vadd.f32 0.0, %v2061
      %v2063 = vpop.f32.mrb[0].mxu0
      %v2064 = vadd.f32 0.0, %v2063
      %2065 = vmatprep.mubr.bf16.mxu0 0
      %2066 = vmatmul.mubr.bf16.gmra.mrb[0].mxu0 %v1995
      %v2067 = vpop.f32.mrb[0].mxu0
      %v2068 = vadd.f32 0.0, %v2067
      %v2069 = vpop.f32.mrb[0].mxu0
      %v2070 = vadd.f32 0.0, %v2069
      %v2071 = vpop.f32.mrb[0].mxu0
      %v2072 = vadd.f32 0.0, %v2071
      %v2073 = vpop.f32.mrb[0].mxu0
      %v2074 = vadd.f32 0.0, %v2073
      %2075 = vmatprep.mubr.bf16.mxu0 0
      %2076 = vmatmul.mubr.bf16.gmra.mrb[0].mxu0 %v1998
      %v2077 = vpop.f32.mrb[0].mxu0
      %v2078 = vadd.f32 0.0, %v2077
      %v2079 = vpop.f32.mrb[0].mxu0
      %v2080 = vadd.f32 0.0, %v2079
      %v2081 = vpop.f32.mrb[0].mxu0
      %v2082 = vadd.f32 0.0, %v2081
      %v2083 = vpop.f32.mrb[0].mxu0
      %v2084 = vadd.f32 0.0, %v2083
      %2085 = vmatprep.mubr.bf16.mxu0 0
      %2086 = vmatmul.mubr.bf16.gmra.mrb[0].mxu0 %v2001
      %v2087 = vpop.f32.mrb[0].mxu0
      %v2088 = vadd.f32 0.0, %v2087
      %v2089 = vpop.f32.mrb[0].mxu0
      %v2090 = vadd.f32 0.0, %v2089
      %v2091 = vpop.f32.mrb[0].mxu0
      %v2092 = vadd.f32 0.0, %v2091
      %v2093 = vpop.f32.mrb[0].mxu0
      %v2094 = vadd.f32 0.0, %v2093
      %2095 = vdwg.mxu0
      %v2096 = vadd.f32 %v1877, %v2038
      %v2097 = vadd.f32 %v1879, %v2040
      %v2098 = vadd.f32 %v1881, %v2042
      %v2099 = vadd.f32 %v1883, %v2044
      %v2100 = vadd.f32 %v1887, %v2048
      %v2101 = vadd.f32 %v1889, %v2050
      %v2102 = vadd.f32 %v1891, %v2052
      %v2103 = vadd.f32 %v1893, %v2054
      %v2104 = vadd.f32 %v1897, %v2058
      %v2105 = vadd.f32 %v1899, %v2060
      %v2106 = vadd.f32 %v1901, %v2062
      %v2107 = vadd.f32 %v1903, %v2064
      %v2108 = vadd.f32 %v1907, %v2068
      %v2109 = vadd.f32 %v1909, %v2070
      %v2110 = vadd.f32 %v1911, %v2072
      %v2111 = vadd.f32 %v1913, %v2074
      %v2112 = vxor.u32 %v2096, 2147483648
      %v2113 = vxor.u32 %v2097, 2147483648
      %v2114 = vxor.u32 %v2098, 2147483648
      %v2115 = vxor.u32 %v2099, 2147483648
      %v2116 = vxor.u32 %v2100, 2147483648
      %v2117 = vxor.u32 %v2101, 2147483648
      %v2118 = vxor.u32 %v2102, 2147483648
      %v2119 = vxor.u32 %v2103, 2147483648
      %v2120 = vxor.u32 %v2104, 2147483648
      %v2121 = vxor.u32 %v2105, 2147483648
      %v2122 = vxor.u32 %v2106, 2147483648
      %v2123 = vxor.u32 %v2107, 2147483648
      %v2124 = vxor.u32 %v2108, 2147483648
      %v2125 = vxor.u32 %v2109, 2147483648
      %v2126 = vxor.u32 %v2110, 2147483648
      %v2127 = vxor.u32 %v2111, 2147483648
      %v2128 = vmul.f32 %v2112, 1.442695
      %v2129 = vpow.pop %v2128
      %v2130 = vmul.f32 %v2113, 1.442695
      %v2131 = vpow.pop %v2130
      %v2132 = vmul.f32 %v2114, 1.442695
      %v2133 = vpow.pop %v2132
      %v2134 = vmul.f32 %v2115, 1.442695
      %v2135 = vpow.pop %v2134
      %v2136 = vmul.f32 %v2116, 1.442695
      %v2137 = vpow.pop %v2136
      %v2138 = vmul.f32 %v2117, 1.442695
      %v2139 = vpow.pop %v2138
      %v2140 = vmul.f32 %v2118, 1.442695
      %v2141 = vpow.pop %v2140
      %v2142 = vmul.f32 %v2119, 1.442695
      %v2143 = vpow.pop %v2142
      %v2144 = vmul.f32 %v2120, 1.442695
      %v2145 = vpow.pop %v2144
      %v2146 = vmul.f32 %v2121, 1.442695
      %v2147 = vpow.pop %v2146
      %v2148 = vmul.f32 %v2122, 1.442695
      %v2149 = vpow.pop %v2148
      %v2150 = vmul.f32 %v2123, 1.442695
      %v2151 = vpow.pop %v2150
      %v2152 = vmul.f32 %v2124, 1.442695
      %v2153 = vpow.pop %v2152
      %v2154 = vmul.f32 %v2125, 1.442695
      %v2155 = vpow.pop %v2154
      %v2156 = vmul.f32 %v2126, 1.442695
      %v2157 = vpow.pop %v2156
      %v2158 = vmul.f32 %v2127, 1.442695
      %v2159 = vpow.pop %v2158
      %v2160 = vadd.f32 %v2129, 1.0
      %v2161 = vadd.f32 %v2131, 1.0
      %v2162 = vadd.f32 %v2133, 1.0
      %v2163 = vadd.f32 %v2135, 1.0
      %v2164 = vadd.f32 %v2137, 1.0
      %v2165 = vadd.f32 %v2139, 1.0
      %v2166 = vadd.f32 %v2141, 1.0
      %v2167 = vadd.f32 %v2143, 1.0
      %v2168 = vadd.f32 %v2145, 1.0
      %v2169 = vadd.f32 %v2147, 1.0
      %v2170 = vadd.f32 %v2149, 1.0
      %v2171 = vadd.f32 %v2151, 1.0
      %v2172 = vadd.f32 %v2153, 1.0
      %v2173 = vadd.f32 %v2155, 1.0
      %v2174 = vadd.f32 %v2157, 1.0
      %v2175 = vadd.f32 %v2159, 1.0
      %v2176 = vrcp.pop %v2160
      %v2177 = vmul.f32 1.0, %v2176
      %v2178 = vrcp.pop %v2161
      %v2179 = vmul.f32 1.0, %v2178
      %v2180 = vrcp.pop %v2162
      %v2181 = vmul.f32 1.0, %v2180
      %v2182 = vrcp.pop %v2163
      %v2183 = vmul.f32 1.0, %v2182
      %v2184 = vrcp.pop %v2164
      %v2185 = vmul.f32 1.0, %v2184
      %v2186 = vrcp.pop %v2165
      %v2187 = vmul.f32 1.0, %v2186
      %v2188 = vrcp.pop %v2166
      %v2189 = vmul.f32 1.0, %v2188
      %v2190 = vrcp.pop %v2167
      %v2191 = vmul.f32 1.0, %v2190
      %v2192 = vrcp.pop %v2168
      %v2193 = vmul.f32 1.0, %v2192
      %v2194 = vrcp.pop %v2169
      %v2195 = vmul.f32 1.0, %v2194
      %v2196 = vrcp.pop %v2170
      %v2197 = vmul.f32 1.0, %v2196
      %v2198 = vrcp.pop %v2171
      %v2199 = vmul.f32 1.0, %v2198
      %v2200 = vrcp.pop %v2172
      %v2201 = vmul.f32 1.0, %v2200
      %v2202 = vrcp.pop %v2173
      %v2203 = vmul.f32 1.0, %v2202
      %v2204 = vrcp.pop %v2174
      %v2205 = vmul.f32 1.0, %v2204
      %v2206 = vrcp.pop %v2175
      %v2207 = vmul.f32 1.0, %v2206
      %2209 = vset.pattern.permute.xlu0 0
      %2210 = vperm.xlu0 %2209, %v1947
      %v2211 = vpop.permute.xlu0 %2210
      %2214 = vset.pattern.permute.xlu0 0
      %2215 = vperm.xlu0 %2214, %v1948
      %v2216 = vpop.permute.xlu0 %2215
      %2219 = vset.pattern.permute.xlu0 0
      %2220 = vperm.xlu0 %2219, %v1949
      %v2221 = vpop.permute.xlu0 %2220
      %2224 = vset.pattern.permute.xlu0 0
      %2225 = vperm.xlu0 %2224, %v1950
      %v2226 = vpop.permute.xlu0 %2225
      %v2228 = vadd.f32 %v2078, %v2211
      %v2229 = vadd.f32 %v2080, %v2211
      %v2230 = vadd.f32 %v2082, %v2216
      %v2231 = vadd.f32 %v2084, %v2216
      %v2232 = vadd.f32 %v2088, %v2221
      %v2233 = vadd.f32 %v2090, %v2221
      %v2234 = vadd.f32 %v2092, %v2226
      %v2235 = vadd.f32 %v2094, %v2226
      %v2236 = vmul.f32 %v2177, %v2228
      %v2237 = vmul.f32 %v2179, %v2229
      %v2238 = vmul.f32 %v2181, %v2230
      %v2239 = vmul.f32 %v2183, %v2231
      %v2240 = vmul.f32 %v2185, %v2232
      %v2241 = vmul.f32 %v2187, %v2233
      %v2242 = vmul.f32 %v2189, %v2234
      %v2243 = vmul.f32 %v2191, %v2235
      %v2244 = vadd.f32 %v1917, %v2236
      %v2245 = vadd.f32 %v1919, %v2237
      %v2246 = vadd.f32 %v1921, %v2238
      %v2247 = vadd.f32 %v1923, %v2239
      %v2248 = vadd.f32 %v1927, %v2240
      %v2249 = vadd.f32 %v1929, %v2241
      %v2250 = vadd.f32 %v1931, %v2242
      %v2251 = vadd.f32 %v1933, %v2243
      %v2252 = vtanh.pop %v2244
      %v2253 = vtanh.pop %v2245
      %v2254 = vtanh.pop %v2246
      %v2255 = vtanh.pop %v2247
      %v2256 = vtanh.pop %v2248
      %v2257 = vtanh.pop %v2249
      %v2258 = vtanh.pop %v2250
      %v2259 = vtanh.pop %v2251
      %v2260 = vsub.f32 1.0, %v2193
      %v2261 = vsub.f32 1.0, %v2195
      %v2262 = vsub.f32 1.0, %v2197
      %v2263 = vsub.f32 1.0, %v2199
      %v2264 = vsub.f32 1.0, %v2201
      %v2265 = vsub.f32 1.0, %v2203
      %v2266 = vsub.f32 1.0, %v2205
      %v2267 = vsub.f32 1.0, %v2207
      %v2268 = vmul.f32 %v2260, %v2252
      %v2269 = vmul.f32 %v2261, %v2253
      %v2270 = vmul.f32 %v2262, %v2254
      %v2271 = vmul.f32 %v2263, %v2255
      %v2272 = vmul.f32 %v2264, %v2256
      %v2273 = vmul.f32 %v2265, %v2257
      %v2274 = vmul.f32 %v2266, %v2258
      %v2275 = vmul.f32 %v2267, %v2259
      %v2276 = vmul.f32 %v2193, %v1702
      %v2277 = vmul.f32 %v2195, %v1703
      %v2278 = vmul.f32 %v2197, %v1704
      %v2279 = vmul.f32 %v2199, %v1705
      %v2280 = vmul.f32 %v2201, %v1706
      %v2281 = vmul.f32 %v2203, %v1707
      %v2282 = vmul.f32 %v2205, %v1708
      %v2283 = vmul.f32 %v2207, %v1709
      %v2284 = vadd.f32 %v2268, %v2276
      %v2285 = vadd.f32 %v2269, %v2277
      %v2286 = vadd.f32 %v2270, %v2278
      %v2287 = vadd.f32 %v2271, %v2279
      %v2288 = vadd.f32 %v2272, %v2280
      %v2289 = vadd.f32 %v2273, %v2281
      %v2290 = vadd.f32 %v2274, %v2282
      %v2291 = vadd.f32 %v2275, %v2283
      %v2292 = vpack.c.bf16 %v2286, %v2284
      %v2293 = vpack.c.bf16 %v2287, %v2285
      %v2294 = vpack.c.bf16 %v2290, %v2288
      %v2295 = vpack.c.bf16 %v2291, %v2289
      %2296 = vmatprep.subr.bf16.mxu0 %v2293
      %2297 = vmatpush1.bf16.msra.mxu0 %v2292
      %2298 = vmatprep.subr.bf16.mxu0 %v2295
      %2299 = vmatpush1.bf16.msra.mxu0 %v2294
      %2300 = vmatprep.subr.bf16.mxu0 0
      %2301 = vmatpush1.bf16.msra.mxu0 0
      %2302 = vmatprep.subr.bf16.mxu0 0
      %2303 = vmatpush1.bf16.msra.mxu0 0
      %2304 = vmatprep.subr.bf16.mxu0 0
      %2305 = vmatpush1.bf16.msra.mxu0 0
      %2306 = vmatprep.subr.bf16.mxu0 0
      %2307 = vmatpush1.bf16.msra.mxu0 0
      %2308 = vmatprep.subr.bf16.mxu0 0
      %2309 = vmatpush1.bf16.msra.mxu0 0
      %2310 = vmatprep.subr.bf16.mxu0 0
      %2311 = vmatpush1.bf16.msra.mxu0 0
      %2312 = vmatprep.subr.bf16.mxu0 0
      %2313 = vmatpush1.bf16.msra.mxu0 0
      %2314 = vmatprep.subr.bf16.mxu0 0
      %2315 = vmatpush1.bf16.msra.mxu0 0
      %2316 = vmatprep.subr.bf16.mxu0 0
      %2317 = vmatpush1.bf16.msra.mxu0 0
      %2318 = vmatprep.subr.bf16.mxu0 0
      %2319 = vmatpush1.bf16.msra.mxu0 0
      %2320 = vmatprep.subr.bf16.mxu0 0
      %2321 = vmatpush1.bf16.msra.mxu0 0
      %2322 = vmatprep.subr.bf16.mxu0 0
      %2323 = vmatpush1.bf16.msra.mxu0 0
      %2324 = vmatprep.subr.bf16.mxu0 0
      %2325 = vmatpush1.bf16.msra.mxu0 0
      %2326 = vmatprep.subr.bf16.mxu0 0
      %2327 = vmatpush1.bf16.msra.mxu0 0
      %2328 = vmatprep.mubr.bf16.mxu0 0
      %2329 = vmatmul.mubr.bf16.gmra.mrb[0].mxu0 %v1986
      %v2330 = vpop.f32.mrb[0].mxu0
      %v2331 = vadd.f32 0.0, %v2330
      %v2332 = vpop.f32.mrb[0].mxu0
      %v2333 = vadd.f32 0.0, %v2332
      %v2334 = vpop.f32.mrb[0].mxu0
      %v2335 = vadd.f32 0.0, %v2334
      %v2336 = vpop.f32.mrb[0].mxu0
      %v2337 = vadd.f32 0.0, %v2336
      %2338 = vmatprep.mubr.bf16.mxu0 0
      %2339 = vmatmul.mubr.bf16.gmra.mrb[0].mxu0 %v1989
      %v2340 = vpop.f32.mrb[0].mxu0
      %v2341 = vadd.f32 0.0, %v2340
      %v2342 = vpop.f32.mrb[0].mxu0
      %v2343 = vadd.f32 0.0, %v2342
      %v2344 = vpop.f32.mrb[0].mxu0
      %v2345 = vadd.f32 0.0, %v2344
      %v2346 = vpop.f32.mrb[0].mxu0
      %v2347 = vadd.f32 0.0, %v2346
      %2348 = vmatprep.mubr.bf16.mxu0 0
      %2349 = vmatmul.mubr.bf16.gmra.mrb[0].mxu0 %v1992
      %v2350 = vpop.f32.mrb[0].mxu0
      %v2351 = vadd.f32 0.0, %v2350
      %v2352 = vpop.f32.mrb[0].mxu0
      %v2353 = vadd.f32 0.0, %v2352
      %v2354 = vpop.f32.mrb[0].mxu0
      %v2355 = vadd.f32 0.0, %v2354
      %v2356 = vpop.f32.mrb[0].mxu0
      %v2357 = vadd.f32 0.0, %v2356
      %2358 = vmatprep.mubr.bf16.mxu0 0
      %2359 = vmatmul.mubr.bf16.gmra.mrb[0].mxu0 %v1995
      %v2360 = vpop.f32.mrb[0].mxu0
      %v2361 = vadd.f32 0.0, %v2360
      %v2362 = vpop.f32.mrb[0].mxu0
      %v2363 = vadd.f32 0.0, %v2362
      %v2364 = vpop.f32.mrb[0].mxu0
      %v2365 = vadd.f32 0.0, %v2364
      %v2366 = vpop.f32.mrb[0].mxu0
      %v2367 = vadd.f32 0.0, %v2366
      %2368 = vmatprep.mubr.bf16.mxu0 0
      %2369 = vmatmul.mubr.bf16.gmra.mrb[0].mxu0 %v1998
      %v2370 = vpop.f32.mrb[0].mxu0
      %v2371 = vadd.f32 0.0, %v2370
      %v2372 = vpop.f32.mrb[0].mxu0
      %v2373 = vadd.f32 0.0, %v2372
      %v2374 = vpop.f32.mrb[0].mxu0
      %v2375 = vadd.f32 0.0, %v2374
      %v2376 = vpop.f32.mrb[0].mxu0
      %v2377 = vadd.f32 0.0, %v2376
      %2378 = vmatprep.mubr.bf16.mxu0 0
      %2379 = vmatmul.mubr.bf16.gmra.mrb[0].mxu0 %v2001
      %v2380 = vpop.f32.mrb[0].mxu0
      %v2381 = vadd.f32 0.0, %v2380
      %v2382 = vpop.f32.mrb[0].mxu0
      %v2383 = vadd.f32 0.0, %v2382
      %v2384 = vpop.f32.mrb[0].mxu0
      %v2385 = vadd.f32 0.0, %v2384
      %v2386 = vpop.f32.mrb[0].mxu0
      %v2387 = vadd.f32 0.0, %v2386
      %2388 = vdwg.mxu0
      %v2389 = vadd.f32 %v1877, %v2331
      %v2390 = vadd.f32 %v1879, %v2333
      %v2391 = vadd.f32 %v1881, %v2335
      %v2392 = vadd.f32 %v1883, %v2337
      %v2393 = vadd.f32 %v1887, %v2341
      %v2394 = vadd.f32 %v1889, %v2343
      %v2395 = vadd.f32 %v1891, %v2345
      %v2396 = vadd.f32 %v1893, %v2347
      %v2397 = vadd.f32 %v1897, %v2351
      %v2398 = vadd.f32 %v1899, %v2353
      %v2399 = vadd.f32 %v1901, %v2355
      %v2400 = vadd.f32 %v1903, %v2357
      %v2401 = vadd.f32 %v1907, %v2361
      %v2402 = vadd.f32 %v1909, %v2363
      %v2403 = vadd.f32 %v1911, %v2365
      %v2404 = vadd.f32 %v1913, %v2367
      %v2405 = vxor.u32 %v2389, 2147483648
      %v2406 = vxor.u32 %v2390, 2147483648
      %v2407 = vxor.u32 %v2391, 2147483648
      %v2408 = vxor.u32 %v2392, 2147483648
      %v2409 = vxor.u32 %v2393, 2147483648
      %v2410 = vxor.u32 %v2394, 2147483648
      %v2411 = vxor.u32 %v2395, 2147483648
      %v2412 = vxor.u32 %v2396, 2147483648
      %v2413 = vxor.u32 %v2397, 2147483648
      %v2414 = vxor.u32 %v2398, 2147483648
      %v2415 = vxor.u32 %v2399, 2147483648
      %v2416 = vxor.u32 %v2400, 2147483648
      %v2417 = vxor.u32 %v2401, 2147483648
      %v2418 = vxor.u32 %v2402, 2147483648
      %v2419 = vxor.u32 %v2403, 2147483648
      %v2420 = vxor.u32 %v2404, 2147483648
      %v2421 = vmul.f32 %v2405, 1.442695
      %v2422 = vpow.pop %v2421
      %v2423 = vmul.f32 %v2406, 1.442695
      %v2424 = vpow.pop %v2423
      %v2425 = vmul.f32 %v2407, 1.442695
      %v2426 = vpow.pop %v2425
      %v2427 = vmul.f32 %v2408, 1.442695
      %v2428 = vpow.pop %v2427
      %v2429 = vmul.f32 %v2409, 1.442695
      %v2430 = vpow.pop %v2429
      %v2431 = vmul.f32 %v2410, 1.442695
      %v2432 = vpow.pop %v2431
      %v2433 = vmul.f32 %v2411, 1.442695
      %v2434 = vpow.pop %v2433
      %v2435 = vmul.f32 %v2412, 1.442695
      %v2436 = vpow.pop %v2435
      %v2437 = vmul.f32 %v2413, 1.442695
      %v2438 = vpow.pop %v2437
      %v2439 = vmul.f32 %v2414, 1.442695
      %v2440 = vpow.pop %v2439
      %v2441 = vmul.f32 %v2415, 1.442695
      %v2442 = vpow.pop %v2441
      %v2443 = vmul.f32 %v2416, 1.442695
      %v2444 = vpow.pop %v2443
      %v2445 = vmul.f32 %v2417, 1.442695
      %v2446 = vpow.pop %v2445
      %v2447 = vmul.f32 %v2418, 1.442695
      %v2448 = vpow.pop %v2447
      %v2449 = vmul.f32 %v2419, 1.442695
      %v2450 = vpow.pop %v2449
      %v2451 = vmul.f32 %v2420, 1.442695
      %v2452 = vpow.pop %v2451
      %v2453 = vadd.f32 %v2422, 1.0
      %v2454 = vadd.f32 %v2424, 1.0
      %v2455 = vadd.f32 %v2426, 1.0
      %v2456 = vadd.f32 %v2428, 1.0
      %v2457 = vadd.f32 %v2430, 1.0
      %v2458 = vadd.f32 %v2432, 1.0
      %v2459 = vadd.f32 %v2434, 1.0
      %v2460 = vadd.f32 %v2436, 1.0
      %v2461 = vadd.f32 %v2438, 1.0
      %v2462 = vadd.f32 %v2440, 1.0
      %v2463 = vadd.f32 %v2442, 1.0
      %v2464 = vadd.f32 %v2444, 1.0
      %v2465 = vadd.f32 %v2446, 1.0
      %v2466 = vadd.f32 %v2448, 1.0
      %v2467 = vadd.f32 %v2450, 1.0
      %v2468 = vadd.f32 %v2452, 1.0
      %v2469 = vrcp.pop %v2453
      %v2470 = vmul.f32 1.0, %v2469
      %v2471 = vrcp.pop %v2454
      %v2472 = vmul.f32 1.0, %v2471
      %v2473 = vrcp.pop %v2455
      %v2474 = vmul.f32 1.0, %v2473
      %v2475 = vrcp.pop %v2456
      %v2476 = vmul.f32 1.0, %v2475
      %v2477 = vrcp.pop %v2457
      %v2478 = vmul.f32 1.0, %v2477
      %v2479 = vrcp.pop %v2458
      %v2480 = vmul.f32 1.0, %v2479
      %v2481 = vrcp.pop %v2459
      %v2482 = vmul.f32 1.0, %v2481
      %v2483 = vrcp.pop %v2460
      %v2484 = vmul.f32 1.0, %v2483
      %v2485 = vrcp.pop %v2461
      %v2486 = vmul.f32 1.0, %v2485
      %v2487 = vrcp.pop %v2462
      %v2488 = vmul.f32 1.0, %v2487
      %v2489 = vrcp.pop %v2463
      %v2490 = vmul.f32 1.0, %v2489
      %v2491 = vrcp.pop %v2464
      %v2492 = vmul.f32 1.0, %v2491
      %v2493 = vrcp.pop %v2465
      %v2494 = vmul.f32 1.0, %v2493
      %v2495 = vrcp.pop %v2466
      %v2496 = vmul.f32 1.0, %v2495
      %v2497 = vrcp.pop %v2467
      %v2498 = vmul.f32 1.0, %v2497
      %v2499 = vrcp.pop %v2468
      %v2500 = vmul.f32 1.0, %v2499
      %v2501 = vadd.f32 %v2371, %v2211
      %v2502 = vadd.f32 %v2373, %v2211
      %v2503 = vadd.f32 %v2375, %v2216
      %v2504 = vadd.f32 %v2377, %v2216
      %v2505 = vadd.f32 %v2381, %v2221
      %v2506 = vadd.f32 %v2383, %v2221
      %v2507 = vadd.f32 %v2385, %v2226
      %v2508 = vadd.f32 %v2387, %v2226
      %v2509 = vmul.f32 %v2470, %v2501
      %v2510 = vmul.f32 %v2472, %v2502
      %v2511 = vmul.f32 %v2474, %v2503
      %v2512 = vmul.f32 %v2476, %v2504
      %v2513 = vmul.f32 %v2478, %v2505
      %v2514 = vmul.f32 %v2480, %v2506
      %v2515 = vmul.f32 %v2482, %v2507
      %v2516 = vmul.f32 %v2484, %v2508
      %v2517 = vadd.f32 %v1917, %v2509
      %v2518 = vadd.f32 %v1919, %v2510
      %v2519 = vadd.f32 %v1921, %v2511
      %v2520 = vadd.f32 %v1923, %v2512
      %v2521 = vadd.f32 %v1927, %v2513
      %v2522 = vadd.f32 %v1929, %v2514
      %v2523 = vadd.f32 %v1931, %v2515
      %v2524 = vadd.f32 %v1933, %v2516
      %v2525 = vtanh.pop %v2517
      %v2526 = vtanh.pop %v2518
      %v2527 = vtanh.pop %v2519
      %v2528 = vtanh.pop %v2520
      %v2529 = vtanh.pop %v2521
      %v2530 = vtanh.pop %v2522
      %v2531 = vtanh.pop %v2523
      %v2532 = vtanh.pop %v2524
      %v2533 = vsub.f32 1.0, %v2486
      %v2534 = vsub.f32 1.0, %v2488
      %v2535 = vsub.f32 1.0, %v2490
      %v2536 = vsub.f32 1.0, %v2492
      %v2537 = vsub.f32 1.0, %v2494
      %v2538 = vsub.f32 1.0, %v2496
      %v2539 = vsub.f32 1.0, %v2498
      %v2540 = vsub.f32 1.0, %v2500
      %v2541 = vmul.f32 %v2533, %v2525
      %v2542 = vmul.f32 %v2534, %v2526
      %v2543 = vmul.f32 %v2535, %v2527
      %v2544 = vmul.f32 %v2536, %v2528
      %v2545 = vmul.f32 %v2537, %v2529
      %v2546 = vmul.f32 %v2538, %v2530
      %v2547 = vmul.f32 %v2539, %v2531
      %v2548 = vmul.f32 %v2540, %v2532
      %v2549 = vmul.f32 %v2486, %v2284
      %v2550 = vmul.f32 %v2488, %v2285
      %v2551 = vmul.f32 %v2490, %v2286
      %v2552 = vmul.f32 %v2492, %v2287
      %v2553 = vmul.f32 %v2494, %v2288
      %v2554 = vmul.f32 %v2496, %v2289
      %v2555 = vmul.f32 %v2498, %v2290
      %v2556 = vmul.f32 %v2500, %v2291
      %v2557 = vadd.f32 %v2541, %v2549
      %v2558 = vadd.f32 %v2542, %v2550
      %v2559 = vadd.f32 %v2543, %v2551
      %v2560 = vadd.f32 %v2544, %v2552
      %v2561 = vadd.f32 %v2545, %v2553
      %v2562 = vadd.f32 %v2546, %v2554
      %v2563 = vadd.f32 %v2547, %v2555
      %v2564 = vadd.f32 %v2548, %v2556
      %v2565 = vpack.c.bf16 %v2559, %v2557
      %v2566 = vpack.c.bf16 %v2560, %v2558
      %v2567 = vpack.c.bf16 %v2563, %v2561
      %v2568 = vpack.c.bf16 %v2564, %v2562
      %2569 = vmatprep.subr.bf16.mxu0 %v2566
      %2570 = vmatpush1.bf16.msra.mxu0 %v2565
      %2571 = vmatprep.subr.bf16.mxu0 %v2568
      %2572 = vmatpush1.bf16.msra.mxu0 %v2567
      %2573 = vmatprep.subr.bf16.mxu0 0
      %2574 = vmatpush1.bf16.msra.mxu0 0
      %2575 = vmatprep.subr.bf16.mxu0 0
      %2576 = vmatpush1.bf16.msra.mxu0 0
      %2577 = vmatprep.subr.bf16.mxu0 0
      %2578 = vmatpush1.bf16.msra.mxu0 0
      %2579 = vmatprep.subr.bf16.mxu0 0
      %2580 = vmatpush1.bf16.msra.mxu0 0
      %2581 = vmatprep.subr.bf16.mxu0 0
      %2582 = vmatpush1.bf16.msra.mxu0 0
      %2583 = vmatprep.subr.bf16.mxu0 0
      %2584 = vmatpush1.bf16.msra.mxu0 0
      %2585 = vmatprep.subr.bf16.mxu0 0
      %2586 = vmatpush1.bf16.msra.mxu0 0
      %2587 = vmatprep.subr.bf16.mxu0 0
      %2588 = vmatpush1.bf16.msra.mxu0 0
      %2589 = vmatprep.subr.bf16.mxu0 0
      %2590 = vmatpush1.bf16.msra.mxu0 0
      %2591 = vmatprep.subr.bf16.mxu0 0
      %2592 = vmatpush1.bf16.msra.mxu0 0
      %2593 = vmatprep.subr.bf16.mxu0 0
      %2594 = vmatpush1.bf16.msra.mxu0 0
      %2595 = vmatprep.subr.bf16.mxu0 0
      %2596 = vmatpush1.bf16.msra.mxu0 0
      %2597 = vmatprep.subr.bf16.mxu0 0
      %2598 = vmatpush1.bf16.msra.mxu0 0
      %2599 = vmatprep.subr.bf16.mxu0 0
      %2600 = vmatpush1.bf16.msra.mxu0 0
      %2601 = vmatprep.mubr.bf16.mxu0 0
      %2602 = vmatmul.mubr.bf16.gmra.mrb[0].mxu0 %v1986
      %v2603 = vpop.f32.mrb[0].mxu0
      %v2604 = vadd.f32 0.0, %v2603
      %v2605 = vpop.f32.mrb[0].mxu0
      %v2606 = vadd.f32 0.0, %v2605
      %v2607 = vpop.f32.mrb[0].mxu0
      %v2608 = vadd.f32 0.0, %v2607
      %v2609 = vpop.f32.mrb[0].mxu0
      %v2610 = vadd.f32 0.0, %v2609
      %2611 = vmatprep.mubr.bf16.mxu0 0
      %2612 = vmatmul.mubr.bf16.gmra.mrb[0].mxu0 %v1989
      %v2613 = vpop.f32.mrb[0].mxu0
      %v2614 = vadd.f32 0.0, %v2613
      %v2615 = vpop.f32.mrb[0].mxu0
      %v2616 = vadd.f32 0.0, %v2615
      %v2617 = vpop.f32.mrb[0].mxu0
      %v2618 = vadd.f32 0.0, %v2617
      %v2619 = vpop.f32.mrb[0].mxu0
      %v2620 = vadd.f32 0.0, %v2619
      %2621 = vmatprep.mubr.bf16.mxu0 0
      %2622 = vmatmul.mubr.bf16.gmra.mrb[0].mxu0 %v1992
      %v2623 = vpop.f32.mrb[0].mxu0
      %v2624 = vadd.f32 0.0, %v2623
      %v2625 = vpop.f32.mrb[0].mxu0
      %v2626 = vadd.f32 0.0, %v2625
      %v2627 = vpop.f32.mrb[0].mxu0
      %v2628 = vadd.f32 0.0, %v2627
      %v2629 = vpop.f32.mrb[0].mxu0
      %v2630 = vadd.f32 0.0, %v2629
      %2631 = vmatprep.mubr.bf16.mxu0 0
      %2632 = vmatmul.mubr.bf16.gmra.mrb[0].mxu0 %v1995
      %v2633 = vpop.f32.mrb[0].mxu0
      %v2634 = vadd.f32 0.0, %v2633
      %v2635 = vpop.f32.mrb[0].mxu0
      %v2636 = vadd.f32 0.0, %v2635
      %v2637 = vpop.f32.mrb[0].mxu0
      %v2638 = vadd.f32 0.0, %v2637
      %v2639 = vpop.f32.mrb[0].mxu0
      %v2640 = vadd.f32 0.0, %v2639
      %2641 = vmatprep.mubr.bf16.mxu0 0
      %2642 = vmatmul.mubr.bf16.gmra.mrb[0].mxu0 %v1998
      %v2643 = vpop.f32.mrb[0].mxu0
      %v2644 = vadd.f32 0.0, %v2643
      %v2645 = vpop.f32.mrb[0].mxu0
      %v2646 = vadd.f32 0.0, %v2645
      %v2647 = vpop.f32.mrb[0].mxu0
      %v2648 = vadd.f32 0.0, %v2647
      %v2649 = vpop.f32.mrb[0].mxu0
      %v2650 = vadd.f32 0.0, %v2649
      %2651 = vmatprep.mubr.bf16.mxu0 0
      %2652 = vmatmul.mubr.bf16.gmra.mrb[0].mxu0 %v2001
      %v2653 = vpop.f32.mrb[0].mxu0
      %v2654 = vadd.f32 0.0, %v2653
      %v2655 = vpop.f32.mrb[0].mxu0
      %v2656 = vadd.f32 0.0, %v2655
      %v2657 = vpop.f32.mrb[0].mxu0
      %v2658 = vadd.f32 0.0, %v2657
      %v2659 = vpop.f32.mrb[0].mxu0
      %v2660 = vadd.f32 0.0, %v2659
      %2661 = vdwg.mxu0
      %v2662 = vadd.f32 %v1877, %v2604
      %v2663 = vadd.f32 %v1879, %v2606
      %v2664 = vadd.f32 %v1881, %v2608
      %v2665 = vadd.f32 %v1883, %v2610
      %v2666 = vadd.f32 %v1887, %v2614
      %v2667 = vadd.f32 %v1889, %v2616
      %v2668 = vadd.f32 %v1891, %v2618
      %v2669 = vadd.f32 %v1893, %v2620
      %v2670 = vadd.f32 %v1897, %v2624
      %v2671 = vadd.f32 %v1899, %v2626
      %v2672 = vadd.f32 %v1901, %v2628
      %v2673 = vadd.f32 %v1903, %v2630
      %v2674 = vadd.f32 %v1907, %v2634
      %v2675 = vadd.f32 %v1909, %v2636
      %v2676 = vadd.f32 %v1911, %v2638
      %v2677 = vadd.f32 %v1913, %v2640
      %v2678 = vxor.u32 %v2662, 2147483648
      %v2679 = vxor.u32 %v2663, 2147483648
      %v2680 = vxor.u32 %v2664, 2147483648
      %v2681 = vxor.u32 %v2665, 2147483648
      %v2682 = vxor.u32 %v2666, 2147483648
      %v2683 = vxor.u32 %v2667, 2147483648
      %v2684 = vxor.u32 %v2668, 2147483648
      %v2685 = vxor.u32 %v2669, 2147483648
      %v2686 = vxor.u32 %v2670, 2147483648
      %v2687 = vxor.u32 %v2671, 2147483648
      %v2688 = vxor.u32 %v2672, 2147483648
      %v2689 = vxor.u32 %v2673, 2147483648
      %v2690 = vxor.u32 %v2674, 2147483648
      %v2691 = vxor.u32 %v2675, 2147483648
      %v2692 = vxor.u32 %v2676, 2147483648
      %v2693 = vxor.u32 %v2677, 2147483648
      %v2694 = vmul.f32 %v2678, 1.442695
      %v2695 = vpow.pop %v2694
      %v2696 = vmul.f32 %v2679, 1.442695
      %v2697 = vpow.pop %v2696
      %v2698 = vmul.f32 %v2680, 1.442695
      %v2699 = vpow.pop %v2698
      %v2700 = vmul.f32 %v2681, 1.442695
      %v2701 = vpow.pop %v2700
      %v2702 = vmul.f32 %v2682, 1.442695
      %v2703 = vpow.pop %v2702
      %v2704 = vmul.f32 %v2683, 1.442695
      %v2705 = vpow.pop %v2704
      %v2706 = vmul.f32 %v2684, 1.442695
      %v2707 = vpow.pop %v2706
      %v2708 = vmul.f32 %v2685, 1.442695
      %v2709 = vpow.pop %v2708
      %v2710 = vmul.f32 %v2686, 1.442695
      %v2711 = vpow.pop %v2710
      %v2712 = vmul.f32 %v2687, 1.442695
      %v2713 = vpow.pop %v2712
      %v2714 = vmul.f32 %v2688, 1.442695
      %v2715 = vpow.pop %v2714
      %v2716 = vmul.f32 %v2689, 1.442695
      %v2717 = vpow.pop %v2716
      %v2718 = vmul.f32 %v2690, 1.442695
      %v2719 = vpow.pop %v2718
      %v2720 = vmul.f32 %v2691, 1.442695
      %v2721 = vpow.pop %v2720
      %v2722 = vmul.f32 %v2692, 1.442695
      %v2723 = vpow.pop %v2722
      %v2724 = vmul.f32 %v2693, 1.442695
      %v2725 = vpow.pop %v2724
      %v2726 = vadd.f32 %v2695, 1.0
      %v2727 = vadd.f32 %v2697, 1.0
      %v2728 = vadd.f32 %v2699, 1.0
      %v2729 = vadd.f32 %v2701, 1.0
      %v2730 = vadd.f32 %v2703, 1.0
      %v2731 = vadd.f32 %v2705, 1.0
      %v2732 = vadd.f32 %v2707, 1.0
      %v2733 = vadd.f32 %v2709, 1.0
      %v2734 = vadd.f32 %v2711, 1.0
      %v2735 = vadd.f32 %v2713, 1.0
      %v2736 = vadd.f32 %v2715, 1.0
      %v2737 = vadd.f32 %v2717, 1.0
      %v2738 = vadd.f32 %v2719, 1.0
      %v2739 = vadd.f32 %v2721, 1.0
      %v2740 = vadd.f32 %v2723, 1.0
      %v2741 = vadd.f32 %v2725, 1.0
      %v2742 = vrcp.pop %v2726
      %v2743 = vmul.f32 1.0, %v2742
      %v2744 = vrcp.pop %v2727
      %v2745 = vmul.f32 1.0, %v2744
      %v2746 = vrcp.pop %v2728
      %v2747 = vmul.f32 1.0, %v2746
      %v2748 = vrcp.pop %v2729
      %v2749 = vmul.f32 1.0, %v2748
      %v2750 = vrcp.pop %v2730
      %v2751 = vmul.f32 1.0, %v2750
      %v2752 = vrcp.pop %v2731
      %v2753 = vmul.f32 1.0, %v2752
      %v2754 = vrcp.pop %v2732
      %v2755 = vmul.f32 1.0, %v2754
      %v2756 = vrcp.pop %v2733
      %v2757 = vmul.f32 1.0, %v2756
      %v2758 = vrcp.pop %v2734
      %v2759 = vmul.f32 1.0, %v2758
      %v2760 = vrcp.pop %v2735
      %v2761 = vmul.f32 1.0, %v2760
      %v2762 = vrcp.pop %v2736
      %v2763 = vmul.f32 1.0, %v2762
      %v2764 = vrcp.pop %v2737
      %v2765 = vmul.f32 1.0, %v2764
      %v2766 = vrcp.pop %v2738
      %v2767 = vmul.f32 1.0, %v2766
      %v2768 = vrcp.pop %v2739
      %v2769 = vmul.f32 1.0, %v2768
      %v2770 = vrcp.pop %v2740
      %v2771 = vmul.f32 1.0, %v2770
      %v2772 = vrcp.pop %v2741
      %v2773 = vmul.f32 1.0, %v2772
      %v2774 = vadd.f32 %v2644, %v2211
      %v2775 = vadd.f32 %v2646, %v2211
      %v2776 = vadd.f32 %v2648, %v2216
      %v2777 = vadd.f32 %v2650, %v2216
      %v2778 = vadd.f32 %v2654, %v2221
      %v2779 = vadd.f32 %v2656, %v2221
      %v2780 = vadd.f32 %v2658, %v2226
      %v2781 = vadd.f32 %v2660, %v2226
      %v2782 = vmul.f32 %v2743, %v2774
      %v2783 = vmul.f32 %v2745, %v2775
      %v2784 = vmul.f32 %v2747, %v2776
      %v2785 = vmul.f32 %v2749, %v2777
      %v2786 = vmul.f32 %v2751, %v2778
      %v2787 = vmul.f32 %v2753, %v2779
      %v2788 = vmul.f32 %v2755, %v2780
      %v2789 = vmul.f32 %v2757, %v2781
      %v2790 = vadd.f32 %v1917, %v2782
      %v2791 = vadd.f32 %v1919, %v2783
      %v2792 = vadd.f32 %v1921, %v2784
      %v2793 = vadd.f32 %v1923, %v2785
      %v2794 = vadd.f32 %v1927, %v2786
      %v2795 = vadd.f32 %v1929, %v2787
      %v2796 = vadd.f32 %v1931, %v2788
      %v2797 = vadd.f32 %v1933, %v2789
      %v2798 = vtanh.pop %v2790
      %v2799 = vtanh.pop %v2791
      %v2800 = vtanh.pop %v2792
      %v2801 = vtanh.pop %v2793
      %v2802 = vtanh.pop %v2794
      %v2803 = vtanh.pop %v2795
      %v2804 = vtanh.pop %v2796
      %v2805 = vtanh.pop %v2797
      %v2806 = vsub.f32 1.0, %v2759
      %v2807 = vsub.f32 1.0, %v2761
      %v2808 = vsub.f32 1.0, %v2763
      %v2809 = vsub.f32 1.0, %v2765
      %v2810 = vsub.f32 1.0, %v2767
      %v2811 = vsub.f32 1.0, %v2769
      %v2812 = vsub.f32 1.0, %v2771
      %v2813 = vsub.f32 1.0, %v2773
      %v2814 = vmul.f32 %v2806, %v2798
      %v2815 = vmul.f32 %v2807, %v2799
      %v2816 = vmul.f32 %v2808, %v2800
      %v2817 = vmul.f32 %v2809, %v2801
      %v2818 = vmul.f32 %v2810, %v2802
      %v2819 = vmul.f32 %v2811, %v2803
      %v2820 = vmul.f32 %v2812, %v2804
      %v2821 = vmul.f32 %v2813, %v2805
      %v2822 = vmul.f32 %v2759, %v2557
      %v2823 = vmul.f32 %v2761, %v2558
      %v2824 = vmul.f32 %v2763, %v2559
      %v2825 = vmul.f32 %v2765, %v2560
      %v2826 = vmul.f32 %v2767, %v2561
      %v2827 = vmul.f32 %v2769, %v2562
      %v2828 = vmul.f32 %v2771, %v2563
      %v2829 = vmul.f32 %v2773, %v2564
      %v2830 = vadd.f32 %v2814, %v2822
      %v2831 = vadd.f32 %v2815, %v2823
      %v2832 = vadd.f32 %v2816, %v2824
      %v2833 = vadd.f32 %v2817, %v2825
      %v2834 = vadd.f32 %v2818, %v2826
      %v2835 = vadd.f32 %v2819, %v2827
      %v2836 = vadd.f32 %v2820, %v2828
      %v2837 = vadd.f32 %v2821, %v2829
      %v2838 = vpack.c.bf16 %v2832, %v2830
      %v2839 = vpack.c.bf16 %v2833, %v2831
      %v2840 = vpack.c.bf16 %v2836, %v2834
      %v2841 = vpack.c.bf16 %v2837, %v2835
      %2842 = vmatprep.subr.bf16.mxu0 %v2839
      %2843 = vmatpush1.bf16.msra.mxu0 %v2838
      %2844 = vmatprep.subr.bf16.mxu0 %v2841
      %2845 = vmatpush1.bf16.msra.mxu0 %v2840
      %2846 = vmatprep.subr.bf16.mxu0 0
      %2847 = vmatpush1.bf16.msra.mxu0 0
      %2848 = vmatprep.subr.bf16.mxu0 0
      %2849 = vmatpush1.bf16.msra.mxu0 0
      %2850 = vmatprep.subr.bf16.mxu0 0
      %2851 = vmatpush1.bf16.msra.mxu0 0
      %2852 = vmatprep.subr.bf16.mxu0 0
      %2853 = vmatpush1.bf16.msra.mxu0 0
      %2854 = vmatprep.subr.bf16.mxu0 0
      %2855 = vmatpush1.bf16.msra.mxu0 0
      %2856 = vmatprep.subr.bf16.mxu0 0
      %2857 = vmatpush1.bf16.msra.mxu0 0
      %2858 = vmatprep.subr.bf16.mxu0 0
      %2859 = vmatpush1.bf16.msra.mxu0 0
      %2860 = vmatprep.subr.bf16.mxu0 0
      %2861 = vmatpush1.bf16.msra.mxu0 0
      %2862 = vmatprep.subr.bf16.mxu0 0
      %2863 = vmatpush1.bf16.msra.mxu0 0
      %2864 = vmatprep.subr.bf16.mxu0 0
      %2865 = vmatpush1.bf16.msra.mxu0 0
      %2866 = vmatprep.subr.bf16.mxu0 0
      %2867 = vmatpush1.bf16.msra.mxu0 0
      %2868 = vmatprep.subr.bf16.mxu0 0
      %2869 = vmatpush1.bf16.msra.mxu0 0
      %2870 = vmatprep.subr.bf16.mxu0 0
      %2871 = vmatpush1.bf16.msra.mxu0 0
      %2872 = vmatprep.subr.bf16.mxu0 0
      %2873 = vmatpush1.bf16.msra.mxu0 0
      %2874 = vmatprep.mubr.bf16.mxu0 0
      %2875 = vmatmul.mubr.bf16.gmra.mrb[0].mxu0 %v1986
      %v2876 = vpop.f32.mrb[0].mxu0
      %v2877 = vadd.f32 0.0, %v2876
      %v2878 = vpop.f32.mrb[0].mxu0
      %v2879 = vadd.f32 0.0, %v2878
      %v2880 = vpop.f32.mrb[0].mxu0
      %v2881 = vadd.f32 0.0, %v2880
      %v2882 = vpop.f32.mrb[0].mxu0
      %v2883 = vadd.f32 0.0, %v2882
      %2884 = vmatprep.mubr.bf16.mxu0 0
      %2885 = vmatmul.mubr.bf16.gmra.mrb[0].mxu0 %v1989
      %v2886 = vpop.f32.mrb[0].mxu0
      %v2887 = vadd.f32 0.0, %v2886
      %v2888 = vpop.f32.mrb[0].mxu0
      %v2889 = vadd.f32 0.0, %v2888
      %v2890 = vpop.f32.mrb[0].mxu0
      %v2891 = vadd.f32 0.0, %v2890
      %v2892 = vpop.f32.mrb[0].mxu0
      %v2893 = vadd.f32 0.0, %v2892
      %2894 = vmatprep.mubr.bf16.mxu0 0
      %2895 = vmatmul.mubr.bf16.gmra.mrb[0].mxu0 %v1992
      %v2896 = vpop.f32.mrb[0].mxu0
      %v2897 = vadd.f32 0.0, %v2896
      %v2898 = vpop.f32.mrb[0].mxu0
      %v2899 = vadd.f32 0.0, %v2898
      %v2900 = vpop.f32.mrb[0].mxu0
      %v2901 = vadd.f32 0.0, %v2900
      %v2902 = vpop.f32.mrb[0].mxu0
      %v2903 = vadd.f32 0.0, %v2902
      %2904 = vmatprep.mubr.bf16.mxu0 0
      %2905 = vmatmul.mubr.bf16.gmra.mrb[0].mxu0 %v1995
      %v2906 = vpop.f32.mrb[0].mxu0
      %v2907 = vadd.f32 0.0, %v2906
      %v2908 = vpop.f32.mrb[0].mxu0
      %v2909 = vadd.f32 0.0, %v2908
      %v2910 = vpop.f32.mrb[0].mxu0
      %v2911 = vadd.f32 0.0, %v2910
      %v2912 = vpop.f32.mrb[0].mxu0
      %v2913 = vadd.f32 0.0, %v2912
      %2914 = vmatprep.mubr.bf16.mxu0 0
      %2915 = vmatmul.mubr.bf16.gmra.mrb[0].mxu0 %v1998
      %v2916 = vpop.f32.mrb[0].mxu0
      %v2917 = vadd.f32 0.0, %v2916
      %v2918 = vpop.f32.mrb[0].mxu0
      %v2919 = vadd.f32 0.0, %v2918
      %v2920 = vpop.f32.mrb[0].mxu0
      %v2921 = vadd.f32 0.0, %v2920
      %v2922 = vpop.f32.mrb[0].mxu0
      %v2923 = vadd.f32 0.0, %v2922
      %2924 = vmatprep.mubr.bf16.mxu0 0
      %2925 = vmatmul.mubr.bf16.gmra.mrb[0].mxu0 %v2001
      %v2926 = vpop.f32.mrb[0].mxu0
      %v2927 = vadd.f32 0.0, %v2926
      %v2928 = vpop.f32.mrb[0].mxu0
      %v2929 = vadd.f32 0.0, %v2928
      %v2930 = vpop.f32.mrb[0].mxu0
      %v2931 = vadd.f32 0.0, %v2930
      %v2932 = vpop.f32.mrb[0].mxu0
      %v2933 = vadd.f32 0.0, %v2932
      %2934 = vdwg.mxu0
      %v2935 = vadd.f32 %v1877, %v2877
      %v2936 = vadd.f32 %v1879, %v2879
      %v2937 = vadd.f32 %v1881, %v2881
      %v2938 = vadd.f32 %v1883, %v2883
      %v2939 = vadd.f32 %v1887, %v2887
      %v2940 = vadd.f32 %v1889, %v2889
      %v2941 = vadd.f32 %v1891, %v2891
      %v2942 = vadd.f32 %v1893, %v2893
      %v2943 = vadd.f32 %v1897, %v2897
      %v2944 = vadd.f32 %v1899, %v2899
      %v2945 = vadd.f32 %v1901, %v2901
      %v2946 = vadd.f32 %v1903, %v2903
      %v2947 = vadd.f32 %v1907, %v2907
      %v2948 = vadd.f32 %v1909, %v2909
      %v2949 = vadd.f32 %v1911, %v2911
      %v2950 = vadd.f32 %v1913, %v2913
      %v2951 = vxor.u32 %v2935, 2147483648
      %v2952 = vxor.u32 %v2936, 2147483648
      %v2953 = vxor.u32 %v2937, 2147483648
      %v2954 = vxor.u32 %v2938, 2147483648
      %v2955 = vxor.u32 %v2939, 2147483648
      %v2956 = vxor.u32 %v2940, 2147483648
      %v2957 = vxor.u32 %v2941, 2147483648
      %v2958 = vxor.u32 %v2942, 2147483648
      %v2959 = vxor.u32 %v2943, 2147483648
      %v2960 = vxor.u32 %v2944, 2147483648
      %v2961 = vxor.u32 %v2945, 2147483648
      %v2962 = vxor.u32 %v2946, 2147483648
      %v2963 = vxor.u32 %v2947, 2147483648
      %v2964 = vxor.u32 %v2948, 2147483648
      %v2965 = vxor.u32 %v2949, 2147483648
      %v2966 = vxor.u32 %v2950, 2147483648
      %v2967 = vmul.f32 %v2951, 1.442695
      %v2968 = vpow.pop %v2967
      %v2969 = vmul.f32 %v2952, 1.442695
      %v2970 = vpow.pop %v2969
      %v2971 = vmul.f32 %v2953, 1.442695
      %v2972 = vpow.pop %v2971
      %v2973 = vmul.f32 %v2954, 1.442695
      %v2974 = vpow.pop %v2973
      %v2975 = vmul.f32 %v2955, 1.442695
      %v2976 = vpow.pop %v2975
      %v2977 = vmul.f32 %v2956, 1.442695
      %v2978 = vpow.pop %v2977
      %v2979 = vmul.f32 %v2957, 1.442695
      %v2980 = vpow.pop %v2979
      %v2981 = vmul.f32 %v2958, 1.442695
      %v2982 = vpow.pop %v2981
      %v2983 = vmul.f32 %v2959, 1.442695
      %v2984 = vpow.pop %v2983
      %v2985 = vmul.f32 %v2960, 1.442695
      %v2986 = vpow.pop %v2985
      %v2987 = vmul.f32 %v2961, 1.442695
      %v2988 = vpow.pop %v2987
      %v2989 = vmul.f32 %v2962, 1.442695
      %v2990 = vpow.pop %v2989
      %v2991 = vmul.f32 %v2963, 1.442695
      %v2992 = vpow.pop %v2991
      %v2993 = vmul.f32 %v2964, 1.442695
      %v2994 = vpow.pop %v2993
      %v2995 = vmul.f32 %v2965, 1.442695
      %v2996 = vpow.pop %v2995
      %v2997 = vmul.f32 %v2966, 1.442695
      %v2998 = vpow.pop %v2997
      %v2999 = vadd.f32 %v2968, 1.0
      %v3000 = vadd.f32 %v2970, 1.0
      %v3001 = vadd.f32 %v2972, 1.0
      %v3002 = vadd.f32 %v2974, 1.0
      %v3003 = vadd.f32 %v2976, 1.0
      %v3004 = vadd.f32 %v2978, 1.0
      %v3005 = vadd.f32 %v2980, 1.0
      %v3006 = vadd.f32 %v2982, 1.0
      %v3007 = vadd.f32 %v2984, 1.0
      %v3008 = vadd.f32 %v2986, 1.0
      %v3009 = vadd.f32 %v2988, 1.0
      %v3010 = vadd.f32 %v2990, 1.0
      %v3011 = vadd.f32 %v2992, 1.0
      %v3012 = vadd.f32 %v2994, 1.0
      %v3013 = vadd.f32 %v2996, 1.0
      %v3014 = vadd.f32 %v2998, 1.0
      %v3015 = vrcp.pop %v2999
      %v3016 = vmul.f32 1.0, %v3015
      %v3017 = vrcp.pop %v3000
      %v3018 = vmul.f32 1.0, %v3017
      %v3019 = vrcp.pop %v3001
      %v3020 = vmul.f32 1.0, %v3019
      %v3021 = vrcp.pop %v3002
      %v3022 = vmul.f32 1.0, %v3021
      %v3023 = vrcp.pop %v3003
      %v3024 = vmul.f32 1.0, %v3023
      %v3025 = vrcp.pop %v3004
      %v3026 = vmul.f32 1.0, %v3025
      %v3027 = vrcp.pop %v3005
      %v3028 = vmul.f32 1.0, %v3027
      %v3029 = vrcp.pop %v3006
      %v3030 = vmul.f32 1.0, %v3029
      %v3031 = vrcp.pop %v3007
      %v3032 = vmul.f32 1.0, %v3031
      %v3033 = vrcp.pop %v3008
      %v3034 = vmul.f32 1.0, %v3033
      %v3035 = vrcp.pop %v3009
      %v3036 = vmul.f32 1.0, %v3035
      %v3037 = vrcp.pop %v3010
      %v3038 = vmul.f32 1.0, %v3037
      %v3039 = vrcp.pop %v3011
      %v3040 = vmul.f32 1.0, %v3039
      %v3041 = vrcp.pop %v3012
      %v3042 = vmul.f32 1.0, %v3041
      %v3043 = vrcp.pop %v3013
      %v3044 = vmul.f32 1.0, %v3043
      %v3045 = vrcp.pop %v3014
      %v3046 = vmul.f32 1.0, %v3045
      %v3047 = vadd.f32 %v2917, %v2211
      %v3048 = vadd.f32 %v2919, %v2211
      %v3049 = vadd.f32 %v2921, %v2216
      %v3050 = vadd.f32 %v2923, %v2216
      %v3051 = vadd.f32 %v2927, %v2221
      %v3052 = vadd.f32 %v2929, %v2221
      %v3053 = vadd.f32 %v2931, %v2226
      %v3054 = vadd.f32 %v2933, %v2226
      %v3055 = vmul.f32 %v3016, %v3047
      %v3056 = vmul.f32 %v3018, %v3048
      %v3057 = vmul.f32 %v3020, %v3049
      %v3058 = vmul.f32 %v3022, %v3050
      %v3059 = vmul.f32 %v3024, %v3051
      %v3060 = vmul.f32 %v3026, %v3052
      %v3061 = vmul.f32 %v3028, %v3053
      %v3062 = vmul.f32 %v3030, %v3054
      %v3063 = vadd.f32 %v1917, %v3055
      %v3064 = vadd.f32 %v1919, %v3056
      %v3065 = vadd.f32 %v1921, %v3057
      %v3066 = vadd.f32 %v1923, %v3058
      %v3067 = vadd.f32 %v1927, %v3059
      %v3068 = vadd.f32 %v1929, %v3060
      %v3069 = vadd.f32 %v1931, %v3061
      %v3070 = vadd.f32 %v1933, %v3062
      %v3071 = vtanh.pop %v3063
      %v3072 = vtanh.pop %v3064
      %v3073 = vtanh.pop %v3065
      %v3074 = vtanh.pop %v3066
      %v3075 = vtanh.pop %v3067
      %v3076 = vtanh.pop %v3068
      %v3077 = vtanh.pop %v3069
      %v3078 = vtanh.pop %v3070
      %v3079 = vsub.f32 1.0, %v3032
      %v3080 = vsub.f32 1.0, %v3034
      %v3081 = vsub.f32 1.0, %v3036
      %v3082 = vsub.f32 1.0, %v3038
      %v3083 = vsub.f32 1.0, %v3040
      %v3084 = vsub.f32 1.0, %v3042
      %v3085 = vsub.f32 1.0, %v3044
      %v3086 = vsub.f32 1.0, %v3046
      %v3087 = vmul.f32 %v3079, %v3071
      %v3088 = vmul.f32 %v3080, %v3072
      %v3089 = vmul.f32 %v3081, %v3073
      %v3090 = vmul.f32 %v3082, %v3074
      %v3091 = vmul.f32 %v3083, %v3075
      %v3092 = vmul.f32 %v3084, %v3076
      %v3093 = vmul.f32 %v3085, %v3077
      %v3094 = vmul.f32 %v3086, %v3078
      %v3095 = vmul.f32 %v3032, %v2830
      %v3096 = vmul.f32 %v3034, %v2831
      %v3097 = vmul.f32 %v3036, %v2832
      %v3098 = vmul.f32 %v3038, %v2833
      %v3099 = vmul.f32 %v3040, %v2834
      %v3100 = vmul.f32 %v3042, %v2835
      %v3101 = vmul.f32 %v3044, %v2836
      %v3102 = vmul.f32 %v3046, %v2837
      %v3103 = vadd.f32 %v3087, %v3095
      %v3104 = vadd.f32 %v3088, %v3096
      %v3105 = vadd.f32 %v3089, %v3097
      %v3106 = vadd.f32 %v3090, %v3098
      %v3107 = vadd.f32 %v3091, %v3099
      %v3108 = vadd.f32 %v3092, %v3100
      %v3109 = vadd.f32 %v3093, %v3101
      %v3110 = vadd.f32 %v3094, %v3102
      %v3111 = vpack.c.bf16 %v3105, %v3103
      %v3112 = vpack.c.bf16 %v3106, %v3104
      %v3113 = vpack.c.bf16 %v3109, %v3107
      %v3114 = vpack.c.bf16 %v3110, %v3108
      %3115 = vmatprep.subr.bf16.mxu0 %v3112
      %3116 = vmatpush1.bf16.msra.mxu0 %v3111
      %3117 = vmatprep.subr.bf16.mxu0 %v3114
      %3118 = vmatpush1.bf16.msra.mxu0 %v3113
      %3119 = vmatprep.subr.bf16.mxu0 0
      %3120 = vmatpush1.bf16.msra.mxu0 0
      %3121 = vmatprep.subr.bf16.mxu0 0
      %3122 = vmatpush1.bf16.msra.mxu0 0
      %3123 = vmatprep.subr.bf16.mxu0 0
      %3124 = vmatpush1.bf16.msra.mxu0 0
      %3125 = vmatprep.subr.bf16.mxu0 0
      %3126 = vmatpush1.bf16.msra.mxu0 0
      %3127 = vmatprep.subr.bf16.mxu0 0
      %3128 = vmatpush1.bf16.msra.mxu0 0
      %3129 = vmatprep.subr.bf16.mxu0 0
      %3130 = vmatpush1.bf16.msra.mxu0 0
      %3131 = vmatprep.subr.bf16.mxu0 0
      %3132 = vmatpush1.bf16.msra.mxu0 0
      %3133 = vmatprep.subr.bf16.mxu0 0
      %3134 = vmatpush1.bf16.msra.mxu0 0
      %3135 = vmatprep.subr.bf16.mxu0 0
      %3136 = vmatpush1.bf16.msra.mxu0 0
      %3137 = vmatprep.subr.bf16.mxu0 0
      %3138 = vmatpush1.bf16.msra.mxu0 0
      %3139 = vmatprep.subr.bf16.mxu0 0
      %3140 = vmatpush1.bf16.msra.mxu0 0
      %3141 = vmatprep.subr.bf16.mxu0 0
      %3142 = vmatpush1.bf16.msra.mxu0 0
      %3143 = vmatprep.subr.bf16.mxu0 0
      %3144 = vmatpush1.bf16.msra.mxu0 0
      %3145 = vmatprep.subr.bf16.mxu0 0
      %3146 = vmatpush1.bf16.msra.mxu0 0
      %3147 = vmatprep.mubr.bf16.mxu0 0
      %3148 = vmatmul.mubr.bf16.gmra.mrb[0].mxu0 %v1986
      %v3149 = vpop.f32.mrb[0].mxu0
      %v3150 = vadd.f32 0.0, %v3149
      %v3151 = vpop.f32.mrb[0].mxu0
      %v3152 = vadd.f32 0.0, %v3151
      %v3153 = vpop.f32.mrb[0].mxu0
      %v3154 = vadd.f32 0.0, %v3153
      %v3155 = vpop.f32.mrb[0].mxu0
      %v3156 = vadd.f32 0.0, %v3155
      %3157 = vmatprep.mubr.bf16.mxu0 0
      %3158 = vmatmul.mubr.bf16.gmra.mrb[0].mxu0 %v1989
      %v3159 = vpop.f32.mrb[0].mxu0
      %v3160 = vadd.f32 0.0, %v3159
      %v3161 = vpop.f32.mrb[0].mxu0
      %v3162 = vadd.f32 0.0, %v3161
      %v3163 = vpop.f32.mrb[0].mxu0
      %v3164 = vadd.f32 0.0, %v3163
      %v3165 = vpop.f32.mrb[0].mxu0
      %v3166 = vadd.f32 0.0, %v3165
      %3167 = vmatprep.mubr.bf16.mxu0 0
      %3168 = vmatmul.mubr.bf16.gmra.mrb[0].mxu0 %v1992
      %v3169 = vpop.f32.mrb[0].mxu0
      %v3170 = vadd.f32 0.0, %v3169
      %v3171 = vpop.f32.mrb[0].mxu0
      %v3172 = vadd.f32 0.0, %v3171
      %v3173 = vpop.f32.mrb[0].mxu0
      %v3174 = vadd.f32 0.0, %v3173
      %v3175 = vpop.f32.mrb[0].mxu0
      %v3176 = vadd.f32 0.0, %v3175
      %3177 = vmatprep.mubr.bf16.mxu0 0
      %3178 = vmatmul.mubr.bf16.gmra.mrb[0].mxu0 %v1995
      %v3179 = vpop.f32.mrb[0].mxu0
      %v3180 = vadd.f32 0.0, %v3179
      %v3181 = vpop.f32.mrb[0].mxu0
      %v3182 = vadd.f32 0.0, %v3181
      %v3183 = vpop.f32.mrb[0].mxu0
      %v3184 = vadd.f32 0.0, %v3183
      %v3185 = vpop.f32.mrb[0].mxu0
      %v3186 = vadd.f32 0.0, %v3185
      %3187 = vmatprep.mubr.bf16.mxu0 0
      %3188 = vmatmul.mubr.bf16.gmra.mrb[0].mxu0 %v1998
      %v3189 = vpop.f32.mrb[0].mxu0
      %v3190 = vadd.f32 0.0, %v3189
      %v3191 = vpop.f32.mrb[0].mxu0
      %v3192 = vadd.f32 0.0, %v3191
      %v3193 = vpop.f32.mrb[0].mxu0
      %v3194 = vadd.f32 0.0, %v3193
      %v3195 = vpop.f32.mrb[0].mxu0
      %v3196 = vadd.f32 0.0, %v3195
      %3197 = vmatprep.mubr.bf16.mxu0 0
      %3198 = vmatmul.mubr.bf16.gmra.mrb[0].mxu0 %v2001
      %v3199 = vpop.f32.mrb[0].mxu0
      %v3200 = vadd.f32 0.0, %v3199
      %v3201 = vpop.f32.mrb[0].mxu0
      %v3202 = vadd.f32 0.0, %v3201
      %v3203 = vpop.f32.mrb[0].mxu0
      %v3204 = vadd.f32 0.0, %v3203
      %v3205 = vpop.f32.mrb[0].mxu0
      %v3206 = vadd.f32 0.0, %v3205
      %3207 = vdwg.mxu0
      %v3208 = vadd.f32 %v1877, %v3150
      %v3209 = vadd.f32 %v1879, %v3152
      %v3210 = vadd.f32 %v1881, %v3154
      %v3211 = vadd.f32 %v1883, %v3156
      %v3212 = vadd.f32 %v1887, %v3160
      %v3213 = vadd.f32 %v1889, %v3162
      %v3214 = vadd.f32 %v1891, %v3164
      %v3215 = vadd.f32 %v1893, %v3166
      %v3216 = vadd.f32 %v1897, %v3170
      %v3217 = vadd.f32 %v1899, %v3172
      %v3218 = vadd.f32 %v1901, %v3174
      %v3219 = vadd.f32 %v1903, %v3176
      %v3220 = vadd.f32 %v1907, %v3180
      %v3221 = vadd.f32 %v1909, %v3182
      %v3222 = vadd.f32 %v1911, %v3184
      %v3223 = vadd.f32 %v1913, %v3186
      %v3224 = vxor.u32 %v3208, 2147483648
      %v3225 = vxor.u32 %v3209, 2147483648
      %v3226 = vxor.u32 %v3210, 2147483648
      %v3227 = vxor.u32 %v3211, 2147483648
      %v3228 = vxor.u32 %v3212, 2147483648
      %v3229 = vxor.u32 %v3213, 2147483648
      %v3230 = vxor.u32 %v3214, 2147483648
      %v3231 = vxor.u32 %v3215, 2147483648
      %v3232 = vxor.u32 %v3216, 2147483648
      %v3233 = vxor.u32 %v3217, 2147483648
      %v3234 = vxor.u32 %v3218, 2147483648
      %v3235 = vxor.u32 %v3219, 2147483648
      %v3236 = vxor.u32 %v3220, 2147483648
      %v3237 = vxor.u32 %v3221, 2147483648
      %v3238 = vxor.u32 %v3222, 2147483648
      %v3239 = vxor.u32 %v3223, 2147483648
      %v3240 = vmul.f32 %v3224, 1.442695
      %v3241 = vpow.pop %v3240
      %v3242 = vmul.f32 %v3225, 1.442695
      %v3243 = vpow.pop %v3242
      %v3244 = vmul.f32 %v3226, 1.442695
      %v3245 = vpow.pop %v3244
      %v3246 = vmul.f32 %v3227, 1.442695
      %v3247 = vpow.pop %v3246
      %v3248 = vmul.f32 %v3228, 1.442695
      %v3249 = vpow.pop %v3248
      %v3250 = vmul.f32 %v3229, 1.442695
      %v3251 = vpow.pop %v3250
      %v3252 = vmul.f32 %v3230, 1.442695
      %v3253 = vpow.pop %v3252
      %v3254 = vmul.f32 %v3231, 1.442695
      %v3255 = vpow.pop %v3254
      %v3256 = vmul.f32 %v3232, 1.442695
      %v3257 = vpow.pop %v3256
      %v3258 = vmul.f32 %v3233, 1.442695
      %v3259 = vpow.pop %v3258
      %v3260 = vmul.f32 %v3234, 1.442695
      %v3261 = vpow.pop %v3260
      %v3262 = vmul.f32 %v3235, 1.442695
      %v3263 = vpow.pop %v3262
      %v3264 = vmul.f32 %v3236, 1.442695
      %v3265 = vpow.pop %v3264
      %v3266 = vmul.f32 %v3237, 1.442695
      %v3267 = vpow.pop %v3266
      %v3268 = vmul.f32 %v3238, 1.442695
      %v3269 = vpow.pop %v3268
      %v3270 = vmul.f32 %v3239, 1.442695
      %v3271 = vpow.pop %v3270
      %v3272 = vadd.f32 %v3241, 1.0
      %v3273 = vadd.f32 %v3243, 1.0
      %v3274 = vadd.f32 %v3245, 1.0
      %v3275 = vadd.f32 %v3247, 1.0
      %v3276 = vadd.f32 %v3249, 1.0
      %v3277 = vadd.f32 %v3251, 1.0
      %v3278 = vadd.f32 %v3253, 1.0
      %v3279 = vadd.f32 %v3255, 1.0
      %v3280 = vadd.f32 %v3257, 1.0
      %v3281 = vadd.f32 %v3259, 1.0
      %v3282 = vadd.f32 %v3261, 1.0
      %v3283 = vadd.f32 %v3263, 1.0
      %v3284 = vadd.f32 %v3265, 1.0
      %v3285 = vadd.f32 %v3267, 1.0
      %v3286 = vadd.f32 %v3269, 1.0
      %v3287 = vadd.f32 %v3271, 1.0
      %v3288 = vrcp.pop %v3272
      %v3289 = vmul.f32 1.0, %v3288
      %v3290 = vrcp.pop %v3273
      %v3291 = vmul.f32 1.0, %v3290
      %v3292 = vrcp.pop %v3274
      %v3293 = vmul.f32 1.0, %v3292
      %v3294 = vrcp.pop %v3275
      %v3295 = vmul.f32 1.0, %v3294
      %v3296 = vrcp.pop %v3276
      %v3297 = vmul.f32 1.0, %v3296
      %v3298 = vrcp.pop %v3277
      %v3299 = vmul.f32 1.0, %v3298
      %v3300 = vrcp.pop %v3278
      %v3301 = vmul.f32 1.0, %v3300
      %v3302 = vrcp.pop %v3279
      %v3303 = vmul.f32 1.0, %v3302
      %v3304 = vrcp.pop %v3280
      %v3305 = vmul.f32 1.0, %v3304
      %v3306 = vrcp.pop %v3281
      %v3307 = vmul.f32 1.0, %v3306
      %v3308 = vrcp.pop %v3282
      %v3309 = vmul.f32 1.0, %v3308
      %v3310 = vrcp.pop %v3283
      %v3311 = vmul.f32 1.0, %v3310
      %v3312 = vrcp.pop %v3284
      %v3313 = vmul.f32 1.0, %v3312
      %v3314 = vrcp.pop %v3285
      %v3315 = vmul.f32 1.0, %v3314
      %v3316 = vrcp.pop %v3286
      %v3317 = vmul.f32 1.0, %v3316
      %v3318 = vrcp.pop %v3287
      %v3319 = vmul.f32 1.0, %v3318
      %v3320 = vadd.f32 %v3190, %v2211
      %v3321 = vadd.f32 %v3192, %v2211
      %v3322 = vadd.f32 %v3194, %v2216
      %v3323 = vadd.f32 %v3196, %v2216
      %v3324 = vadd.f32 %v3200, %v2221
      %v3325 = vadd.f32 %v3202, %v2221
      %v3326 = vadd.f32 %v3204, %v2226
      %v3327 = vadd.f32 %v3206, %v2226
      %v3328 = vmul.f32 %v3289, %v3320
      %v3329 = vmul.f32 %v3291, %v3321
      %v3330 = vmul.f32 %v3293, %v3322
      %v3331 = vmul.f32 %v3295, %v3323
      %v3332 = vmul.f32 %v3297, %v3324
      %v3333 = vmul.f32 %v3299, %v3325
      %v3334 = vmul.f32 %v3301, %v3326
      %v3335 = vmul.f32 %v3303, %v3327
      %v3336 = vadd.f32 %v1917, %v3328
      %v3337 = vadd.f32 %v1919, %v3329
      %v3338 = vadd.f32 %v1921, %v3330
      %v3339 = vadd.f32 %v1923, %v3331
      %v3340 = vadd.f32 %v1927, %v3332
      %v3341 = vadd.f32 %v1929, %v3333
      %v3342 = vadd.f32 %v1931, %v3334
      %v3343 = vadd.f32 %v1933, %v3335
      %v3344 = vtanh.pop %v3336
      %v3345 = vtanh.pop %v3337
      %v3346 = vtanh.pop %v3338
      %v3347 = vtanh.pop %v3339
      %v3348 = vtanh.pop %v3340
      %v3349 = vtanh.pop %v3341
      %v3350 = vtanh.pop %v3342
      %v3351 = vtanh.pop %v3343
      %v3352 = vsub.f32 1.0, %v3305
      %v3353 = vsub.f32 1.0, %v3307
      %v3354 = vsub.f32 1.0, %v3309
      %v3355 = vsub.f32 1.0, %v3311
      %v3356 = vsub.f32 1.0, %v3313
      %v3357 = vsub.f32 1.0, %v3315
      %v3358 = vsub.f32 1.0, %v3317
      %v3359 = vsub.f32 1.0, %v3319
      %v3360 = vmul.f32 %v3352, %v3344
      %v3361 = vmul.f32 %v3353, %v3345
      %v3362 = vmul.f32 %v3354, %v3346
      %v3363 = vmul.f32 %v3355, %v3347
      %v3364 = vmul.f32 %v3356, %v3348
      %v3365 = vmul.f32 %v3357, %v3349
      %v3366 = vmul.f32 %v3358, %v3350
      %v3367 = vmul.f32 %v3359, %v3351
      %v3368 = vmul.f32 %v3305, %v3103
      %v3369 = vmul.f32 %v3307, %v3104
      %v3370 = vmul.f32 %v3309, %v3105
      %v3371 = vmul.f32 %v3311, %v3106
      %v3372 = vmul.f32 %v3313, %v3107
      %v3373 = vmul.f32 %v3315, %v3108
      %v3374 = vmul.f32 %v3317, %v3109
      %v3375 = vmul.f32 %v3319, %v3110
      %v3376 = vadd.f32 %v3360, %v3368
      %v3377 = vadd.f32 %v3361, %v3369
      %v3378 = vadd.f32 %v3362, %v3370
      %v3379 = vadd.f32 %v3363, %v3371
      %v3380 = vadd.f32 %v3364, %v3372
      %v3381 = vadd.f32 %v3365, %v3373
      %v3382 = vadd.f32 %v3366, %v3374
      %v3383 = vadd.f32 %v3367, %v3375
      %v3384 = vpack.c.bf16 %v3378, %v3376
      %v3385 = vpack.c.bf16 %v3379, %v3377
      %v3386 = vpack.c.bf16 %v3382, %v3380
      %v3387 = vpack.c.bf16 %v3383, %v3381
      %3388 = vmatprep.subr.bf16.mxu0 %v3385
      %3389 = vmatpush1.bf16.msra.mxu0 %v3384
      %3390 = vmatprep.subr.bf16.mxu0 %v3387
      %3391 = vmatpush1.bf16.msra.mxu0 %v3386
      %3392 = vmatprep.subr.bf16.mxu0 0
      %3393 = vmatpush1.bf16.msra.mxu0 0
      %3394 = vmatprep.subr.bf16.mxu0 0
      %3395 = vmatpush1.bf16.msra.mxu0 0
      %3396 = vmatprep.subr.bf16.mxu0 0
      %3397 = vmatpush1.bf16.msra.mxu0 0
      %3398 = vmatprep.subr.bf16.mxu0 0
      %3399 = vmatpush1.bf16.msra.mxu0 0
      %3400 = vmatprep.subr.bf16.mxu0 0
      %3401 = vmatpush1.bf16.msra.mxu0 0
      %3402 = vmatprep.subr.bf16.mxu0 0
      %3403 = vmatpush1.bf16.msra.mxu0 0
      %3404 = vmatprep.subr.bf16.mxu0 0
      %3405 = vmatpush1.bf16.msra.mxu0 0
      %3406 = vmatprep.subr.bf16.mxu0 0
      %3407 = vmatpush1.bf16.msra.mxu0 0
      %3408 = vmatprep.subr.bf16.mxu0 0
      %3409 = vmatpush1.bf16.msra.mxu0 0
      %3410 = vmatprep.subr.bf16.mxu0 0
      %3411 = vmatpush1.bf16.msra.mxu0 0
      %3412 = vmatprep.subr.bf16.mxu0 0
      %3413 = vmatpush1.bf16.msra.mxu0 0
      %3414 = vmatprep.subr.bf16.mxu0 0
      %3415 = vmatpush1.bf16.msra.mxu0 0
      %3416 = vmatprep.subr.bf16.mxu0 0
      %3417 = vmatpush1.bf16.msra.mxu0 0
      %3418 = vmatprep.subr.bf16.mxu0 0
      %3419 = vmatpush1.bf16.msra.mxu0 0
      %3420 = vmatprep.mubr.bf16.mxu0 0
      %3421 = vmatmul.mubr.bf16.gmra.mrb[0].mxu0 %v1986
      %v3422 = vpop.f32.mrb[0].mxu0
      %v3423 = vadd.f32 0.0, %v3422
      %v3424 = vpop.f32.mrb[0].mxu0
      %v3425 = vadd.f32 0.0, %v3424
      %v3426 = vpop.f32.mrb[0].mxu0
      %v3427 = vadd.f32 0.0, %v3426
      %v3428 = vpop.f32.mrb[0].mxu0
      %v3429 = vadd.f32 0.0, %v3428
      %3430 = vmatprep.mubr.bf16.mxu0 0
      %3431 = vmatmul.mubr.bf16.gmra.mrb[0].mxu0 %v1989
      %v3432 = vpop.f32.mrb[0].mxu0
      %v3433 = vadd.f32 0.0, %v3432
      %v3434 = vpop.f32.mrb[0].mxu0
      %v3435 = vadd.f32 0.0, %v3434
      %v3436 = vpop.f32.mrb[0].mxu0
      %v3437 = vadd.f32 0.0, %v3436
      %v3438 = vpop.f32.mrb[0].mxu0
      %v3439 = vadd.f32 0.0, %v3438
      %3440 = vmatprep.mubr.bf16.mxu0 0
      %3441 = vmatmul.mubr.bf16.gmra.mrb[0].mxu0 %v1992
      %v3442 = vpop.f32.mrb[0].mxu0
      %v3443 = vadd.f32 0.0, %v3442
      %v3444 = vpop.f32.mrb[0].mxu0
      %v3445 = vadd.f32 0.0, %v3444
      %v3446 = vpop.f32.mrb[0].mxu0
      %v3447 = vadd.f32 0.0, %v3446
      %v3448 = vpop.f32.mrb[0].mxu0
      %v3449 = vadd.f32 0.0, %v3448
      %3450 = vmatprep.mubr.bf16.mxu0 0
      %3451 = vmatmul.mubr.bf16.gmra.mrb[0].mxu0 %v1995
      %v3452 = vpop.f32.mrb[0].mxu0
      %v3453 = vadd.f32 0.0, %v3452
      %v3454 = vpop.f32.mrb[0].mxu0
      %v3455 = vadd.f32 0.0, %v3454
      %v3456 = vpop.f32.mrb[0].mxu0
      %v3457 = vadd.f32 0.0, %v3456
      %v3458 = vpop.f32.mrb[0].mxu0
      %v3459 = vadd.f32 0.0, %v3458
      %3460 = vmatprep.mubr.bf16.mxu0 0
      %3461 = vmatmul.mubr.bf16.gmra.mrb[0].mxu0 %v1998
      %v3462 = vpop.f32.mrb[0].mxu0
      %v3463 = vadd.f32 0.0, %v3462
      %v3464 = vpop.f32.mrb[0].mxu0
      %v3465 = vadd.f32 0.0, %v3464
      %v3466 = vpop.f32.mrb[0].mxu0
      %v3467 = vadd.f32 0.0, %v3466
      %v3468 = vpop.f32.mrb[0].mxu0
      %v3469 = vadd.f32 0.0, %v3468
      %3470 = vmatprep.mubr.bf16.mxu0 0
      %3471 = vmatmul.mubr.bf16.gmra.mrb[0].mxu0 %v2001
      %v3472 = vpop.f32.mrb[0].mxu0
      %v3473 = vadd.f32 0.0, %v3472
      %v3474 = vpop.f32.mrb[0].mxu0
      %v3475 = vadd.f32 0.0, %v3474
      %v3476 = vpop.f32.mrb[0].mxu0
      %v3477 = vadd.f32 0.0, %v3476
      %v3478 = vpop.f32.mrb[0].mxu0
      %v3479 = vadd.f32 0.0, %v3478
      %3480 = vdwg.mxu0
      %v3481 = vadd.f32 %v1877, %v3423
      %v3482 = vadd.f32 %v1879, %v3425
      %v3483 = vadd.f32 %v1881, %v3427
      %v3484 = vadd.f32 %v1883, %v3429
      %v3485 = vadd.f32 %v1887, %v3433
      %v3486 = vadd.f32 %v1889, %v3435
      %v3487 = vadd.f32 %v1891, %v3437
      %v3488 = vadd.f32 %v1893, %v3439
      %v3489 = vadd.f32 %v1897, %v3443
      %v3490 = vadd.f32 %v1899, %v3445
      %v3491 = vadd.f32 %v1901, %v3447
      %v3492 = vadd.f32 %v1903, %v3449
      %v3493 = vadd.f32 %v1907, %v3453
      %v3494 = vadd.f32 %v1909, %v3455
      %v3495 = vadd.f32 %v1911, %v3457
      %v3496 = vadd.f32 %v1913, %v3459
      %v3497 = vxor.u32 %v3481, 2147483648
      %v3498 = vxor.u32 %v3482, 2147483648
      %v3499 = vxor.u32 %v3483, 2147483648
      %v3500 = vxor.u32 %v3484, 2147483648
      %v3501 = vxor.u32 %v3485, 2147483648
      %v3502 = vxor.u32 %v3486, 2147483648
      %v3503 = vxor.u32 %v3487, 2147483648
      %v3504 = vxor.u32 %v3488, 2147483648
      %v3505 = vxor.u32 %v3489, 2147483648
      %v3506 = vxor.u32 %v3490, 2147483648
      %v3507 = vxor.u32 %v3491, 2147483648
      %v3508 = vxor.u32 %v3492, 2147483648
      %v3509 = vxor.u32 %v3493, 2147483648
      %v3510 = vxor.u32 %v3494, 2147483648
      %v3511 = vxor.u32 %v3495, 2147483648
      %v3512 = vxor.u32 %v3496, 2147483648
      %v3513 = vmul.f32 %v3497, 1.442695
      %v3514 = vpow.pop %v3513
      %v3515 = vmul.f32 %v3498, 1.442695
      %v3516 = vpow.pop %v3515
      %v3517 = vmul.f32 %v3499, 1.442695
      %v3518 = vpow.pop %v3517
      %v3519 = vmul.f32 %v3500, 1.442695
      %v3520 = vpow.pop %v3519
      %v3521 = vmul.f32 %v3501, 1.442695
      %v3522 = vpow.pop %v3521
      %v3523 = vmul.f32 %v3502, 1.442695
      %v3524 = vpow.pop %v3523
      %v3525 = vmul.f32 %v3503, 1.442695
      %v3526 = vpow.pop %v3525
      %v3527 = vmul.f32 %v3504, 1.442695
      %v3528 = vpow.pop %v3527
      %v3529 = vmul.f32 %v3505, 1.442695
      %v3530 = vpow.pop %v3529
      %v3531 = vmul.f32 %v3506, 1.442695
      %v3532 = vpow.pop %v3531
      %v3533 = vmul.f32 %v3507, 1.442695
      %v3534 = vpow.pop %v3533
      %v3535 = vmul.f32 %v3508, 1.442695
      %v3536 = vpow.pop %v3535
      %v3537 = vmul.f32 %v3509, 1.442695
      %v3538 = vpow.pop %v3537
      %v3539 = vmul.f32 %v3510, 1.442695
      %v3540 = vpow.pop %v3539
      %v3541 = vmul.f32 %v3511, 1.442695
      %v3542 = vpow.pop %v3541
      %v3543 = vmul.f32 %v3512, 1.442695
      %v3544 = vpow.pop %v3543
      %v3545 = vadd.f32 %v3514, 1.0
      %v3546 = vadd.f32 %v3516, 1.0
      %v3547 = vadd.f32 %v3518, 1.0
      %v3548 = vadd.f32 %v3520, 1.0
      %v3549 = vadd.f32 %v3522, 1.0
      %v3550 = vadd.f32 %v3524, 1.0
      %v3551 = vadd.f32 %v3526, 1.0
      %v3552 = vadd.f32 %v3528, 1.0
      %v3553 = vadd.f32 %v3530, 1.0
      %v3554 = vadd.f32 %v3532, 1.0
      %v3555 = vadd.f32 %v3534, 1.0
      %v3556 = vadd.f32 %v3536, 1.0
      %v3557 = vadd.f32 %v3538, 1.0
      %v3558 = vadd.f32 %v3540, 1.0
      %v3559 = vadd.f32 %v3542, 1.0
      %v3560 = vadd.f32 %v3544, 1.0
      %v3561 = vrcp.pop %v3545
      %v3562 = vmul.f32 1.0, %v3561
      %v3563 = vrcp.pop %v3546
      %v3564 = vmul.f32 1.0, %v3563
      %v3565 = vrcp.pop %v3547
      %v3566 = vmul.f32 1.0, %v3565
      %v3567 = vrcp.pop %v3548
      %v3568 = vmul.f32 1.0, %v3567
      %v3569 = vrcp.pop %v3549
      %v3570 = vmul.f32 1.0, %v3569
      %v3571 = vrcp.pop %v3550
      %v3572 = vmul.f32 1.0, %v3571
      %v3573 = vrcp.pop %v3551
      %v3574 = vmul.f32 1.0, %v3573
      %v3575 = vrcp.pop %v3552
      %v3576 = vmul.f32 1.0, %v3575
      %v3577 = vrcp.pop %v3553
      %v3578 = vmul.f32 1.0, %v3577
      %v3579 = vrcp.pop %v3554
      %v3580 = vmul.f32 1.0, %v3579
      %v3581 = vrcp.pop %v3555
      %v3582 = vmul.f32 1.0, %v3581
      %v3583 = vrcp.pop %v3556
      %v3584 = vmul.f32 1.0, %v3583
      %v3585 = vrcp.pop %v3557
      %v3586 = vmul.f32 1.0, %v3585
      %v3587 = vrcp.pop %v3558
      %v3588 = vmul.f32 1.0, %v3587
      %v3589 = vrcp.pop %v3559
      %v3590 = vmul.f32 1.0, %v3589
      %v3591 = vrcp.pop %v3560
      %v3592 = vmul.f32 1.0, %v3591
      %v3593 = vadd.f32 %v3463, %v2211
      %v3594 = vadd.f32 %v3465, %v2211
      %v3595 = vadd.f32 %v3467, %v2216
      %v3596 = vadd.f32 %v3469, %v2216
      %v3597 = vadd.f32 %v3473, %v2221
      %v3598 = vadd.f32 %v3475, %v2221
      %v3599 = vadd.f32 %v3477, %v2226
      %v3600 = vadd.f32 %v3479, %v2226
      %v3601 = vmul.f32 %v3562, %v3593
      %v3602 = vmul.f32 %v3564, %v3594
      %v3603 = vmul.f32 %v3566, %v3595
      %v3604 = vmul.f32 %v3568, %v3596
      %v3605 = vmul.f32 %v3570, %v3597
      %v3606 = vmul.f32 %v3572, %v3598
      %v3607 = vmul.f32 %v3574, %v3599
      %v3608 = vmul.f32 %v3576, %v3600
      %v3609 = vadd.f32 %v1917, %v3601
      %v3610 = vadd.f32 %v1919, %v3602
      %v3611 = vadd.f32 %v1921, %v3603
      %v3612 = vadd.f32 %v1923, %v3604
      %v3613 = vadd.f32 %v1927, %v3605
      %v3614 = vadd.f32 %v1929, %v3606
      %v3615 = vadd.f32 %v1931, %v3607
      %v3616 = vadd.f32 %v1933, %v3608
      %v3617 = vtanh.pop %v3609
      %v3618 = vtanh.pop %v3610
      %v3619 = vtanh.pop %v3611
      %v3620 = vtanh.pop %v3612
      %v3621 = vtanh.pop %v3613
      %v3622 = vtanh.pop %v3614
      %v3623 = vtanh.pop %v3615
      %v3624 = vtanh.pop %v3616
      %v3625 = vsub.f32 1.0, %v3578
      %v3626 = vsub.f32 1.0, %v3580
      %v3627 = vsub.f32 1.0, %v3582
      %v3628 = vsub.f32 1.0, %v3584
      %v3629 = vsub.f32 1.0, %v3586
      %v3630 = vsub.f32 1.0, %v3588
      %v3631 = vsub.f32 1.0, %v3590
      %v3632 = vsub.f32 1.0, %v3592
      %v3633 = vmul.f32 %v3625, %v3617
      %v3634 = vmul.f32 %v3626, %v3618
      %v3635 = vmul.f32 %v3627, %v3619
      %v3636 = vmul.f32 %v3628, %v3620
      %v3637 = vmul.f32 %v3629, %v3621
      %v3638 = vmul.f32 %v3630, %v3622
      %v3639 = vmul.f32 %v3631, %v3623
      %v3640 = vmul.f32 %v3632, %v3624
      %v3641 = vmul.f32 %v3578, %v3376
      %v3642 = vmul.f32 %v3580, %v3377
      %v3643 = vmul.f32 %v3582, %v3378
      %v3644 = vmul.f32 %v3584, %v3379
      %v3645 = vmul.f32 %v3586, %v3380
      %v3646 = vmul.f32 %v3588, %v3381
      %v3647 = vmul.f32 %v3590, %v3382
      %v3648 = vmul.f32 %v3592, %v3383
      %v3649 = vadd.f32 %v3633, %v3641
      %v3650 = vadd.f32 %v3634, %v3642
      %v3651 = vadd.f32 %v3635, %v3643
      %v3652 = vadd.f32 %v3636, %v3644
      %v3653 = vadd.f32 %v3637, %v3645
      %v3654 = vadd.f32 %v3638, %v3646
      %v3655 = vadd.f32 %v3639, %v3647
      %v3656 = vadd.f32 %v3640, %v3648
      %v3657 = vpack.c.bf16 %v3651, %v3649
      %v3658 = vpack.c.bf16 %v3652, %v3650
      %v3659 = vpack.c.bf16 %v3655, %v3653
      %v3660 = vpack.c.bf16 %v3656, %v3654
      %3661 = vmatprep.subr.bf16.mxu0 %v3658
      %3662 = vmatpush1.bf16.msra.mxu0 %v3657
      %3663 = vmatprep.subr.bf16.mxu0 %v3660
      %3664 = vmatpush1.bf16.msra.mxu0 %v3659
      %3665 = vmatprep.subr.bf16.mxu0 0
      %3666 = vmatpush1.bf16.msra.mxu0 0
      %3667 = vmatprep.subr.bf16.mxu0 0
      %3668 = vmatpush1.bf16.msra.mxu0 0
      %3669 = vmatprep.subr.bf16.mxu0 0
      %3670 = vmatpush1.bf16.msra.mxu0 0
      %3671 = vmatprep.subr.bf16.mxu0 0
      %3672 = vmatpush1.bf16.msra.mxu0 0
      %3673 = vmatprep.subr.bf16.mxu0 0
      %3674 = vmatpush1.bf16.msra.mxu0 0
      %3675 = vmatprep.subr.bf16.mxu0 0
      %3676 = vmatpush1.bf16.msra.mxu0 0
      %3677 = vmatprep.subr.bf16.mxu0 0
      %3678 = vmatpush1.bf16.msra.mxu0 0
      %3679 = vmatprep.subr.bf16.mxu0 0
      %3680 = vmatpush1.bf16.msra.mxu0 0
      %3681 = vmatprep.subr.bf16.mxu0 0
      %3682 = vmatpush1.bf16.msra.mxu0 0
      %3683 = vmatprep.subr.bf16.mxu0 0
      %3684 = vmatpush1.bf16.msra.mxu0 0
      %3685 = vmatprep.subr.bf16.mxu0 0
      %3686 = vmatpush1.bf16.msra.mxu0 0
      %3687 = vmatprep.subr.bf16.mxu0 0
      %3688 = vmatpush1.bf16.msra.mxu0 0
      %3689 = vmatprep.subr.bf16.mxu0 0
      %3690 = vmatpush1.bf16.msra.mxu0 0
      %3691 = vmatprep.subr.bf16.mxu0 0
      %3692 = vmatpush1.bf16.msra.mxu0 0
      %3693 = vmatprep.mubr.bf16.mxu0 0
      %3694 = vmatmul.mubr.bf16.gmra.mrb[0].mxu0 %v1986
      %v3695 = vpop.f32.mrb[0].mxu0
      %v3696 = vadd.f32 0.0, %v3695
      %v3697 = vpop.f32.mrb[0].mxu0
      %v3698 = vadd.f32 0.0, %v3697
      %v3699 = vpop.f32.mrb[0].mxu0
      %v3700 = vadd.f32 0.0, %v3699
      %v3701 = vpop.f32.mrb[0].mxu0
      %v3702 = vadd.f32 0.0, %v3701
      %3703 = vmatprep.mubr.bf16.mxu0 0
      %3704 = vmatmul.mubr.bf16.gmra.mrb[0].mxu0 %v1989
      %v3705 = vpop.f32.mrb[0].mxu0
      %v3706 = vadd.f32 0.0, %v3705
      %v3707 = vpop.f32.mrb[0].mxu0
      %v3708 = vadd.f32 0.0, %v3707
      %v3709 = vpop.f32.mrb[0].mxu0
      %v3710 = vadd.f32 0.0, %v3709
      %v3711 = vpop.f32.mrb[0].mxu0
      %v3712 = vadd.f32 0.0, %v3711
      %3713 = vmatprep.mubr.bf16.mxu0 0
      %3714 = vmatmul.mubr.bf16.gmra.mrb[0].mxu0 %v1992
      %v3715 = vpop.f32.mrb[0].mxu0
      %v3716 = vadd.f32 0.0, %v3715
      %v3717 = vpop.f32.mrb[0].mxu0
      %v3718 = vadd.f32 0.0, %v3717
      %v3719 = vpop.f32.mrb[0].mxu0
      %v3720 = vadd.f32 0.0, %v3719
      %v3721 = vpop.f32.mrb[0].mxu0
      %v3722 = vadd.f32 0.0, %v3721
      %3723 = vmatprep.mubr.bf16.mxu0 0
      %3724 = vmatmul.mubr.bf16.gmra.mrb[0].mxu0 %v1995
      %v3725 = vpop.f32.mrb[0].mxu0
      %v3726 = vadd.f32 0.0, %v3725
      %v3727 = vpop.f32.mrb[0].mxu0
      %v3728 = vadd.f32 0.0, %v3727
      %v3729 = vpop.f32.mrb[0].mxu0
      %v3730 = vadd.f32 0.0, %v3729
      %v3731 = vpop.f32.mrb[0].mxu0
      %v3732 = vadd.f32 0.0, %v3731
      %3733 = vmatprep.mubr.bf16.mxu0 0
      %3734 = vmatmul.mubr.bf16.gmra.mrb[0].mxu0 %v1998
      %v3735 = vpop.f32.mrb[0].mxu0
      %v3736 = vadd.f32 0.0, %v3735
      %v3737 = vpop.f32.mrb[0].mxu0
      %v3738 = vadd.f32 0.0, %v3737
      %v3739 = vpop.f32.mrb[0].mxu0
      %v3740 = vadd.f32 0.0, %v3739
      %v3741 = vpop.f32.mrb[0].mxu0
      %v3742 = vadd.f32 0.0, %v3741
      %3743 = vmatprep.mubr.bf16.mxu0 0
      %3744 = vmatmul.mubr.bf16.gmra.mrb[0].mxu0 %v2001
      %v3745 = vpop.f32.mrb[0].mxu0
      %v3746 = vadd.f32 0.0, %v3745
      %v3747 = vpop.f32.mrb[0].mxu0
      %v3748 = vadd.f32 0.0, %v3747
      %v3749 = vpop.f32.mrb[0].mxu0
      %v3750 = vadd.f32 0.0, %v3749
      %v3751 = vpop.f32.mrb[0].mxu0
      %v3752 = vadd.f32 0.0, %v3751
      %3753 = vdwg.mxu0
      %v3754 = vadd.f32 %v1877, %v3696
      %v3755 = vadd.f32 %v1879, %v3698
      %v3756 = vadd.f32 %v1881, %v3700
      %v3757 = vadd.f32 %v1883, %v3702
      %v3758 = vadd.f32 %v1887, %v3706
      %v3759 = vadd.f32 %v1889, %v3708
      %v3760 = vadd.f32 %v1891, %v3710
      %v3761 = vadd.f32 %v1893, %v3712
      %v3762 = vadd.f32 %v1897, %v3716
      %v3763 = vadd.f32 %v1899, %v3718
      %v3764 = vadd.f32 %v1901, %v3720
      %v3765 = vadd.f32 %v1903, %v3722
      %v3766 = vadd.f32 %v1907, %v3726
      %v3767 = vadd.f32 %v1909, %v3728
      %v3768 = vadd.f32 %v1911, %v3730
      %v3769 = vadd.f32 %v1913, %v3732
      %v3770 = vxor.u32 %v3754, 2147483648
      %v3771 = vxor.u32 %v3755, 2147483648
      %v3772 = vxor.u32 %v3756, 2147483648
      %v3773 = vxor.u32 %v3757, 2147483648
      %v3774 = vxor.u32 %v3758, 2147483648
      %v3775 = vxor.u32 %v3759, 2147483648
      %v3776 = vxor.u32 %v3760, 2147483648
      %v3777 = vxor.u32 %v3761, 2147483648
      %v3778 = vxor.u32 %v3762, 2147483648
      %v3779 = vxor.u32 %v3763, 2147483648
      %v3780 = vxor.u32 %v3764, 2147483648
      %v3781 = vxor.u32 %v3765, 2147483648
      %v3782 = vxor.u32 %v3766, 2147483648
      %v3783 = vxor.u32 %v3767, 2147483648
      %v3784 = vxor.u32 %v3768, 2147483648
      %v3785 = vxor.u32 %v3769, 2147483648
      %v3786 = vmul.f32 %v3770, 1.442695
      %v3787 = vpow.pop %v3786
      %v3788 = vmul.f32 %v3771, 1.442695
      %v3789 = vpow.pop %v3788
      %v3790 = vmul.f32 %v3772, 1.442695
      %v3791 = vpow.pop %v3790
      %v3792 = vmul.f32 %v3773, 1.442695
      %v3793 = vpow.pop %v3792
      %v3794 = vmul.f32 %v3774, 1.442695
      %v3795 = vpow.pop %v3794
      %v3796 = vmul.f32 %v3775, 1.442695
      %v3797 = vpow.pop %v3796
      %v3798 = vmul.f32 %v3776, 1.442695
      %v3799 = vpow.pop %v3798
      %v3800 = vmul.f32 %v3777, 1.442695
      %v3801 = vpow.pop %v3800
      %v3802 = vmul.f32 %v3778, 1.442695
      %v3803 = vpow.pop %v3802
      %v3804 = vmul.f32 %v3779, 1.442695
      %v3805 = vpow.pop %v3804
      %v3806 = vmul.f32 %v3780, 1.442695
      %v3807 = vpow.pop %v3806
      %v3808 = vmul.f32 %v3781, 1.442695
      %v3809 = vpow.pop %v3808
      %v3810 = vmul.f32 %v3782, 1.442695
      %v3811 = vpow.pop %v3810
      %v3812 = vmul.f32 %v3783, 1.442695
      %v3813 = vpow.pop %v3812
      %v3814 = vmul.f32 %v3784, 1.442695
      %v3815 = vpow.pop %v3814
      %v3816 = vmul.f32 %v3785, 1.442695
      %v3817 = vpow.pop %v3816
      %v3818 = vadd.f32 %v3787, 1.0
      %v3819 = vadd.f32 %v3789, 1.0
      %v3820 = vadd.f32 %v3791, 1.0
      %v3821 = vadd.f32 %v3793, 1.0
      %v3822 = vadd.f32 %v3795, 1.0
      %v3823 = vadd.f32 %v3797, 1.0
      %v3824 = vadd.f32 %v3799, 1.0
      %v3825 = vadd.f32 %v3801, 1.0
      %v3826 = vadd.f32 %v3803, 1.0
      %v3827 = vadd.f32 %v3805, 1.0
      %v3828 = vadd.f32 %v3807, 1.0
      %v3829 = vadd.f32 %v3809, 1.0
      %v3830 = vadd.f32 %v3811, 1.0
      %v3831 = vadd.f32 %v3813, 1.0
      %v3832 = vadd.f32 %v3815, 1.0
      %v3833 = vadd.f32 %v3817, 1.0
      %v3834 = vrcp.pop %v3818
      %v3835 = vmul.f32 1.0, %v3834
      %v3836 = vrcp.pop %v3819
      %v3837 = vmul.f32 1.0, %v3836
      %v3838 = vrcp.pop %v3820
      %v3839 = vmul.f32 1.0, %v3838
      %v3840 = vrcp.pop %v3821
      %v3841 = vmul.f32 1.0, %v3840
      %v3842 = vrcp.pop %v3822
      %v3843 = vmul.f32 1.0, %v3842
      %v3844 = vrcp.pop %v3823
      %v3845 = vmul.f32 1.0, %v3844
      %v3846 = vrcp.pop %v3824
      %v3847 = vmul.f32 1.0, %v3846
      %v3848 = vrcp.pop %v3825
      %v3849 = vmul.f32 1.0, %v3848
      %v3850 = vrcp.pop %v3826
      %v3851 = vmul.f32 1.0, %v3850
      %v3852 = vrcp.pop %v3827
      %v3853 = vmul.f32 1.0, %v3852
      %v3854 = vrcp.pop %v3828
      %v3855 = vmul.f32 1.0, %v3854
      %v3856 = vrcp.pop %v3829
      %v3857 = vmul.f32 1.0, %v3856
      %v3858 = vrcp.pop %v3830
      %v3859 = vmul.f32 1.0, %v3858
      %v3860 = vrcp.pop %v3831
      %v3861 = vmul.f32 1.0, %v3860
      %v3862 = vrcp.pop %v3832
      %v3863 = vmul.f32 1.0, %v3862
      %v3864 = vrcp.pop %v3833
      %v3865 = vmul.f32 1.0, %v3864
      %v3866 = vadd.f32 %v3736, %v2211
      %v3867 = vadd.f32 %v3738, %v2211
      %v3868 = vadd.f32 %v3740, %v2216
      %v3869 = vadd.f32 %v3742, %v2216
      %v3870 = vadd.f32 %v3746, %v2221
      %v3871 = vadd.f32 %v3748, %v2221
      %v3872 = vadd.f32 %v3750, %v2226
      %v3873 = vadd.f32 %v3752, %v2226
      %v3874 = vmul.f32 %v3835, %v3866
      %v3875 = vmul.f32 %v3837, %v3867
      %v3876 = vmul.f32 %v3839, %v3868
      %v3877 = vmul.f32 %v3841, %v3869
      %v3878 = vmul.f32 %v3843, %v3870
      %v3879 = vmul.f32 %v3845, %v3871
      %v3880 = vmul.f32 %v3847, %v3872
      %v3881 = vmul.f32 %v3849, %v3873
      %v3882 = vadd.f32 %v1917, %v3874
      %v3883 = vadd.f32 %v1919, %v3875
      %v3884 = vadd.f32 %v1921, %v3876
      %v3885 = vadd.f32 %v1923, %v3877
      %v3886 = vadd.f32 %v1927, %v3878
      %v3887 = vadd.f32 %v1929, %v3879
      %v3888 = vadd.f32 %v1931, %v3880
      %v3889 = vadd.f32 %v1933, %v3881
      %v3890 = vtanh.pop %v3882
      %v3891 = vtanh.pop %v3883
      %v3892 = vtanh.pop %v3884
      %v3893 = vtanh.pop %v3885
      %v3894 = vtanh.pop %v3886
      %v3895 = vtanh.pop %v3887
      %v3896 = vtanh.pop %v3888
      %v3897 = vtanh.pop %v3889
      %v3898 = vsub.f32 1.0, %v3851
      %v3899 = vsub.f32 1.0, %v3853
      %v3900 = vsub.f32 1.0, %v3855
      %v3901 = vsub.f32 1.0, %v3857
      %v3902 = vsub.f32 1.0, %v3859
      %v3903 = vsub.f32 1.0, %v3861
      %v3904 = vsub.f32 1.0, %v3863
      %v3905 = vsub.f32 1.0, %v3865
      %v3906 = vmul.f32 %v3898, %v3890
      %v3907 = vmul.f32 %v3899, %v3891
      %v3908 = vmul.f32 %v3900, %v3892
      %v3909 = vmul.f32 %v3901, %v3893
      %v3910 = vmul.f32 %v3902, %v3894
      %v3911 = vmul.f32 %v3903, %v3895
      %v3912 = vmul.f32 %v3904, %v3896
      %v3913 = vmul.f32 %v3905, %v3897
      %v3914 = vmul.f32 %v3851, %v3649
      %v3915 = vmul.f32 %v3853, %v3650
      %v3916 = vmul.f32 %v3855, %v3651
      %v3917 = vmul.f32 %v3857, %v3652
      %v3918 = vmul.f32 %v3859, %v3653
      %v3919 = vmul.f32 %v3861, %v3654
      %v3920 = vmul.f32 %v3863, %v3655
      %v3921 = vmul.f32 %v3865, %v3656
      %v3922 = vadd.f32 %v3906, %v3914
      %v3923 = vadd.f32 %v3907, %v3915
      %v3924 = vadd.f32 %v3908, %v3916
      %v3925 = vadd.f32 %v3909, %v3917
      %v3926 = vadd.f32 %v3910, %v3918
      %v3927 = vadd.f32 %v3911, %v3919
      %v3928 = vadd.f32 %v3912, %v3920
      %v3929 = vadd.f32 %v3913, %v3921
      %v3930 = vld [vmem:[%s10] sm:$0x3]
      %v3931 = vpack.c.bf16 %v3924, %v3922
      %v3932 = vpack.c.bf16 %v3925, %v3923
      %v3933 = vpack.c.bf16 %v3928, %v3926
      %v3934 = vpack.c.bf16 %v3929, %v3927
      %v3936 = vsel %vm671, %v3930, 0
      %3938 = vmatprep.subr.bf16.mxu0 %v3932
      %3939 = vmatpush1.bf16.msra.mxu0 %v3931
      %3940 = vmatprep.subr.bf16.mxu0 %v3934
      %3941 = vmatpush1.bf16.msra.mxu0 %v3933
      %3942 = vmatprep.subr.bf16.mxu0 0
      %3943 = vmatpush1.bf16.msra.mxu0 0
      %3944 = vmatprep.subr.bf16.mxu0 0
      %3945 = vmatpush1.bf16.msra.mxu0 0
      %3946 = vmatprep.subr.bf16.mxu0 0
      %3947 = vmatpush1.bf16.msra.mxu0 0
      %3948 = vmatprep.subr.bf16.mxu0 0
      %3949 = vmatpush1.bf16.msra.mxu0 0
      %3950 = vmatprep.subr.bf16.mxu0 0
      %3951 = vmatpush1.bf16.msra.mxu0 0
      %3952 = vmatprep.subr.bf16.mxu0 0
      %3953 = vmatpush1.bf16.msra.mxu0 0
      %3954 = vmatprep.subr.bf16.mxu0 0
      %3955 = vmatpush1.bf16.msra.mxu0 0
      %3956 = vmatprep.subr.bf16.mxu0 0
      %3957 = vmatpush1.bf16.msra.mxu0 0
      %3958 = vmatprep.subr.bf16.mxu0 0
      %3959 = vmatpush1.bf16.msra.mxu0 0
      %3960 = vmatprep.subr.bf16.mxu0 0
      %3961 = vmatpush1.bf16.msra.mxu0 0
      %3962 = vmatprep.subr.bf16.mxu0 0
      %3963 = vmatpush1.bf16.msra.mxu0 0
      %3964 = vmatprep.subr.bf16.mxu0 0
      %3965 = vmatpush1.bf16.msra.mxu0 0
      %3966 = vmatprep.subr.bf16.mxu0 0
      %3967 = vmatpush1.bf16.msra.mxu0 0
      %3968 = vmatprep.subr.bf16.mxu0 0
      %3969 = vmatpush1.bf16.msra.mxu0 0
      %3970 = vmatprep.mubr.bf16.mxu0 0
      %3971 = vmatmul.mubr.bf16.gmra.mrb[0].mxu0 %v3936
      %v3972 = vpop.f32.mrb[0].mxu0
      %v3973 = vadd.f32 0.0, %v3972
      %v3974 = vpop.f32.mrb[0].mxu0
      %v3975 = vadd.f32 0.0, %v3974
      %v3976 = vpop.f32.mrb[0].mxu0
      %v3977 = vpop.f32.mrb[0].mxu0
      %3978 = vdwg.mxu0
      %vm3979 = vcmask 1043456
      %v3980 = vsel %vm3979, %v3973, -inf
      %v3981 = vrot.slane %v3980, 4
      %v3982 = vmax.f32 %v3980, %v3981
      %v3983 = vrot.slane %v3982, 2
      %v3984 = vmax.f32 %v3982, %v3983
      %v3985 = vrot.slane %v3984, 1
      %v3986 = vmax.f32 %v3984, %v3985
      %v3987 = vsel %vm3979, %v3975, -inf
      %v3988 = vrot.slane %v3987, 4
      %v3989 = vmax.f32 %v3987, %v3988
      %v3990 = vrot.slane %v3989, 2
      %v3991 = vmax.f32 %v3989, %v3990
      %v3992 = vrot.slane %v3991, 1
      %v3993 = vmax.f32 %v3991, %v3992
      %v3994 = vsub.f32 %v3973, %v3986
      %v3995 = vsub.f32 %v3975, %v3993
      %v3996 = vmul.f32 %v3994, 1.442695
      %v3997 = vpow.pop %v3996
      %v3998 = vmul.f32 %v3995, 1.442695
      %v3999 = vpow.pop %v3998
      %v4000 = vsel %vm3979, %v3997, 0.0
      %v4001 = vrot.slane %v4000, 4
      %v4002 = vadd.f32 %v4000, %v4001
      %v4003 = vrot.slane %v4002, 2
      %v4004 = vadd.f32 %v4002, %v4003
      %v4005 = vrot.slane %v4004, 1
      %v4006 = vadd.f32 %v4004, %v4005
      %v4007 = vsel %vm3979, %v3999, 0.0
      %v4008 = vrot.slane %v4007, 4
      %v4009 = vadd.f32 %v4007, %v4008
      %v4010 = vrot.slane %v4009, 2
      %v4011 = vadd.f32 %v4009, %v4010
      %v4012 = vrot.slane %v4011, 1
      %v4013 = vadd.f32 %v4011, %v4012
      %v4014 = vrcp.pop %v4006
      %v4015 = vrcp.pop %v4013
      %v4016 = vmul.f32 %v4006, %v4014
      %v4017 = vmul.f32 %v4013, %v4015
      %v4018 = vsub.f32 2.0, %v4016
      %v4019 = vsub.f32 2.0, %v4017
      %v4020 = vmul.f32 %v4014, %v4018
      %v4021 = vmul.f32 %v4015, %v4019
      %v4024 = vcombine.low %v3973, %v3975
      %4026 = vst [vmem:[%s421] sm:$0xff] %v4024
      %v4027 = vmul.f32 %v3997, %v4020
      %v4028 = vmul.f32 %v3999, %v4021
      %v4031 = vcombine.low %v4027, %v4028
      %4033 = vst [vmem:[%s426] sm:$0xff] %v4031
      %p4034 = scmp.lt.s32.totalorder %s24, 1
      %s4035 = scalar_select %p4034, %s24, 1
      %s4036 = smul.addr %s4035, 2
      %s4037 = smul.addr %s4036, 4
      %s4038 = scalar_lea.vmem %s11, %s4037
      %p4039 = scmp.lt.s32.totalorder %s24, 1
      %s4040 = scalar_select %p4039, %s24, 1
      %s4041 = smul.addr %s4040, 2
      %s4042 = smul.addr %s4041, 4
      %s4043 = scalar_lea.vmem %s12, %s4042
      // Predicated region
      $region65: #{planner_forward.1} parent=63 // pred_check
        %p4044 = pneg %p278
      $region66: #{planner_forward.1} parent=63 // pred_check_branch
        %4046 = sbr.rel (%p4044) target = $region68
      $region67: #{planner_forward.1} parent=63 // pred_region
        _
      $region68: #{planner_forward.1} parent=63 // pred_fallthru
        _
      // Predicated region
      $region69: #{planner_forward.1} parent=63 // pred_check
        %p4047 = pneg %p304
      $region70: #{planner_forward.1} parent=63 // pred_check_branch
        %4049 = sbr.rel (%p4047) target = $region72
      $region71: #{planner_forward.1} parent=63 // pred_region
        _
      $region72: #{planner_forward.1} parent=63 // pred_fallthru
        _
    $region64: #{planner_forward.1} parent=5 // pred_fallthru
      _
    %p4050 = scmp.le.s32.totalorder 2, %s19
    // Predicated region
    $region73: #{planner_forward.1} parent=5 // pred_check
      %p4051 = pneg %p4050
    $region74: #{planner_forward.1} parent=5 // pred_check_branch
      %4053 = sbr.rel (%p4051) target = $region76
    $region75: #{planner_forward.1} parent=5 // pred_region
      %s4054 = ssub.s32 %s19, 2
      // Predicated region
      $region77: #{planner_forward.1} parent=75 // pred_check
        %p4055 = pneg %p284
      $region78: #{planner_forward.1} parent=75 // pred_check_branch
        %4057 = sbr.rel (%p4055) target = $region80
      $region79: #{planner_forward.1} parent=75 // pred_region
        %p4058 = scmp.lt.s32.totalorder %s25, 1
        %s4059 = scalar_select %p4058, %s25, 1
        %s4060 = smul.addr %s4059, 2
        %s4061 = smul.addr %s4060, 4
        %s4062 = scalar_lea.vmem %s11, %s4061
      $region80: #{planner_forward.1} parent=75 // pred_fallthru
        _
      // Predicated region
      $region81: #{planner_forward.1} parent=75 // pred_check
        %p4063 = pneg %p310
      $region82: #{planner_forward.1} parent=75 // pred_check_branch
        %4065 = sbr.rel (%p4063) target = $region84
      $region83: #{planner_forward.1} parent=75 // pred_region
        %p4066 = scmp.lt.s32.totalorder %s25, 1
        %s4067 = scalar_select %p4066, %s25, 1
        %s4068 = smul.addr %s4067, 2
        %s4069 = smul.addr %s4068, 4
        %s4070 = scalar_lea.vmem %s12, %s4069
      $region84: #{planner_forward.1} parent=75 // pred_fallthru
        _
    $region76: #{planner_forward.1} parent=5 // pred_fallthru
      _
  $region6: #{planner_forward.1} parent=0 // loop_footer
    %s23 = sadd.s32 1, %s19
  $region7: #{planner_forward.1} parent=0 // loop_footer_branch
    %18 = sbr.rel target = $region3
  $region8: #{planner_forward.1} parent=0 // loop_exit
    _

</llo_original>
